<compile_context>
chip_gen: v7x
topology: tpu7x:2x2x1
jax: 0.10.0
libtpu: 0.0.40
codegen_flags: <defaults>
</compile_context>

<pallas_src>
import functools
import numpy as np
import jax
import jax.numpy as jnp
from jax.experimental import pallas as pl
from jax.experimental.pallas import tpu as pltpu

INPUT_DIM = 9
HIDDEN_DIM = 64
OUTPUT_DIM = 9
NUM_LAYERS = 4
LN_EPS = 1e-5
NEG_SLOPE = 0.01

PUZZLE = 81      # real nodes per puzzle
OUT_PAD = 128    # lane-dense output width (sliced back to 9 in the wrapper)


# ----------------------------------------------------------------------------
# Pallas kernel: full forward for S row-tiles (S * puzzles_per_tile puzzles)
# ----------------------------------------------------------------------------
def sudoku_gnn_kernel(x_ref, adj_ref,
                      w_in_ref, b_in_ref,
                      w_res_ref, b_res_ref,
                      w_cat_ref, b_conv_ref,
                      gamma_ref, beta_ref,
                      w_out_ref, b_out_ref,
                      out_ref):
    S, TILE, _ = x_ref.shape
    R = S * TILE
    H = HIDDEN_DIM

    x = x_ref[...].reshape(R, INPUT_DIM).astype(jnp.bfloat16)           # (R, 9)

    # input_layer (bf16 operands, f32 accumulation)
    h = jnp.dot(x, w_in_ref[...], preferred_element_type=jnp.float32) + b_in_ref[...]

    # residual branch = Linear(hidden, hidden) on the input-layer activations
    residual = (jnp.dot(h.astype(jnp.bfloat16), w_res_ref[...],
                        preferred_element_type=jnp.float32) + b_res_ref[...])

    gamma = gamma_ref[...]                                              # (1, H)
    beta = beta_ref[...]                                                # (1, H)
    adj = adj_ref[...]          # (TILE, TILE) bf16, block-diagonal puzzle peers

    for l in range(NUM_LAYERS):                                         # static unroll, L=4
        h_b = h.astype(jnp.bfloat16)                                    # (R, H) bf16

        # Reordered GraphConv: u = h @ [W_root | W_rel]  (one N=2H bf16 matmul)
        u = jnp.dot(h_b, w_cat_ref[l], preferred_element_type=jnp.float32)  # (R, 2H)
        u_root = u[:, :H]                                               # (R, H) f32
        # lane slice at offset H; cheaper than the old per-layer concat + recast
        u_rel = u[:, H:].astype(jnp.bfloat16)                           # (R, H) bf16

        # Block-diagonal neighbor sum: one plain 2-D dot per row-tile against
        # the single stationary adjacency block (no broadcast, no batched einsum).
        u_rel3 = u_rel.reshape(S, TILE, H)
        agg = jnp.concatenate(
            [jnp.dot(adj, u_rel3[s], preferred_element_type=jnp.float32)
             for s in range(S)], axis=0)                                # (R, H) f32

        h = u_root + agg + b_conv_ref[l]                                # GraphConv out

        # LayerNorm over the hidden dim (f32)
        mean = jnp.mean(h, axis=-1, keepdims=True)
        var = jnp.mean((h - mean) * (h - mean), axis=-1, keepdims=True)
        h = (h - mean) * jax.lax.rsqrt(var + LN_EPS) * gamma + beta

        # LeakyReLU(0.01)
        h = jnp.where(h > 0, h, NEG_SLOPE * h)

        # Dropout(0.3): identity in inference / eval mode.
        # Residual connection (input-layer projection, same every layer)
        h = h + residual

    # output_layer (bf16 operands), lane-dense 128-wide; only the first
    # ROWS_STORE rows of each tile are written back (cuts HBM writeback).
    out = (jnp.dot(h.astype(jnp.bfloat16), w_out_ref[...],
                   preferred_element_type=jnp.float32) + b_out_ref[...])
    out3 = out.reshape(S, TILE, OUT_PAD)
    out_ref[...] = out3[:, :out_ref.shape[1], :]


# ----------------------------------------------------------------------------
# Static sudoku adjacency block (built once per (pack, tile) config, cached)
# ----------------------------------------------------------------------------
@functools.lru_cache(maxsize=4)
def sudoku_adjacency_block(puzzles_per_tile, tile_rows):
    idx = np.arange(PUZZLE)
    rows, cols = idx // 9, idx % 9
    boxes = (rows // 3) * 3 + (cols // 3)
    peer = ((rows[:, None] == rows[None, :]) |
            (cols[:, None] == cols[None, :]) |
            (boxes[:, None] == boxes[None, :])) & ~np.eye(PUZZLE, dtype=bool)
    block = np.zeros((tile_rows, tile_rows), np.float32)
    for g in range(puzzles_per_tile):
        o = g * PUZZLE
        block[o:o + PUZZLE, o:o + PUZZLE] = peer.astype(np.float32)  # A[dst, src]
    return jnp.asarray(block, dtype=jnp.bfloat16)                    # 0/1 exact in bf16


# ----------------------------------------------------------------------------
# Host-side parameter packing (done once, not per forward call)
# ----------------------------------------------------------------------------
def pack_params(params):
    # [W_root | W_rel] along the OUTPUT dim -> (L, H, 2H) bf16 (reordered conv).
    w_cat = jnp.concatenate([params["w_root"], params["w_rel"]], axis=2)
    w_out = (jnp.zeros((HIDDEN_DIM, OUT_PAD), jnp.float32)
             .at[:, :OUTPUT_DIM].set(params["w_out"]))
    b_out = (jnp.zeros((1, OUT_PAD), jnp.float32)
             .at[:, :OUTPUT_DIM].set(params["b_out"]))
    return {
        "w_in": params["w_in"].astype(jnp.bfloat16), "b_in": params["b_in"],
        "w_res": params["w_res"].astype(jnp.bfloat16), "b_res": params["b_res"],
        "w_cat": w_cat.astype(jnp.bfloat16),
        "b_conv": params["b_conv"],
        "gamma": params["gamma"], "beta": params["beta"],
        "w_out": w_out.astype(jnp.bfloat16), "b_out": b_out,
    }


# ----------------------------------------------------------------------------
# Wrapper
# ----------------------------------------------------------------------------
def sudoku_gnn_forward(x, edge_index, packed, batch_size,
                       puzzles_per_tile=3, target_puzzles_per_step=48):
    # edge_index is accepted for interface parity with the PyTorch module, but
    # the sudoku peer graph is static and block-diagonal, so we use the cached
    # per-tile block (the pure-JAX reference below validates against edge_index).
    #
    # puzzles_per_tile=3 packs 3 puzzles per 256-row tile (fills the 256-wide
    # MXU on v6e/v7x, ~5% pad waste).  On v5e (128-wide MXU) use 1.
    del edge_index
    G = puzzles_per_tile
    TILE = max(128, -(-(G * PUZZLE) // 128) * 128)      # 128 (G=1) / 256 (G=3)
    ROWS_STORE = -(-(G * PUZZLE) // 8) * 8              # 88 (G=1) / 248 (G=3)
    B = batch_size

    n_tiles = -(-B // G)
    # Tiles per grid step: aim for ~target_puzzles_per_step puzzles per step,
    # but keep the grid at >= 2 steps so both v7x TensorCores get work.
    S = max(1, min(target_puzzles_per_step // G, n_tiles))
    if n_tiles >= 2:
        S = min(S, -(-n_tiles // 2))
    n_steps = -(-n_tiles // S)
    tiles_pad = n_steps * S
    B_pad = tiles_pad * G

    # Pack G consecutive puzzles per tile; pad rows G*81 -> TILE.
    x_p = jnp.zeros((B_pad, PUZZLE, INPUT_DIM), jnp.float32)
    x_p = x_p.at[:B].set(x.reshape(B, PUZZLE, INPUT_DIM))
    x_p = x_p.reshape(tiles_pad, G * PUZZLE, INPUT_DIM)
    x_p = jnp.pad(x_p, ((0, 0), (0, TILE - G * PUZZLE), (0, 0)))

    adj = sudoku_adjacency_block(G, TILE)

    full_vmem = lambda: pl.BlockSpec(memory_space=pltpu.MemorySpace.VMEM)

    out = pl.pallas_call(
        sudoku_gnn_kernel,
        out_shape=jax.ShapeDtypeStruct((tiles_pad, ROWS_STORE, OUT_PAD), jnp.float32),
        grid_spec=pltpu.PrefetchScalarGridSpec(
            num_scalar_prefetch=0,
            grid=(n_steps,),
            in_specs=[
                pl.BlockSpec((S, TILE, INPUT_DIM), lambda i: (i, 0, 0)),  # x (batch-blocked)
                full_vmem(),                 # adjacency block (bf16)
                full_vmem(), full_vmem(),    # w_in (bf16), b_in
                full_vmem(), full_vmem(),    # w_res (bf16), b_res
                full_vmem(), full_vmem(),    # w_cat (bf16), b_conv
                full_vmem(), full_vmem(),    # gamma, beta
                full_vmem(), full_vmem(),    # w_out (bf16, padded), b_out (padded)
            ],
            out_specs=pl.BlockSpec((S, ROWS_STORE, OUT_PAD), lambda i: (i, 0, 0)),
        ),
        compiler_params=pltpu.CompilerParams(
            dimension_semantics=("parallel",),
            # Per-step footprint at S=16/TILE=256 is well under 32 MiB; 48 MiB
            # leaves margin yet stays below v7x's 64 MiB/TC physical VMEM.
            vmem_limit_bytes=48 * 1024 * 1024,
        ),
    )(x_p, adj,
      packed["w_in"], packed["b_in"],
      packed["w_res"], packed["b_res"],
      packed["w_cat"], packed["b_conv"],
      packed["gamma"], packed["beta"],
      packed["w_out"], packed["b_out"])

    out = out[:, :G * PUZZLE, :OUTPUT_DIM]               # (tiles_pad, G*81, 9)
    out = out.reshape(B_pad, PUZZLE, OUTPUT_DIM)[:B]
    return out.reshape(B, 9, 9, 9)


# ----------------------------------------------------------------------------
# Deterministic parameter init (Xavier-uniform weights, zero biases)
# ----------------------------------------------------------------------------
def xavier_uniform(key, shape):
    fan_in, fan_out = shape[-2], shape[-1]
    limit = float(np.sqrt(6.0 / (fan_in + fan_out)))
    return jax.random.uniform(key, shape, jnp.float32, -limit, limit)


def init_params(key):
    ks = jax.random.split(key, 4 + 2 * NUM_LAYERS)
    return {
        "w_in": xavier_uniform(ks[0], (INPUT_DIM, HIDDEN_DIM)),
        "b_in": jnp.zeros((1, HIDDEN_DIM), jnp.float32),
        "w_res": xavier_uniform(ks[1], (HIDDEN_DIM, HIDDEN_DIM)),
        "b_res": jnp.zeros((1, HIDDEN_DIM), jnp.float32),
        "w_root": jnp.stack([xavier_uniform(ks[2 + i], (HIDDEN_DIM, HIDDEN_DIM))
                             for i in range(NUM_LAYERS)]),
        "w_rel": jnp.stack([xavier_uniform(ks[2 + NUM_LAYERS + i], (HIDDEN_DIM, HIDDEN_DIM))
                            for i in range(NUM_LAYERS)]),
        "b_conv": jnp.zeros((NUM_LAYERS, 1, HIDDEN_DIM), jnp.float32),
        "gamma": jnp.ones((1, HIDDEN_DIM), jnp.float32),
        "beta": jnp.zeros((1, HIDDEN_DIM), jnp.float32),
        "w_out": xavier_uniform(ks[2 + 2 * NUM_LAYERS], (HIDDEN_DIM, OUTPUT_DIM)),
        "b_out": jnp.zeros((1, OUTPUT_DIM), jnp.float32),
    }


# ----------------------------------------------------------------------------
# Sudoku edge_index (each cell connected to its 20 row / column / box peers)
# ----------------------------------------------------------------------------
def sudoku_edge_index(batch_size):
    idx = np.arange(PUZZLE)
    rows, cols = idx // 9, idx % 9
    boxes = (rows // 3) * 3 + (cols // 3)
    src, dst = [], []
    for i in range(PUZZLE):
        for j in range(PUZZLE):
            if i != j and (rows[i] == rows[j] or cols[i] == cols[j] or boxes[i] == boxes[j]):
                src.append(i)
                dst.append(j)
    src, dst = np.array(src), np.array(dst)
    src_all = np.concatenate([src + b * PUZZLE for b in range(batch_size)])
    dst_all = np.concatenate([dst + b * PUZZLE for b in range(batch_size)])
    return jnp.asarray(np.stack([src_all, dst_all]).astype(np.int32))


# ----------------------------------------------------------------------------
# Pure-JAX f32 reference (uses edge_index densely) for a correctness check
# ----------------------------------------------------------------------------
def reference_forward(x, edge_index, params, batch_size):
    n = x.shape[0]
    adj = jnp.zeros((n, n), jnp.float32).at[edge_index[1], edge_index[0]].add(1.0)
    h = x @ params["w_in"] + params["b_in"]
    residual = h @ params["w_res"] + params["b_res"]
    for l in range(NUM_LAYERS):
        agg = adj @ h
        h = h @ params["w_root"][l] + agg @ params["w_rel"][l] + params["b_conv"][l]
        mean = jnp.mean(h, -1, keepdims=True)
        var = jnp.mean((h - mean) ** 2, -1, keepdims=True)
        h = (h - mean) / jnp.sqrt(var + LN_EPS) * params["gamma"] + params["beta"]
        h = jnp.where(h > 0, h, NEG_SLOPE * h)
        h = h + residual
    out = h @ params["w_out"] + params["b_out"]
    return out.reshape(batch_size, 9, 9, 9)


if __name__ == "__main__":
    key = jax.random.PRNGKey(0)
    k_param, k_x = jax.random.split(key)

    params = init_params(k_param)
    packed = pack_params(params)                       # host-side, once

    # Two small configs: B=2 (single tile / single grid step) and B=8
    # (partial tile + padded tile + 2 grid steps) to exercise packing paths.
    for batch_size in (2, 8):
        kx = jax.random.fold_in(k_x, batch_size)
        x = jax.random.normal(kx, (batch_size * PUZZLE, INPUT_DIM), jnp.float32)
        edge_index = sudoku_edge_index(batch_size)

        out = sudoku_gnn_forward(x, edge_index, packed, batch_size)
        out = jax.block_until_ready(out)

        ref = reference_forward(x, edge_index, params, batch_size)
        assert out.shape == (batch_size, 9, 9, 9)
        # bf16 MXU operands everywhere (f32 accumulation) -> loose tolerance.
        np.testing.assert_allclose(np.asarray(out), np.asarray(ref),
                                   rtol=6e-2, atol=6e-2)

    print("KERNEL_OK")
</pallas_src>

<mosaic_0001>
module attributes {stable_mosaic.version = 11 : i64} {
  func.func @sudoku_gnn_kernel(%arg0: i32, %arg1: memref<1x256x9xf32, #tpu.memory_space<vmem>>, %arg2: memref<256x256xbf16, #tpu.memory_space<vmem>>, %arg3: memref<9x64xbf16, #tpu.memory_space<vmem>>, %arg4: memref<1x64xf32, #tpu.memory_space<vmem>>, %arg5: memref<64x64xbf16, #tpu.memory_space<vmem>>, %arg6: memref<1x64xf32, #tpu.memory_space<vmem>>, %arg7: memref<4x64x128xbf16, #tpu.memory_space<vmem>>, %arg8: memref<4x1x64xf32, #tpu.memory_space<vmem>>, %arg9: memref<1x64xf32, #tpu.memory_space<vmem>>, %arg10: memref<1x64xf32, #tpu.memory_space<vmem>>, %arg11: memref<64x128xbf16, #tpu.memory_space<vmem>>, %arg12: memref<1x128xf32, #tpu.memory_space<vmem>>, %arg13: memref<1x248x128xf32, #tpu.memory_space<vmem>>) attributes {dimension_semantics = [#tpu.dimension_semantics<parallel>], iteration_bounds = array<i64: 1>, scalar_prefetch = 0 : i64, scratch_operands = 0 : i64, tpu.core_type = #tpu.core_type<tc>, window_params = [{transform_indices = @transform_0, window_bounds = array<i64: 1, 256, 9>}, {pipeline_mode = #tpu.pipeline_mode<synchronous>, transform_indices = @transform_1, window_bounds = array<i64: 256, 256>}, {pipeline_mode = #tpu.pipeline_mode<synchronous>, transform_indices = @transform_2, window_bounds = array<i64: 9, 64>}, {pipeline_mode = #tpu.pipeline_mode<synchronous>, transform_indices = @transform_3, window_bounds = array<i64: 1, 64>}, {pipeline_mode = #tpu.pipeline_mode<synchronous>, transform_indices = @transform_4, window_bounds = array<i64: 64, 64>}, {pipeline_mode = #tpu.pipeline_mode<synchronous>, transform_indices = @transform_5, window_bounds = array<i64: 1, 64>}, {pipeline_mode = #tpu.pipeline_mode<synchronous>, transform_indices = @transform_6, window_bounds = array<i64: 4, 64, 128>}, {pipeline_mode = #tpu.pipeline_mode<synchronous>, transform_indices = @transform_7, window_bounds = array<i64: 4, 1, 64>}, {pipeline_mode = #tpu.pipeline_mode<synchronous>, transform_indices = @transform_8, window_bounds = array<i64: 1, 64>}, {pipeline_mode = #tpu.pipeline_mode<synchronous>, transform_indices = @transform_9, window_bounds = array<i64: 1, 64>}, {pipeline_mode = #tpu.pipeline_mode<synchronous>, transform_indices = @transform_10, window_bounds = array<i64: 64, 128>}, {pipeline_mode = #tpu.pipeline_mode<synchronous>, transform_indices = @transform_11, window_bounds = array<i64: 1, 128>}, {transform_indices = @transform_12, window_bounds = array<i64: 1, 248, 128>}]} {
    %c0 = arith.constant 0 : index
    %c0_0 = arith.constant 0 : index
    %c0_1 = arith.constant 0 : index
    %0 = vector.load %arg1[%c0, %c0_0, %c0_1] : memref<1x256x9xf32, #tpu.memory_space<vmem>>, vector<1x256x9xf32>
    %1 = vector.shape_cast %0 : vector<1x256x9xf32> to vector<256x9xf32>
    %2 = arith.truncf %1 : vector<256x9xf32> to vector<256x9xbf16>
    %c0_2 = arith.constant 0 : index
    %c0_3 = arith.constant 0 : index
    %3 = vector.load %arg3[%c0_2, %c0_3] : memref<9x64xbf16, #tpu.memory_space<vmem>>, vector<9x64xbf16>
    %cst = arith.constant dense<0.000000e+00> : vector<256x64xf32>
    %4 = tpu.matmul %2, %3, %cst {dimension_numbers = #tpu.dot_dimension_numbers<[1], [0], [0], [1], [0, 0, 1, 1], [], []>} : vector<256x9xbf16>, vector<9x64xbf16>, vector<256x64xf32> -> vector<256x64xf32>
    %c0_4 = arith.constant 0 : index
    %c0_5 = arith.constant 0 : index
    %5 = vector.load %arg4[%c0_4, %c0_5] : memref<1x64xf32, #tpu.memory_space<vmem>>, vector<1x64xf32>
    %6 = vector.broadcast %5 : vector<1x64xf32> to vector<256x64xf32>
    %7 = arith.addf %4, %6 : vector<256x64xf32>
    %8 = arith.truncf %7 : vector<256x64xf32> to vector<256x64xbf16>
    %c0_6 = arith.constant 0 : index
    %c0_7 = arith.constant 0 : index
    %9 = vector.load %arg5[%c0_6, %c0_7] : memref<64x64xbf16, #tpu.memory_space<vmem>>, vector<64x64xbf16>
    %cst_8 = arith.constant dense<0.000000e+00> : vector<256x64xf32>
    %10 = tpu.matmul %8, %9, %cst_8 {dimension_numbers = #tpu.dot_dimension_numbers<[1], [0], [0], [1], [0, 0, 1, 1], [], []>} : vector<256x64xbf16>, vector<64x64xbf16>, vector<256x64xf32> -> vector<256x64xf32>
    %c0_9 = arith.constant 0 : index
    %c0_10 = arith.constant 0 : index
    %11 = vector.load %arg6[%c0_9, %c0_10] : memref<1x64xf32, #tpu.memory_space<vmem>>, vector<1x64xf32>
    %12 = vector.broadcast %11 : vector<1x64xf32> to vector<256x64xf32>
    %13 = arith.addf %10, %12 : vector<256x64xf32>
    %c0_11 = arith.constant 0 : index
    %c0_12 = arith.constant 0 : index
    %14 = vector.load %arg9[%c0_11, %c0_12] : memref<1x64xf32, #tpu.memory_space<vmem>>, vector<1x64xf32>
    %c0_13 = arith.constant 0 : index
    %c0_14 = arith.constant 0 : index
    %15 = vector.load %arg10[%c0_13, %c0_14] : memref<1x64xf32, #tpu.memory_space<vmem>>, vector<1x64xf32>
    %c0_15 = arith.constant 0 : index
    %c0_16 = arith.constant 0 : index
    %16 = vector.load %arg2[%c0_15, %c0_16] : memref<256x256xbf16, #tpu.memory_space<vmem>>, vector<256x256xbf16>
    %17 = arith.truncf %7 : vector<256x64xf32> to vector<256x64xbf16>
    %c0_17 = arith.constant 0 : index
    %c0_18 = arith.constant 0 : index
    %c0_19 = arith.constant 0 : index
    %18 = vector.load %arg7[%c0_17, %c0_18, %c0_19] : memref<4x64x128xbf16, #tpu.memory_space<vmem>>, vector<1x64x128xbf16>
    %19 = vector.shape_cast %18 : vector<1x64x128xbf16> to vector<64x128xbf16>
    %cst_20 = arith.constant dense<0.000000e+00> : vector<256x128xf32>
    %20 = tpu.matmul %17, %19, %cst_20 {dimension_numbers = #tpu.dot_dimension_numbers<[1], [0], [0], [1], [0, 0, 1, 1], [], []>} : vector<256x64xbf16>, vector<64x128xbf16>, vector<256x128xf32> -> vector<256x128xf32>
    %21 = vector.extract_strided_slice %20 {offsets = [0, 0], sizes = [256, 64], strides = [1, 1]} : vector<256x128xf32> to vector<256x64xf32>
    %22 = vector.extract_strided_slice %20 {offsets = [0, 64], sizes = [256, 64], strides = [1, 1]} : vector<256x128xf32> to vector<256x64xf32>
    %23 = arith.truncf %22 : vector<256x64xf32> to vector<256x64xbf16>
    %24 = vector.shape_cast %23 : vector<256x64xbf16> to vector<1x256x64xbf16>
    %25 = vector.shape_cast %24 : vector<1x256x64xbf16> to vector<256x64xbf16>
    %cst_21 = arith.constant dense<0.000000e+00> : vector<256x64xf32>
    %26 = tpu.matmul %16, %25, %cst_21 {dimension_numbers = #tpu.dot_dimension_numbers<[1], [0], [0], [1], [0, 0, 1, 1], [], []>} : vector<256x256xbf16>, vector<256x64xbf16>, vector<256x64xf32> -> vector<256x64xf32>
    %27 = arith.addf %21, %26 : vector<256x64xf32>
    %c0_22 = arith.constant 0 : index
    %c0_23 = arith.constant 0 : index
    %c0_24 = arith.constant 0 : index
    %28 = vector.load %arg8[%c0_22, %c0_23, %c0_24] : memref<4x1x64xf32, #tpu.memory_space<vmem>>, vector<1x1x64xf32>
    %29 = vector.shape_cast %28 : vector<1x1x64xf32> to vector<1x64xf32>
    %30 = vector.broadcast %29 : vector<1x64xf32> to vector<256x64xf32>
    %31 = arith.addf %27, %30 : vector<256x64xf32>
    %cst_25 = arith.constant dense<0.000000e+00> : vector<256xf32>
    %32 = vector.multi_reduction <add>, %31, %cst_25 [1] : vector<256x64xf32> to vector<256xf32>
    %33 = vector.shape_cast %32 : vector<256xf32> to vector<256x1xf32>
    %cst_26 = arith.constant 6.400000e+01 : f32
    %34 = vector.broadcast %cst_26 : f32 to vector<256x1xf32>
    %35 = arith.divf %33, %34 : vector<256x1xf32>
    %36 = vector.broadcast %35 : vector<256x1xf32> to vector<256x64xf32>
    %37 = arith.subf %31, %36 : vector<256x64xf32>
    %38 = vector.broadcast %35 : vector<256x1xf32> to vector<256x64xf32>
    %39 = arith.subf %31, %38 : vector<256x64xf32>
    %40 = arith.mulf %37, %39 : vector<256x64xf32>
    %cst_27 = arith.constant dense<0.000000e+00> : vector<256xf32>
    %41 = vector.multi_reduction <add>, %40, %cst_27 [1] : vector<256x64xf32> to vector<256xf32>
    %42 = vector.shape_cast %41 : vector<256xf32> to vector<256x1xf32>
    %cst_28 = arith.constant 6.400000e+01 : f32
    %43 = vector.broadcast %cst_28 : f32 to vector<256x1xf32>
    %44 = arith.divf %42, %43 : vector<256x1xf32>
    %45 = vector.broadcast %35 : vector<256x1xf32> to vector<256x64xf32>
    %46 = arith.subf %31, %45 : vector<256x64xf32>
    %cst_29 = arith.constant 9.99999974E-6 : f32
    %47 = vector.broadcast %cst_29 : f32 to vector<256x1xf32>
    %48 = arith.addf %44, %47 : vector<256x1xf32>
    %49 = math.rsqrt %48 : vector<256x1xf32>
    %50 = vector.broadcast %49 : vector<256x1xf32> to vector<256x64xf32>
    %51 = arith.mulf %46, %50 : vector<256x64xf32>
    %52 = vector.broadcast %14 : vector<1x64xf32> to vector<256x64xf32>
    %53 = arith.mulf %51, %52 : vector<256x64xf32>
    %54 = vector.broadcast %15 : vector<1x64xf32> to vector<256x64xf32>
    %55 = arith.addf %53, %54 : vector<256x64xf32>
    %cst_30 = arith.constant 0.000000e+00 : f32
    %56 = vector.broadcast %cst_30 : f32 to vector<256x64xf32>
    %57 = arith.cmpf ogt, %55, %56 : vector<256x64xf32>
    %cst_31 = arith.constant 0.00999999977 : f32
    %58 = vector.broadcast %cst_31 : f32 to vector<256x64xf32>
    %59 = arith.mulf %58, %55 : vector<256x64xf32>
    %60 = arith.select %57, %55, %59 : vector<256x64xi1>, vector<256x64xf32>
    %61 = arith.addf %60, %13 : vector<256x64xf32>
    %62 = arith.truncf %61 : vector<256x64xf32> to vector<256x64xbf16>
    %c1 = arith.constant 1 : index
    %c0_32 = arith.constant 0 : index
    %c0_33 = arith.constant 0 : index
    %63 = vector.load %arg7[%c1, %c0_32, %c0_33] : memref<4x64x128xbf16, #tpu.memory_space<vmem>>, vector<1x64x128xbf16>
    %64 = vector.shape_cast %63 : vector<1x64x128xbf16> to vector<64x128xbf16>
    %cst_34 = arith.constant dense<0.000000e+00> : vector<256x128xf32>
    %65 = tpu.matmul %62, %64, %cst_34 {dimension_numbers = #tpu.dot_dimension_numbers<[1], [0], [0], [1], [0, 0, 1, 1], [], []>} : vector<256x64xbf16>, vector<64x128xbf16>, vector<256x128xf32> -> vector<256x128xf32>
    %66 = vector.extract_strided_slice %65 {offsets = [0, 0], sizes = [256, 64], strides = [1, 1]} : vector<256x128xf32> to vector<256x64xf32>
    %67 = vector.extract_strided_slice %65 {offsets = [0, 64], sizes = [256, 64], strides = [1, 1]} : vector<256x128xf32> to vector<256x64xf32>
    %68 = arith.truncf %67 : vector<256x64xf32> to vector<256x64xbf16>
    %69 = vector.shape_cast %68 : vector<256x64xbf16> to vector<1x256x64xbf16>
    %70 = vector.shape_cast %69 : vector<1x256x64xbf16> to vector<256x64xbf16>
    %cst_35 = arith.constant dense<0.000000e+00> : vector<256x64xf32>
    %71 = tpu.matmul %16, %70, %cst_35 {dimension_numbers = #tpu.dot_dimension_numbers<[1], [0], [0], [1], [0, 0, 1, 1], [], []>} : vector<256x256xbf16>, vector<256x64xbf16>, vector<256x64xf32> -> vector<256x64xf32>
    %72 = arith.addf %66, %71 : vector<256x64xf32>
    %c1_36 = arith.constant 1 : index
    %c0_37 = arith.constant 0 : index
    %c0_38 = arith.constant 0 : index
    %73 = vector.load %arg8[%c1_36, %c0_37, %c0_38] : memref<4x1x64xf32, #tpu.memory_space<vmem>>, vector<1x1x64xf32>
    %74 = vector.shape_cast %73 : vector<1x1x64xf32> to vector<1x64xf32>
    %75 = vector.broadcast %74 : vector<1x64xf32> to vector<256x64xf32>
    %76 = arith.addf %72, %75 : vector<256x64xf32>
    %cst_39 = arith.constant dense<0.000000e+00> : vector<256xf32>
    %77 = vector.multi_reduction <add>, %76, %cst_39 [1] : vector<256x64xf32> to vector<256xf32>
    %78 = vector.shape_cast %77 : vector<256xf32> to vector<256x1xf32>
    %cst_40 = arith.constant 6.400000e+01 : f32
    %79 = vector.broadcast %cst_40 : f32 to vector<256x1xf32>
    %80 = arith.divf %78, %79 : vector<256x1xf32>
    %81 = vector.broadcast %80 : vector<256x1xf32> to vector<256x64xf32>
    %82 = arith.subf %76, %81 : vector<256x64xf32>
    %83 = vector.broadcast %80 : vector<256x1xf32> to vector<256x64xf32>
    %84 = arith.subf %76, %83 : vector<256x64xf32>
    %85 = arith.mulf %82, %84 : vector<256x64xf32>
    %cst_41 = arith.constant dense<0.000000e+00> : vector<256xf32>
    %86 = vector.multi_reduction <add>, %85, %cst_41 [1] : vector<256x64xf32> to vector<256xf32>
    %87 = vector.shape_cast %86 : vector<256xf32> to vector<256x1xf32>
    %cst_42 = arith.constant 6.400000e+01 : f32
    %88 = vector.broadcast %cst_42 : f32 to vector<256x1xf32>
    %89 = arith.divf %87, %88 : vector<256x1xf32>
    %90 = vector.broadcast %80 : vector<256x1xf32> to vector<256x64xf32>
    %91 = arith.subf %76, %90 : vector<256x64xf32>
    %cst_43 = arith.constant 9.99999974E-6 : f32
    %92 = vector.broadcast %cst_43 : f32 to vector<256x1xf32>
    %93 = arith.addf %89, %92 : vector<256x1xf32>
    %94 = math.rsqrt %93 : vector<256x1xf32>
    %95 = vector.broadcast %94 : vector<256x1xf32> to vector<256x64xf32>
    %96 = arith.mulf %91, %95 : vector<256x64xf32>
    %97 = vector.broadcast %14 : vector<1x64xf32> to vector<256x64xf32>
    %98 = arith.mulf %96, %97 : vector<256x64xf32>
    %99 = vector.broadcast %15 : vector<1x64xf32> to vector<256x64xf32>
    %100 = arith.addf %98, %99 : vector<256x64xf32>
    %cst_44 = arith.constant 0.000000e+00 : f32
    %101 = vector.broadcast %cst_44 : f32 to vector<256x64xf32>
    %102 = arith.cmpf ogt, %100, %101 : vector<256x64xf32>
    %cst_45 = arith.constant 0.00999999977 : f32
    %103 = vector.broadcast %cst_45 : f32 to vector<256x64xf32>
    %104 = arith.mulf %103, %100 : vector<256x64xf32>
    %105 = arith.select %102, %100, %104 : vector<256x64xi1>, vector<256x64xf32>
    %106 = arith.addf %105, %13 : vector<256x64xf32>
    %107 = arith.truncf %106 : vector<256x64xf32> to vector<256x64xbf16>
    %c2 = arith.constant 2 : index
    %c0_46 = arith.constant 0 : index
    %c0_47 = arith.constant 0 : index
    %108 = vector.load %arg7[%c2, %c0_46, %c0_47] : memref<4x64x128xbf16, #tpu.memory_space<vmem>>, vector<1x64x128xbf16>
    %109 = vector.shape_cast %108 : vector<1x64x128xbf16> to vector<64x128xbf16>
    %cst_48 = arith.constant dense<0.000000e+00> : vector<256x128xf32>
    %110 = tpu.matmul %107, %109, %cst_48 {dimension_numbers = #tpu.dot_dimension_numbers<[1], [0], [0], [1], [0, 0, 1, 1], [], []>} : vector<256x64xbf16>, vector<64x128xbf16>, vector<256x128xf32> -> vector<256x128xf32>
    %111 = vector.extract_strided_slice %110 {offsets = [0, 0], sizes = [256, 64], strides = [1, 1]} : vector<256x128xf32> to vector<256x64xf32>
    %112 = vector.extract_strided_slice %110 {offsets = [0, 64], sizes = [256, 64], strides = [1, 1]} : vector<256x128xf32> to vector<256x64xf32>
    %113 = arith.truncf %112 : vector<256x64xf32> to vector<256x64xbf16>
    %114 = vector.shape_cast %113 : vector<256x64xbf16> to vector<1x256x64xbf16>
    %115 = vector.shape_cast %114 : vector<1x256x64xbf16> to vector<256x64xbf16>
    %cst_49 = arith.constant dense<0.000000e+00> : vector<256x64xf32>
    %116 = tpu.matmul %16, %115, %cst_49 {dimension_numbers = #tpu.dot_dimension_numbers<[1], [0], [0], [1], [0, 0, 1, 1], [], []>} : vector<256x256xbf16>, vector<256x64xbf16>, vector<256x64xf32> -> vector<256x64xf32>
    %117 = arith.addf %111, %116 : vector<256x64xf32>
    %c2_50 = arith.constant 2 : index
    %c0_51 = arith.constant 0 : index
    %c0_52 = arith.constant 0 : index
    %118 = vector.load %arg8[%c2_50, %c0_51, %c0_52] : memref<4x1x64xf32, #tpu.memory_space<vmem>>, vector<1x1x64xf32>
    %119 = vector.shape_cast %118 : vector<1x1x64xf32> to vector<1x64xf32>
    %120 = vector.broadcast %119 : vector<1x64xf32> to vector<256x64xf32>
    %121 = arith.addf %117, %120 : vector<256x64xf32>
    %cst_53 = arith.constant dense<0.000000e+00> : vector<256xf32>
    %122 = vector.multi_reduction <add>, %121, %cst_53 [1] : vector<256x64xf32> to vector<256xf32>
    %123 = vector.shape_cast %122 : vector<256xf32> to vector<256x1xf32>
    %cst_54 = arith.constant 6.400000e+01 : f32
    %124 = vector.broadcast %cst_54 : f32 to vector<256x1xf32>
    %125 = arith.divf %123, %124 : vector<256x1xf32>
    %126 = vector.broadcast %125 : vector<256x1xf32> to vector<256x64xf32>
    %127 = arith.subf %121, %126 : vector<256x64xf32>
    %128 = vector.broadcast %125 : vector<256x1xf32> to vector<256x64xf32>
    %129 = arith.subf %121, %128 : vector<256x64xf32>
    %130 = arith.mulf %127, %129 : vector<256x64xf32>
    %cst_55 = arith.constant dense<0.000000e+00> : vector<256xf32>
    %131 = vector.multi_reduction <add>, %130, %cst_55 [1] : vector<256x64xf32> to vector<256xf32>
    %132 = vector.shape_cast %131 : vector<256xf32> to vector<256x1xf32>
    %cst_56 = arith.constant 6.400000e+01 : f32
    %133 = vector.broadcast %cst_56 : f32 to vector<256x1xf32>
    %134 = arith.divf %132, %133 : vector<256x1xf32>
    %135 = vector.broadcast %125 : vector<256x1xf32> to vector<256x64xf32>
    %136 = arith.subf %121, %135 : vector<256x64xf32>
    %cst_57 = arith.constant 9.99999974E-6 : f32
    %137 = vector.broadcast %cst_57 : f32 to vector<256x1xf32>
    %138 = arith.addf %134, %137 : vector<256x1xf32>
    %139 = math.rsqrt %138 : vector<256x1xf32>
    %140 = vector.broadcast %139 : vector<256x1xf32> to vector<256x64xf32>
    %141 = arith.mulf %136, %140 : vector<256x64xf32>
    %142 = vector.broadcast %14 : vector<1x64xf32> to vector<256x64xf32>
    %143 = arith.mulf %141, %142 : vector<256x64xf32>
    %144 = vector.broadcast %15 : vector<1x64xf32> to vector<256x64xf32>
    %145 = arith.addf %143, %144 : vector<256x64xf32>
    %cst_58 = arith.constant 0.000000e+00 : f32
    %146 = vector.broadcast %cst_58 : f32 to vector<256x64xf32>
    %147 = arith.cmpf ogt, %145, %146 : vector<256x64xf32>
    %cst_59 = arith.constant 0.00999999977 : f32
    %148 = vector.broadcast %cst_59 : f32 to vector<256x64xf32>
    %149 = arith.mulf %148, %145 : vector<256x64xf32>
    %150 = arith.select %147, %145, %149 : vector<256x64xi1>, vector<256x64xf32>
    %151 = arith.addf %150, %13 : vector<256x64xf32>
    %152 = arith.truncf %151 : vector<256x64xf32> to vector<256x64xbf16>
    %c3 = arith.constant 3 : index
    %c0_60 = arith.constant 0 : index
    %c0_61 = arith.constant 0 : index
    %153 = vector.load %arg7[%c3, %c0_60, %c0_61] : memref<4x64x128xbf16, #tpu.memory_space<vmem>>, vector<1x64x128xbf16>
    %154 = vector.shape_cast %153 : vector<1x64x128xbf16> to vector<64x128xbf16>
    %cst_62 = arith.constant dense<0.000000e+00> : vector<256x128xf32>
    %155 = tpu.matmul %152, %154, %cst_62 {dimension_numbers = #tpu.dot_dimension_numbers<[1], [0], [0], [1], [0, 0, 1, 1], [], []>} : vector<256x64xbf16>, vector<64x128xbf16>, vector<256x128xf32> -> vector<256x128xf32>
    %156 = vector.extract_strided_slice %155 {offsets = [0, 0], sizes = [256, 64], strides = [1, 1]} : vector<256x128xf32> to vector<256x64xf32>
    %157 = vector.extract_strided_slice %155 {offsets = [0, 64], sizes = [256, 64], strides = [1, 1]} : vector<256x128xf32> to vector<256x64xf32>
    %158 = arith.truncf %157 : vector<256x64xf32> to vector<256x64xbf16>
    %159 = vector.shape_cast %158 : vector<256x64xbf16> to vector<1x256x64xbf16>
    %160 = vector.shape_cast %159 : vector<1x256x64xbf16> to vector<256x64xbf16>
    %cst_63 = arith.constant dense<0.000000e+00> : vector<256x64xf32>
    %161 = tpu.matmul %16, %160, %cst_63 {dimension_numbers = #tpu.dot_dimension_numbers<[1], [0], [0], [1], [0, 0, 1, 1], [], []>} : vector<256x256xbf16>, vector<256x64xbf16>, vector<256x64xf32> -> vector<256x64xf32>
    %162 = arith.addf %156, %161 : vector<256x64xf32>
    %c3_64 = arith.constant 3 : index
    %c0_65 = arith.constant 0 : index
    %c0_66 = arith.constant 0 : index
    %163 = vector.load %arg8[%c3_64, %c0_65, %c0_66] : memref<4x1x64xf32, #tpu.memory_space<vmem>>, vector<1x1x64xf32>
    %164 = vector.shape_cast %163 : vector<1x1x64xf32> to vector<1x64xf32>
    %165 = vector.broadcast %164 : vector<1x64xf32> to vector<256x64xf32>
    %166 = arith.addf %162, %165 : vector<256x64xf32>
    %cst_67 = arith.constant dense<0.000000e+00> : vector<256xf32>
    %167 = vector.multi_reduction <add>, %166, %cst_67 [1] : vector<256x64xf32> to vector<256xf32>
    %168 = vector.shape_cast %167 : vector<256xf32> to vector<256x1xf32>
    %cst_68 = arith.constant 6.400000e+01 : f32
    %169 = vector.broadcast %cst_68 : f32 to vector<256x1xf32>
    %170 = arith.divf %168, %169 : vector<256x1xf32>
    %171 = vector.broadcast %170 : vector<256x1xf32> to vector<256x64xf32>
    %172 = arith.subf %166, %171 : vector<256x64xf32>
    %173 = vector.broadcast %170 : vector<256x1xf32> to vector<256x64xf32>
    %174 = arith.subf %166, %173 : vector<256x64xf32>
    %175 = arith.mulf %172, %174 : vector<256x64xf32>
    %cst_69 = arith.constant dense<0.000000e+00> : vector<256xf32>
    %176 = vector.multi_reduction <add>, %175, %cst_69 [1] : vector<256x64xf32> to vector<256xf32>
    %177 = vector.shape_cast %176 : vector<256xf32> to vector<256x1xf32>
    %cst_70 = arith.constant 6.400000e+01 : f32
    %178 = vector.broadcast %cst_70 : f32 to vector<256x1xf32>
    %179 = arith.divf %177, %178 : vector<256x1xf32>
    %180 = vector.broadcast %170 : vector<256x1xf32> to vector<256x64xf32>
    %181 = arith.subf %166, %180 : vector<256x64xf32>
    %cst_71 = arith.constant 9.99999974E-6 : f32
    %182 = vector.broadcast %cst_71 : f32 to vector<256x1xf32>
    %183 = arith.addf %179, %182 : vector<256x1xf32>
    %184 = math.rsqrt %183 : vector<256x1xf32>
    %185 = vector.broadcast %184 : vector<256x1xf32> to vector<256x64xf32>
    %186 = arith.mulf %181, %185 : vector<256x64xf32>
    %187 = vector.broadcast %14 : vector<1x64xf32> to vector<256x64xf32>
    %188 = arith.mulf %186, %187 : vector<256x64xf32>
    %189 = vector.broadcast %15 : vector<1x64xf32> to vector<256x64xf32>
    %190 = arith.addf %188, %189 : vector<256x64xf32>
    %cst_72 = arith.constant 0.000000e+00 : f32
    %191 = vector.broadcast %cst_72 : f32 to vector<256x64xf32>
    %192 = arith.cmpf ogt, %190, %191 : vector<256x64xf32>
    %cst_73 = arith.constant 0.00999999977 : f32
    %193 = vector.broadcast %cst_73 : f32 to vector<256x64xf32>
    %194 = arith.mulf %193, %190 : vector<256x64xf32>
    %195 = arith.select %192, %190, %194 : vector<256x64xi1>, vector<256x64xf32>
    %196 = arith.addf %195, %13 : vector<256x64xf32>
    %197 = arith.truncf %196 : vector<256x64xf32> to vector<256x64xbf16>
    %c0_74 = arith.constant 0 : index
    %c0_75 = arith.constant 0 : index
    %198 = vector.load %arg11[%c0_74, %c0_75] : memref<64x128xbf16, #tpu.memory_space<vmem>>, vector<64x128xbf16>
    %cst_76 = arith.constant dense<0.000000e+00> : vector<256x128xf32>
    %199 = tpu.matmul %197, %198, %cst_76 {dimension_numbers = #tpu.dot_dimension_numbers<[1], [0], [0], [1], [0, 0, 1, 1], [], []>} : vector<256x64xbf16>, vector<64x128xbf16>, vector<256x128xf32> -> vector<256x128xf32>
    %c0_77 = arith.constant 0 : index
    %c0_78 = arith.constant 0 : index
    %200 = vector.load %arg12[%c0_77, %c0_78] : memref<1x128xf32, #tpu.memory_space<vmem>>, vector<1x128xf32>
    %201 = vector.broadcast %200 : vector<1x128xf32> to vector<256x128xf32>
    %202 = arith.addf %199, %201 : vector<256x128xf32>
    %203 = vector.shape_cast %202 : vector<256x128xf32> to vector<1x256x128xf32>
    %204 = vector.extract_strided_slice %203 {offsets = [0, 0, 0], sizes = [1, 248, 128], strides = [1, 1, 1]} : vector<1x256x128xf32> to vector<1x248x128xf32>
    %c0_79 = arith.constant 0 : index
    %c0_80 = arith.constant 0 : index
    %c0_81 = arith.constant 0 : index
    %205 = vector.load %arg13[%c0_79, %c0_80, %c0_81] : memref<1x248x128xf32, #tpu.memory_space<vmem>>, vector<1x248x128xf32>
    tpu.vector_store %arg13[%c0_79, %c0_80, %c0_81], %204 {strides = array<i32>} : memref<1x248x128xf32, #tpu.memory_space<vmem>>, vector<1x248x128xf32>,
    return
  }
  func.func @transform_0(%arg0: i32) -> (i32, i32, i32) {
    %c0_i32 = arith.constant 0 : i32
    %c0_i32_0 = arith.constant 0 : i32
    %c0_i32_1 = arith.constant 0 : i32
    return %arg0, %c0_i32, %c0_i32_0 : i32, i32, i32
  }
  func.func @transform_1(%arg0: i32) -> (i32, i32) {
    %c0_i32 = arith.constant 0 : i32
    %c0_i32_0 = arith.constant 0 : i32
    %c0_i32_1 = arith.constant 0 : i32
    return %c0_i32, %c0_i32_0 : i32, i32
  }
  func.func @transform_2(%arg0: i32) -> (i32, i32) {
    %c0_i32 = arith.constant 0 : i32
    %c0_i32_0 = arith.constant 0 : i32
    %c0_i32_1 = arith.constant 0 : i32
    return %c0_i32, %c0_i32_0 : i32, i32
  }
  func.func @transform_3(%arg0: i32) -> (i32, i32) {
    %c0_i32 = arith.constant 0 : i32
    %c0_i32_0 = arith.constant 0 : i32
    %c0_i32_1 = arith.constant 0 : i32
    return %c0_i32, %c0_i32_0 : i32, i32
  }
  func.func @transform_4(%arg0: i32) -> (i32, i32) {
    %c0_i32 = arith.constant 0 : i32
    %c0_i32_0 = arith.constant 0 : i32
    %c0_i32_1 = arith.constant 0 : i32
    return %c0_i32, %c0_i32_0 : i32, i32
  }
  func.func @transform_5(%arg0: i32) -> (i32, i32) {
    %c0_i32 = arith.constant 0 : i32
    %c0_i32_0 = arith.constant 0 : i32
    %c0_i32_1 = arith.constant 0 : i32
    return %c0_i32, %c0_i32_0 : i32, i32
  }
  func.func @transform_6(%arg0: i32) -> (i32, i32, i32) {
    %c0_i32 = arith.constant 0 : i32
    %c0_i32_0 = arith.constant 0 : i32
    %c0_i32_1 = arith.constant 0 : i32
    %c0_i32_2 = arith.constant 0 : i32
    return %c0_i32, %c0_i32_0, %c0_i32_1 : i32, i32, i32
  }
  func.func @transform_7(%arg0: i32) -> (i32, i32, i32) {
    %c0_i32 = arith.constant 0 : i32
    %c0_i32_0 = arith.constant 0 : i32
    %c0_i32_1 = arith.constant 0 : i32
    %c0_i32_2 = arith.constant 0 : i32
    return %c0_i32, %c0_i32_0, %c0_i32_1 : i32, i32, i32
  }
  func.func @transform_8(%arg0: i32) -> (i32, i32) {
    %c0_i32 = arith.constant 0 : i32
    %c0_i32_0 = arith.constant 0 : i32
    %c0_i32_1 = arith.constant 0 : i32
    return %c0_i32, %c0_i32_0 : i32, i32
  }
  func.func @transform_9(%arg0: i32) -> (i32, i32) {
    %c0_i32 = arith.constant 0 : i32
    %c0_i32_0 = arith.constant 0 : i32
    %c0_i32_1 = arith.constant 0 : i32
    return %c0_i32, %c0_i32_0 : i32, i32
  }
  func.func @transform_10(%arg0: i32) -> (i32, i32) {
    %c0_i32 = arith.constant 0 : i32
    %c0_i32_0 = arith.constant 0 : i32
    %c0_i32_1 = arith.constant 0 : i32
    return %c0_i32, %c0_i32_0 : i32, i32
  }
  func.func @transform_11(%arg0: i32) -> (i32, i32) {
    %c0_i32 = arith.constant 0 : i32
    %c0_i32_0 = arith.constant 0 : i32
    %c0_i32_1 = arith.constant 0 : i32
    return %c0_i32, %c0_i32_0 : i32, i32
  }
  func.func @transform_12(%arg0: i32) -> (i32, i32, i32) {
    %c0_i32 = arith.constant 0 : i32
    %c0_i32_0 = arith.constant 0 : i32
    %c0_i32_1 = arith.constant 0 : i32
    return %arg0, %c0_i32, %c0_i32_0 : i32, i32, i32
  }
}

</mosaic_0001>

<llo_original>
// kernel: tpu_custom_call.1
$region0: #{tpu_custom_call.1}
  #allocation0 [shape = 'u32[]', space=smem, size = 0x4, offset = 0x4, fixed_abs, tag = 'smem constant byte address 0x4 - core index']
  #allocation1 [shape = 'u32[144,128]{1,0:T(1,128)}', space=vmem, size = 0x12000, scoped, tag = 'internal scratch']
  %s0 = inlined_call_operand.vmem [shape: f32[1,256,9], index: 0, kind: input, shape index: {}]
  %s1 = inlined_call_operand.vmem [shape: bf16[256,256], index: 1, kind: input, shape index: {}]
  %s2 = inlined_call_operand.hbm [shape: bf16[9,64], index: 2, kind: input, shape index: {}]
  %s3 = inlined_call_operand.hbm [shape: f32[1,64], index: 3, kind: input, shape index: {}]
  %s4 = inlined_call_operand.vmem [shape: bf16[64,64], index: 4, kind: input, shape index: {}]
  %s5 = inlined_call_operand.hbm [shape: f32[1,64], index: 5, kind: input, shape index: {}]
  %s6 = inlined_call_operand.hbm [shape: bf16[4,64,128], index: 6, kind: input, shape index: {}]
  %s7 = inlined_call_operand.vmem [shape: f32[4,1,64], index: 7, kind: input, shape index: {}]
  %s8 = inlined_call_operand.vmem [shape: f32[1,64], index: 8, kind: input, shape index: {}]
  %s9 = inlined_call_operand.vmem [shape: f32[1,64], index: 9, kind: input, shape index: {}]
  %s10 = inlined_call_operand.hbm [shape: bf16[64,128], index: 10, kind: input, shape index: {}]
  %s11 = inlined_call_operand.vmem [shape: f32[1,128], index: 11, kind: input, shape index: {}]
  %s12 = inlined_call_operand.hbm [shape: f32[1,248,128], index: 12, kind: output, shape index: {}]
  %s13 = sld [smem:[#allocation0]]
  $region78: #{tpu_custom_call.1} parent=0
    _
  %s15 = ssub.s32 1, %s13
  %s16 = scalar_select 0, %s15, %s13
  $region1: #{tpu_custom_call.1} parent=0
    #allocation2 [shape = 'u8[4096]{0}', space=vmem, size = 0x1000, scoped, tag = 'input window, operand 2, single buffered']
    #allocation3 [shape = 's32[1]{0}', space=sflag, size = 0x4, scoped, tag = 'scoped memory for tpu_custom_call.1']
    #allocation4 [shape = 's32[1]{0}', space=sflag, size = 0x4, scoped, tag = 'scoped memory for tpu_custom_call.1']
    #allocation5 [shape = 'u8[512]{0}', space=vmem, size = 0x400, scoped, tag = 'input window, operand 3, single buffered']
    #allocation6 [shape = 's32[1]{0}', space=sflag, size = 0x4, scoped, tag = 'scoped memory for tpu_custom_call.1']
    #allocation7 [shape = 'u8[512]{0}', space=vmem, size = 0x400, scoped, tag = 'input window, operand 5, single buffered']
    #allocation8 [shape = 'u8[65536]{0}', space=vmem, size = 0x10000, scoped, tag = 'input window, operand 6, single buffered']
    #allocation9 [shape = 's32[1]{0}', space=sflag, size = 0x4, scoped, tag = 'scoped memory for tpu_custom_call.1']
    #allocation10 [shape = 'u8[16384]{0}', space=vmem, size = 0x4000, scoped, tag = 'input window, operand 10, single buffered']
    #allocation11 [shape = 'u8[126976]{0}', space=vmem, size = 0x1f000, scoped, tag = 'output window, operand 0, single buffered']
    %17 = vsyncpa [#allocation3], 0
    %18 = vsyncpa [#allocation6], 0
    %19 = vsyncpa [#allocation9], 0
    %20 = vsyncpa [#allocation4], 0
    // Predicated region
    $region2: #{tpu_custom_call.1} parent=1 // pred_check
      _
    $region3: #{tpu_custom_call.1} parent=1 // pred_check_branch
      %22 = sbr.rel (0) target = $region5
    $region4: #{tpu_custom_call.1} parent=1 // pred_region
      _
    $region5: #{tpu_custom_call.1} parent=1 // pred_fallthru
      _
    // Predicated region
    $region6: #{tpu_custom_call.1} parent=1 // pred_check
      _
    $region7: #{tpu_custom_call.1} parent=1 // pred_check_branch
      %24 = sbr.rel (0) target = $region9
    $region8: #{tpu_custom_call.1} parent=1 // pred_region
      _
    $region9: #{tpu_custom_call.1} parent=1 // pred_fallthru
      _
    // Predicated region
    $region10: #{tpu_custom_call.1} parent=1 // pred_check
      _
    $region11: #{tpu_custom_call.1} parent=1 // pred_check_branch
      %26 = sbr.rel (0) target = $region13
    $region12: #{tpu_custom_call.1} parent=1 // pred_region
      %s28 = ssub.s32 128, 128
      %29 = vsyncadd [#allocation3], %s28
      %s30 = sshll.u32 [#allocation2], 4
      %s31 = int_to_ptr.vmem [resolvable:$true] %s30
      %36 = dma.hbm_to_vmem [thread:$0]  %s2, 128, %s31, [#allocation3], 64, 64, 4
    $region13: #{tpu_custom_call.1} parent=1 // pred_fallthru
      _
    // Predicated region
    $region14: #{tpu_custom_call.1} parent=1 // pred_check
      _
    $region15: #{tpu_custom_call.1} parent=1 // pred_check_branch
      %38 = sbr.rel (0) target = $region17
    $region16: #{tpu_custom_call.1} parent=1 // pred_region
      %s40 = ssub.s32 16, 16
      %41 = vsyncadd [#allocation6], %s40
      %s43 = sshll.u32 [#allocation5], 4
      %s44 = int_to_ptr.vmem [resolvable:$true] %s43
      %46 = dma.hbm_to_vmem [thread:$0]  %s3, 16, %s44, [#allocation6]
    $region17: #{tpu_custom_call.1} parent=1 // pred_fallthru
      _
    // Predicated region
    $region18: #{tpu_custom_call.1} parent=1 // pred_check
      _
    $region19: #{tpu_custom_call.1} parent=1 // pred_check_branch
      %48 = sbr.rel (0) target = $region21
    $region20: #{tpu_custom_call.1} parent=1 // pred_region
      _
    $region21: #{tpu_custom_call.1} parent=1 // pred_fallthru
      _
    // Predicated region
    $region22: #{tpu_custom_call.1} parent=1 // pred_check
      _
    $region23: #{tpu_custom_call.1} parent=1 // pred_check_branch
      %50 = sbr.rel (0) target = $region25
    $region24: #{tpu_custom_call.1} parent=1 // pred_region
      %s52 = ssub.s32 16, 16
      %53 = vsyncadd [#allocation6], %s52
      %s55 = sshll.u32 [#allocation7], 4
      %s56 = int_to_ptr.vmem [resolvable:$true] %s55
      %58 = dma.hbm_to_vmem [thread:$0]  %s5, 16, %s56, [#allocation6]
    $region25: #{tpu_custom_call.1} parent=1 // pred_fallthru
      _
    // Predicated region
    $region26: #{tpu_custom_call.1} parent=1 // pred_check
      _
    $region27: #{tpu_custom_call.1} parent=1 // pred_check_branch
      %60 = sbr.rel (0) target = $region29
    $region28: #{tpu_custom_call.1} parent=1 // pred_region
      %s62 = ssub.s32 2048, 2048
      %63 = vsyncadd [#allocation9], %s62
      %s64 = sshll.u32 [#allocation8], 4
      %s65 = int_to_ptr.vmem [resolvable:$true] %s64
      %70 = dma.hbm_to_vmem [thread:$0]  %s6, 2048, %s65, [#allocation9], 64, 64, 4
    $region29: #{tpu_custom_call.1} parent=1 // pred_fallthru
      _
    // Predicated region
    $region30: #{tpu_custom_call.1} parent=1 // pred_check
      _
    $region31: #{tpu_custom_call.1} parent=1 // pred_check_branch
      %72 = sbr.rel (0) target = $region33
    $region32: #{tpu_custom_call.1} parent=1 // pred_region
      _
    $region33: #{tpu_custom_call.1} parent=1 // pred_fallthru
      _
    // Predicated region
    $region34: #{tpu_custom_call.1} parent=1 // pred_check
      _
    $region35: #{tpu_custom_call.1} parent=1 // pred_check_branch
      %74 = sbr.rel (0) target = $region37
    $region36: #{tpu_custom_call.1} parent=1 // pred_region
      _
    $region37: #{tpu_custom_call.1} parent=1 // pred_fallthru
      _
    // Predicated region
    $region38: #{tpu_custom_call.1} parent=1 // pred_check
      _
    $region39: #{tpu_custom_call.1} parent=1 // pred_check_branch
      %76 = sbr.rel (0) target = $region41
    $region40: #{tpu_custom_call.1} parent=1 // pred_region
      _
    $region41: #{tpu_custom_call.1} parent=1 // pred_fallthru
      _
    // Predicated region
    $region42: #{tpu_custom_call.1} parent=1 // pred_check
      _
    $region43: #{tpu_custom_call.1} parent=1 // pred_check_branch
      %78 = sbr.rel (0) target = $region45
    $region44: #{tpu_custom_call.1} parent=1 // pred_region
      %s80 = ssub.s32 512, 512
      %81 = vsyncadd [#allocation9], %s80
      %s82 = sshll.u32 [#allocation10], 4
      %s83 = int_to_ptr.vmem [resolvable:$true] %s82
      %88 = dma.hbm_to_vmem [thread:$0]  %s10, 512, %s83, [#allocation9], 64, 64, 4
    $region45: #{tpu_custom_call.1} parent=1 // pred_fallthru
      _
    // Predicated region
    $region46: #{tpu_custom_call.1} parent=1 // pred_check
      _
    $region47: #{tpu_custom_call.1} parent=1 // pred_check_branch
      %90 = sbr.rel (0) target = $region49
    $region48: #{tpu_custom_call.1} parent=1 // pred_region
      _
    $region49: #{tpu_custom_call.1} parent=1 // pred_fallthru
      _
    // Predicated region
    $region50: #{tpu_custom_call.1} parent=1 // pred_check
      _
    $region51: #{tpu_custom_call.1} parent=1 // pred_check_branch
      %92 = sbr.rel (0) target = $region53
    $region52: #{tpu_custom_call.1} parent=1 // pred_region
      %93 = dma.done [#allocation3], 128
    $region53: #{tpu_custom_call.1} parent=1 // pred_fallthru
      _
    // Predicated region
    $region54: #{tpu_custom_call.1} parent=1 // pred_check
      _
    $region55: #{tpu_custom_call.1} parent=1 // pred_check_branch
      %95 = sbr.rel (0) target = $region57
    $region56: #{tpu_custom_call.1} parent=1 // pred_region
      %96 = dma.done [#allocation6], 16
    $region57: #{tpu_custom_call.1} parent=1 // pred_fallthru
      _
    // Predicated region
    $region58: #{tpu_custom_call.1} parent=1 // pred_check
      _
    $region59: #{tpu_custom_call.1} parent=1 // pred_check_branch
      %98 = sbr.rel (0) target = $region61
    $region60: #{tpu_custom_call.1} parent=1 // pred_region
      %99 = dma.done [#allocation6], 16
    $region61: #{tpu_custom_call.1} parent=1 // pred_fallthru
      _
    // Predicated region
    $region62: #{tpu_custom_call.1} parent=1 // pred_check
      _
    $region63: #{tpu_custom_call.1} parent=1 // pred_check_branch
      %101 = sbr.rel (0) target = $region65
    $region64: #{tpu_custom_call.1} parent=1 // pred_region
      %102 = dma.done [#allocation9], 2048
    $region65: #{tpu_custom_call.1} parent=1 // pred_fallthru
      _
    // Predicated region
    $region66: #{tpu_custom_call.1} parent=1 // pred_check
      _
    $region67: #{tpu_custom_call.1} parent=1 // pred_check_branch
      %104 = sbr.rel (0) target = $region69
    $region68: #{tpu_custom_call.1} parent=1 // pred_region
      %105 = dma.done [#allocation9], 512
    $region69: #{tpu_custom_call.1} parent=1 // pred_fallthru
      _
    %v107 = vld [vmem:[%s0] sm:$0xff]
    %v108 = vld [vmem:[%s0 + $0x8] sm:$0xff]
    %v109 = vld [vmem:[%s0 + $0x10] sm:$0xff]
    %v110 = vld [vmem:[%s0 + $0x18] sm:$0xff]
    %v111 = vld [vmem:[%s0 + $0x20] sm:$0xff]
    %v112 = vld [vmem:[%s0 + $0x28] sm:$0xff]
    %v113 = vld [vmem:[%s0 + $0x30] sm:$0xff]
    %v114 = vld [vmem:[%s0 + $0x38] sm:$0xff]
    %v115 = vld [vmem:[%s0 + $0x40] sm:$0xff]
    %v116 = vld [vmem:[%s0 + $0x48] sm:$0xff]
    %v117 = vld [vmem:[%s0 + $0x50] sm:$0xff]
    %v118 = vld [vmem:[%s0 + $0x58] sm:$0xff]
    %v119 = vld [vmem:[%s0 + $0x60] sm:$0xff]
    %v120 = vld [vmem:[%s0 + $0x68] sm:$0xff]
    %v121 = vld [vmem:[%s0 + $0x70] sm:$0xff]
    %v122 = vld [vmem:[%s0 + $0x78] sm:$0xff]
    %v123 = vld [vmem:[%s0 + $0x80] sm:$0xff]
    %v124 = vld [vmem:[%s0 + $0x88] sm:$0xff]
    %v125 = vld [vmem:[%s0 + $0x90] sm:$0xff]
    %v126 = vld [vmem:[%s0 + $0x98] sm:$0xff]
    %v127 = vld [vmem:[%s0 + $0xa0] sm:$0xff]
    %v128 = vld [vmem:[%s0 + $0xa8] sm:$0xff]
    %v129 = vld [vmem:[%s0 + $0xb0] sm:$0xff]
    %v130 = vld [vmem:[%s0 + $0xb8] sm:$0xff]
    %v131 = vld [vmem:[%s0 + $0xc0] sm:$0xff]
    %v132 = vld [vmem:[%s0 + $0xc8] sm:$0xff]
    %v133 = vld [vmem:[%s0 + $0xd0] sm:$0xff]
    %v134 = vld [vmem:[%s0 + $0xd8] sm:$0xff]
    %v135 = vld [vmem:[%s0 + $0xe0] sm:$0xff]
    %v136 = vld [vmem:[%s0 + $0xe8] sm:$0xff]
    %v137 = vld [vmem:[%s0 + $0xf0] sm:$0xff]
    %v138 = vld [vmem:[%s0 + $0xf8] sm:$0xff]
    %v139 = vpack.c.bf16 %v108, %v107
    %v140 = vpack.c.bf16 %v110, %v109
    %v141 = vpack.c.bf16 %v112, %v111
    %v142 = vpack.c.bf16 %v114, %v113
    %v143 = vpack.c.bf16 %v116, %v115
    %v144 = vpack.c.bf16 %v118, %v117
    %v145 = vpack.c.bf16 %v120, %v119
    %v146 = vpack.c.bf16 %v122, %v121
    %v147 = vpack.c.bf16 %v124, %v123
    %v148 = vpack.c.bf16 %v126, %v125
    %v149 = vpack.c.bf16 %v128, %v127
    %v150 = vpack.c.bf16 %v130, %v129
    %v151 = vpack.c.bf16 %v132, %v131
    %v152 = vpack.c.bf16 %v134, %v133
    %v153 = vpack.c.bf16 %v136, %v135
    %v154 = vpack.c.bf16 %v138, %v137
    %v155 = vld [vmem:[#allocation2] sm:$0xf]
    %v156 = vld [vmem:[#allocation2 + $0x4] sm:$0x1]
    %v157 = vld [vmem:[#allocation5] sm:$0x1]
    %v159 = vlaneseq
    %v160 = vshrl.u32 %v159, 7
    %v161 = vsub.s32 0, %v160
    %v162 = vrot.slane %v157, %v161
    %v166 = vunpack.c.l.b16 %v155
    %v167 = vunpack.c.l.b16 %v156
    %v168 = vpack.c.b16 %v167, %v166
    %vm169 = vcmask 72704
    %v171 = vsel %vm169, %v139, 0
    %v174 = vsel %vm169, %v140, 0
    %v177 = vsel %vm169, %v141, 0
    %v180 = vsel %vm169, %v142, 0
    %v183 = vsel %vm169, %v143, 0
    %v186 = vsel %vm169, %v144, 0
    %v189 = vsel %vm169, %v145, 0
    %v192 = vsel %vm169, %v146, 0
    %v195 = vsel %vm169, %v147, 0
    %v198 = vsel %vm169, %v148, 0
    %v201 = vsel %vm169, %v149, 0
    %v204 = vsel %vm169, %v150, 0
    %v207 = vsel %vm169, %v151, 0
    %v210 = vsel %vm169, %v152, 0
    %v213 = vsel %vm169, %v153, 0
    %v216 = vsel %vm169, %v154, 0
    %vm218 = vcmask 1043456
    %vm219 = vcmask 1044480
    %v220 = vsel %vm218, 4294967295, 65535
    %v221 = vsel %vm219, %v220, 0
    %v223 = vand.u32 %v168, %v221
    %225 = vmatprep.subr.bf16.mxu0 0
    %226 = vmatpush1.bf16.msra.mxu0 %v223
    %227 = vmatprep.subr.bf16.mxu0 0
    %228 = vmatpush1.bf16.msra.mxu0 0
    %229 = vmatprep.subr.bf16.mxu0 0
    %230 = vmatpush1.bf16.msra.mxu0 0
    %231 = vmatprep.subr.bf16.mxu0 0
    %232 = vmatpush1.bf16.msra.mxu0 0
    %233 = vmatprep.subr.bf16.mxu0 0
    %234 = vmatpush1.bf16.msra.mxu0 0
    %235 = vmatprep.subr.bf16.mxu0 0
    %236 = vmatpush1.bf16.msra.mxu0 0
    %237 = vmatprep.subr.bf16.mxu0 0
    %238 = vmatpush1.bf16.msra.mxu0 0
    %239 = vmatprep.subr.bf16.mxu0 0
    %240 = vmatpush1.bf16.msra.mxu0 0
    %241 = vmatprep.subr.bf16.mxu0 0
    %242 = vmatpush1.bf16.msra.mxu0 0
    %243 = vmatprep.subr.bf16.mxu0 0
    %244 = vmatpush1.bf16.msra.mxu0 0
    %245 = vmatprep.subr.bf16.mxu0 0
    %246 = vmatpush1.bf16.msra.mxu0 0
    %247 = vmatprep.subr.bf16.mxu0 0
    %248 = vmatpush1.bf16.msra.mxu0 0
    %249 = vmatprep.subr.bf16.mxu0 0
    %250 = vmatpush1.bf16.msra.mxu0 0
    %251 = vmatprep.subr.bf16.mxu0 0
    %252 = vmatpush1.bf16.msra.mxu0 0
    %253 = vmatprep.subr.bf16.mxu0 0
    %254 = vmatpush1.bf16.msra.mxu0 0
    %255 = vmatprep.subr.bf16.mxu0 0
    %256 = vmatpush1.bf16.msra.mxu0 0
    %257 = vmatprep.mubr.bf16.mxu0 0
    %258 = vmatmul.mubr.bf16.gmra.mrb[0].mxu0 %v171
    %v259 = vpop.f32.mrb[0].mxu0
    %v260 = vadd.f32 %v162, %v259
    %v261 = vpop.f32.mrb[0].mxu0
    %v262 = vpop.f32.mrb[0].mxu0
    %v263 = vadd.f32 %v162, %v262
    %v264 = vpop.f32.mrb[0].mxu0
    %265 = vmatprep.mubr.bf16.mxu0 0
    %266 = vmatmul.mubr.bf16.gmra.mrb[0].mxu0 %v174
    %v267 = vpop.f32.mrb[0].mxu0
    %v268 = vadd.f32 %v162, %v267
    %v269 = vpop.f32.mrb[0].mxu0
    %v270 = vpop.f32.mrb[0].mxu0
    %v271 = vadd.f32 %v162, %v270
    %v272 = vpop.f32.mrb[0].mxu0
    %273 = vmatprep.mubr.bf16.mxu0 0
    %274 = vmatmul.mubr.bf16.gmra.mrb[0].mxu0 %v177
    %v275 = vpop.f32.mrb[0].mxu0
    %v276 = vadd.f32 %v162, %v275
    %v277 = vpop.f32.mrb[0].mxu0
    %v278 = vpop.f32.mrb[0].mxu0
    %v279 = vadd.f32 %v162, %v278
    %v280 = vpop.f32.mrb[0].mxu0
    %281 = vmatprep.mubr.bf16.mxu0 0
    %282 = vmatmul.mubr.bf16.gmra.mrb[0].mxu0 %v180
    %v283 = vpop.f32.mrb[0].mxu0
    %v284 = vadd.f32 %v162, %v283
    %v285 = vpop.f32.mrb[0].mxu0
    %v286 = vpop.f32.mrb[0].mxu0
    %v287 = vadd.f32 %v162, %v286
    %v288 = vpop.f32.mrb[0].mxu0
    %289 = vmatprep.mubr.bf16.mxu0 0
    %290 = vmatmul.mubr.bf16.gmra.mrb[0].mxu0 %v183
    %v291 = vpop.f32.mrb[0].mxu0
    %v292 = vadd.f32 %v162, %v291
    %v293 = vpop.f32.mrb[0].mxu0
    %v294 = vpop.f32.mrb[0].mxu0
    %v295 = vadd.f32 %v162, %v294
    %v296 = vpop.f32.mrb[0].mxu0
    %297 = vmatprep.mubr.bf16.mxu0 0
    %298 = vmatmul.mubr.bf16.gmra.mrb[0].mxu0 %v186
    %v299 = vpop.f32.mrb[0].mxu0
    %v300 = vadd.f32 %v162, %v299
    %v301 = vpop.f32.mrb[0].mxu0
    %v302 = vpop.f32.mrb[0].mxu0
    %v303 = vadd.f32 %v162, %v302
    %v304 = vpop.f32.mrb[0].mxu0
    %305 = vmatprep.mubr.bf16.mxu0 0
    %306 = vmatmul.mubr.bf16.gmra.mrb[0].mxu0 %v189
    %v307 = vpop.f32.mrb[0].mxu0
    %v308 = vadd.f32 %v162, %v307
    %v309 = vpop.f32.mrb[0].mxu0
    %v310 = vpop.f32.mrb[0].mxu0
    %v311 = vadd.f32 %v162, %v310
    %v312 = vpop.f32.mrb[0].mxu0
    %313 = vmatprep.mubr.bf16.mxu0 0
    %314 = vmatmul.mubr.bf16.gmra.mrb[0].mxu0 %v192
    %v315 = vpop.f32.mrb[0].mxu0
    %v316 = vadd.f32 %v162, %v315
    %v317 = vpop.f32.mrb[0].mxu0
    %v318 = vpop.f32.mrb[0].mxu0
    %v319 = vadd.f32 %v162, %v318
    %v320 = vpop.f32.mrb[0].mxu0
    %321 = vmatprep.mubr.bf16.mxu0 0
    %322 = vmatmul.mubr.bf16.gmra.mrb[0].mxu0 %v195
    %v323 = vpop.f32.mrb[0].mxu0
    %v324 = vadd.f32 %v162, %v323
    %v325 = vpop.f32.mrb[0].mxu0
    %v326 = vpop.f32.mrb[0].mxu0
    %v327 = vadd.f32 %v162, %v326
    %v328 = vpop.f32.mrb[0].mxu0
    %329 = vmatprep.mubr.bf16.mxu0 0
    %330 = vmatmul.mubr.bf16.gmra.mrb[0].mxu0 %v198
    %v331 = vpop.f32.mrb[0].mxu0
    %v332 = vadd.f32 %v162, %v331
    %v333 = vpop.f32.mrb[0].mxu0
    %v334 = vpop.f32.mrb[0].mxu0
    %v335 = vadd.f32 %v162, %v334
    %v336 = vpop.f32.mrb[0].mxu0
    %337 = vmatprep.mubr.bf16.mxu0 0
    %338 = vmatmul.mubr.bf16.gmra.mrb[0].mxu0 %v201
    %v339 = vpop.f32.mrb[0].mxu0
    %v340 = vadd.f32 %v162, %v339
    %v341 = vpop.f32.mrb[0].mxu0
    %v342 = vpop.f32.mrb[0].mxu0
    %v343 = vadd.f32 %v162, %v342
    %v344 = vpop.f32.mrb[0].mxu0
    %345 = vmatprep.mubr.bf16.mxu0 0
    %346 = vmatmul.mubr.bf16.gmra.mrb[0].mxu0 %v204
    %v347 = vpop.f32.mrb[0].mxu0
    %v348 = vadd.f32 %v162, %v347
    %v349 = vpop.f32.mrb[0].mxu0
    %v350 = vpop.f32.mrb[0].mxu0
    %v351 = vadd.f32 %v162, %v350
    %v352 = vpop.f32.mrb[0].mxu0
    %353 = vmatprep.mubr.bf16.mxu0 0
    %354 = vmatmul.mubr.bf16.gmra.mrb[0].mxu0 %v207
    %v355 = vpop.f32.mrb[0].mxu0
    %v356 = vadd.f32 %v162, %v355
    %v357 = vpop.f32.mrb[0].mxu0
    %v358 = vpop.f32.mrb[0].mxu0
    %v359 = vadd.f32 %v162, %v358
    %v360 = vpop.f32.mrb[0].mxu0
    %361 = vmatprep.mubr.bf16.mxu0 0
    %362 = vmatmul.mubr.bf16.gmra.mrb[0].mxu0 %v210
    %v363 = vpop.f32.mrb[0].mxu0
    %v364 = vadd.f32 %v162, %v363
    %v365 = vpop.f32.mrb[0].mxu0
    %v366 = vpop.f32.mrb[0].mxu0
    %v367 = vadd.f32 %v162, %v366
    %v368 = vpop.f32.mrb[0].mxu0
    %369 = vmatprep.mubr.bf16.mxu0 0
    %370 = vmatmul.mubr.bf16.gmra.mrb[0].mxu0 %v213
    %v371 = vpop.f32.mrb[0].mxu0
    %v372 = vadd.f32 %v162, %v371
    %v373 = vpop.f32.mrb[0].mxu0
    %v374 = vpop.f32.mrb[0].mxu0
    %v375 = vadd.f32 %v162, %v374
    %v376 = vpop.f32.mrb[0].mxu0
    %377 = vmatprep.mubr.bf16.mxu0 0
    %378 = vmatmul.mubr.bf16.gmra.mrb[0].mxu0 %v216
    %v379 = vpop.f32.mrb[0].mxu0
    %v380 = vadd.f32 %v162, %v379
    %v381 = vpop.f32.mrb[0].mxu0
    %v382 = vpop.f32.mrb[0].mxu0
    %v383 = vadd.f32 %v162, %v382
    %v384 = vpop.f32.mrb[0].mxu0
    %385 = vdwg.mxu0
    %v386 = vpack.c.bf16 %v263, %v260
    %v387 = vpack.c.bf16 %v271, %v268
    %v388 = vpack.c.bf16 %v279, %v276
    %v389 = vpack.c.bf16 %v287, %v284
    %v390 = vpack.c.bf16 %v295, %v292
    %v391 = vpack.c.bf16 %v303, %v300
    %v392 = vpack.c.bf16 %v311, %v308
    %v393 = vpack.c.bf16 %v319, %v316
    %v394 = vpack.c.bf16 %v327, %v324
    %v395 = vpack.c.bf16 %v335, %v332
    %v396 = vpack.c.bf16 %v343, %v340
    %v397 = vpack.c.bf16 %v351, %v348
    %v398 = vpack.c.bf16 %v359, %v356
    %v399 = vpack.c.bf16 %v367, %v364
    %v400 = vpack.c.bf16 %v375, %v372
    %v401 = vpack.c.bf16 %v383, %v380
    %v402 = vld [vmem:[%s4] sm:$0xf]
    %v403 = vld [vmem:[%s4 + $0x4] sm:$0xf]
    %v404 = vld [vmem:[%s4 + $0x8] sm:$0xf]
    %v405 = vld [vmem:[%s4 + $0xc] sm:$0xf]
    %v406 = vld [vmem:[%s4 + $0x10] sm:$0xf]
    %v407 = vld [vmem:[%s4 + $0x14] sm:$0xf]
    %v408 = vld [vmem:[%s4 + $0x18] sm:$0xf]
    %v409 = vld [vmem:[%s4 + $0x1c] sm:$0xf]
    %v410 = vld [vmem:[#allocation7] sm:$0x1]
    %v412 = vlaneseq
    %v413 = vshrl.u32 %v412, 7
    %v414 = vsub.s32 0, %v413
    %v415 = vrot.slane %v410, %v414
    %v425 = vunpack.c.l.b16 %v402
    %v426 = vunpack.c.l.b16 %v403
    %v427 = vunpack.c.l.b16 %v404
    %v428 = vunpack.c.l.b16 %v405
    %v429 = vunpack.c.l.b16 %v406
    %v430 = vunpack.c.l.b16 %v407
    %v431 = vunpack.c.l.b16 %v408
    %v432 = vunpack.c.l.b16 %v409
    %v433 = vpack.c.b16 %v426, %v425
    %v434 = vpack.c.b16 %v428, %v427
    %v435 = vpack.c.b16 %v430, %v429
    %v436 = vpack.c.b16 %v432, %v431
    %vm441 = vcmask 523264
    %v443 = vsel %vm441, %v386, 0
    %v446 = vsel %vm441, %v387, 0
    %v449 = vsel %vm441, %v388, 0
    %v452 = vsel %vm441, %v389, 0
    %v455 = vsel %vm441, %v390, 0
    %v458 = vsel %vm441, %v391, 0
    %v461 = vsel %vm441, %v392, 0
    %v464 = vsel %vm441, %v393, 0
    %v467 = vsel %vm441, %v394, 0
    %v470 = vsel %vm441, %v395, 0
    %v473 = vsel %vm441, %v396, 0
    %v476 = vsel %vm441, %v397, 0
    %v479 = vsel %vm441, %v398, 0
    %v482 = vsel %vm441, %v399, 0
    %v485 = vsel %vm441, %v400, 0
    %v488 = vsel %vm441, %v401, 0
    %490 = vmatprep.subr.bf16.mxu0 0
    %491 = vmatpush1.bf16.msra.mxu0 %v433
    %492 = vmatprep.subr.bf16.mxu0 0
    %493 = vmatpush1.bf16.msra.mxu0 %v434
    %494 = vmatprep.subr.bf16.mxu0 0
    %495 = vmatpush1.bf16.msra.mxu0 %v435
    %496 = vmatprep.subr.bf16.mxu0 0
    %497 = vmatpush1.bf16.msra.mxu0 %v436
    %498 = vmatprep.subr.bf16.mxu0 0
    %499 = vmatpush1.bf16.msra.mxu0 0
    %500 = vmatprep.subr.bf16.mxu0 0
    %501 = vmatpush1.bf16.msra.mxu0 0
    %502 = vmatprep.subr.bf16.mxu0 0
    %503 = vmatpush1.bf16.msra.mxu0 0
    %504 = vmatprep.subr.bf16.mxu0 0
    %505 = vmatpush1.bf16.msra.mxu0 0
    %506 = vmatprep.subr.bf16.mxu0 0
    %507 = vmatpush1.bf16.msra.mxu0 0
    %508 = vmatprep.subr.bf16.mxu0 0
    %509 = vmatpush1.bf16.msra.mxu0 0
    %510 = vmatprep.subr.bf16.mxu0 0
    %511 = vmatpush1.bf16.msra.mxu0 0
    %512 = vmatprep.subr.bf16.mxu0 0
    %513 = vmatpush1.bf16.msra.mxu0 0
    %514 = vmatprep.subr.bf16.mxu0 0
    %515 = vmatpush1.bf16.msra.mxu0 0
    %516 = vmatprep.subr.bf16.mxu0 0
    %517 = vmatpush1.bf16.msra.mxu0 0
    %518 = vmatprep.subr.bf16.mxu0 0
    %519 = vmatpush1.bf16.msra.mxu0 0
    %520 = vmatprep.subr.bf16.mxu0 0
    %521 = vmatpush1.bf16.msra.mxu0 0
    %522 = vmatprep.mubr.bf16.mxu0 0
    %523 = vmatmul.mubr.bf16.gmra.mrb[0].mxu0 %v443
    %v524 = vpop.f32.mrb[0].mxu0
    %v525 = vadd.f32 %v415, %v524
    %v526 = vpop.f32.mrb[0].mxu0
    %v527 = vpop.f32.mrb[0].mxu0
    %v528 = vadd.f32 %v415, %v527
    %v529 = vpop.f32.mrb[0].mxu0
    %530 = vmatprep.mubr.bf16.mxu0 0
    %531 = vmatmul.mubr.bf16.gmra.mrb[0].mxu0 %v446
    %v532 = vpop.f32.mrb[0].mxu0
    %v533 = vadd.f32 %v415, %v532
    %v534 = vpop.f32.mrb[0].mxu0
    %v535 = vpop.f32.mrb[0].mxu0
    %v536 = vadd.f32 %v415, %v535
    %v537 = vpop.f32.mrb[0].mxu0
    %538 = vmatprep.mubr.bf16.mxu0 0
    %539 = vmatmul.mubr.bf16.gmra.mrb[0].mxu0 %v449
    %v540 = vpop.f32.mrb[0].mxu0
    %v541 = vadd.f32 %v415, %v540
    %v542 = vpop.f32.mrb[0].mxu0
    %v543 = vpop.f32.mrb[0].mxu0
    %v544 = vadd.f32 %v415, %v543
    %v545 = vpop.f32.mrb[0].mxu0
    %546 = vmatprep.mubr.bf16.mxu0 0
    %547 = vmatmul.mubr.bf16.gmra.mrb[0].mxu0 %v452
    %v548 = vpop.f32.mrb[0].mxu0
    %v549 = vadd.f32 %v415, %v548
    %v550 = vpop.f32.mrb[0].mxu0
    %v551 = vpop.f32.mrb[0].mxu0
    %v552 = vadd.f32 %v415, %v551
    %v553 = vpop.f32.mrb[0].mxu0
    %554 = vmatprep.mubr.bf16.mxu0 0
    %555 = vmatmul.mubr.bf16.gmra.mrb[0].mxu0 %v455
    %v556 = vpop.f32.mrb[0].mxu0
    %v557 = vadd.f32 %v415, %v556
    %v558 = vpop.f32.mrb[0].mxu0
    %v559 = vpop.f32.mrb[0].mxu0
    %v560 = vadd.f32 %v415, %v559
    %v561 = vpop.f32.mrb[0].mxu0
    %562 = vmatprep.mubr.bf16.mxu0 0
    %563 = vmatmul.mubr.bf16.gmra.mrb[0].mxu0 %v458
    %v564 = vpop.f32.mrb[0].mxu0
    %v565 = vadd.f32 %v415, %v564
    %v566 = vpop.f32.mrb[0].mxu0
    %v567 = vpop.f32.mrb[0].mxu0
    %v568 = vadd.f32 %v415, %v567
    %v569 = vpop.f32.mrb[0].mxu0
    %570 = vmatprep.mubr.bf16.mxu0 0
    %571 = vmatmul.mubr.bf16.gmra.mrb[0].mxu0 %v461
    %v572 = vpop.f32.mrb[0].mxu0
    %v573 = vadd.f32 %v415, %v572
    %v574 = vpop.f32.mrb[0].mxu0
    %v575 = vpop.f32.mrb[0].mxu0
    %v576 = vadd.f32 %v415, %v575
    %v577 = vpop.f32.mrb[0].mxu0
    %578 = vmatprep.mubr.bf16.mxu0 0
    %579 = vmatmul.mubr.bf16.gmra.mrb[0].mxu0 %v464
    %v580 = vpop.f32.mrb[0].mxu0
    %v581 = vadd.f32 %v415, %v580
    %v582 = vpop.f32.mrb[0].mxu0
    %v583 = vpop.f32.mrb[0].mxu0
    %v584 = vadd.f32 %v415, %v583
    %v585 = vpop.f32.mrb[0].mxu0
    %586 = vmatprep.mubr.bf16.mxu0 0
    %587 = vmatmul.mubr.bf16.gmra.mrb[0].mxu0 %v467
    %v588 = vpop.f32.mrb[0].mxu0
    %v589 = vadd.f32 %v415, %v588
    %v590 = vpop.f32.mrb[0].mxu0
    %v591 = vpop.f32.mrb[0].mxu0
    %v592 = vadd.f32 %v415, %v591
    %v593 = vpop.f32.mrb[0].mxu0
    %594 = vmatprep.mubr.bf16.mxu0 0
    %595 = vmatmul.mubr.bf16.gmra.mrb[0].mxu0 %v470
    %v596 = vpop.f32.mrb[0].mxu0
    %v597 = vadd.f32 %v415, %v596
    %v598 = vpop.f32.mrb[0].mxu0
    %v599 = vpop.f32.mrb[0].mxu0
    %v600 = vadd.f32 %v415, %v599
    %v601 = vpop.f32.mrb[0].mxu0
    %602 = vmatprep.mubr.bf16.mxu0 0
    %603 = vmatmul.mubr.bf16.gmra.mrb[0].mxu0 %v473
    %v604 = vpop.f32.mrb[0].mxu0
    %v605 = vadd.f32 %v415, %v604
    %v606 = vpop.f32.mrb[0].mxu0
    %v607 = vpop.f32.mrb[0].mxu0
    %v608 = vadd.f32 %v415, %v607
    %v609 = vpop.f32.mrb[0].mxu0
    %610 = vmatprep.mubr.bf16.mxu0 0
    %611 = vmatmul.mubr.bf16.gmra.mrb[0].mxu0 %v476
    %v612 = vpop.f32.mrb[0].mxu0
    %v613 = vadd.f32 %v415, %v612
    %v614 = vpop.f32.mrb[0].mxu0
    %v615 = vpop.f32.mrb[0].mxu0
    %v616 = vadd.f32 %v415, %v615
    %v617 = vpop.f32.mrb[0].mxu0
    %618 = vmatprep.mubr.bf16.mxu0 0
    %619 = vmatmul.mubr.bf16.gmra.mrb[0].mxu0 %v479
    %v620 = vpop.f32.mrb[0].mxu0
    %v621 = vadd.f32 %v415, %v620
    %v622 = vpop.f32.mrb[0].mxu0
    %v623 = vpop.f32.mrb[0].mxu0
    %v624 = vadd.f32 %v415, %v623
    %v625 = vpop.f32.mrb[0].mxu0
    %626 = vmatprep.mubr.bf16.mxu0 0
    %627 = vmatmul.mubr.bf16.gmra.mrb[0].mxu0 %v482
    %v628 = vpop.f32.mrb[0].mxu0
    %v629 = vadd.f32 %v415, %v628
    %v630 = vpop.f32.mrb[0].mxu0
    %v631 = vpop.f32.mrb[0].mxu0
    %v632 = vadd.f32 %v415, %v631
    %v633 = vpop.f32.mrb[0].mxu0
    %634 = vmatprep.mubr.bf16.mxu0 0
    %635 = vmatmul.mubr.bf16.gmra.mrb[0].mxu0 %v485
    %v636 = vpop.f32.mrb[0].mxu0
    %v637 = vadd.f32 %v415, %v636
    %v638 = vpop.f32.mrb[0].mxu0
    %v639 = vpop.f32.mrb[0].mxu0
    %v640 = vadd.f32 %v415, %v639
    %v641 = vpop.f32.mrb[0].mxu0
    %642 = vmatprep.mubr.bf16.mxu0 0
    %643 = vmatmul.mubr.bf16.gmra.mrb[0].mxu0 %v488
    %v644 = vpop.f32.mrb[0].mxu0
    %v645 = vadd.f32 %v415, %v644
    %v646 = vpop.f32.mrb[0].mxu0
    %v647 = vpop.f32.mrb[0].mxu0
    %v648 = vadd.f32 %v415, %v647
    %v649 = vpop.f32.mrb[0].mxu0
    %650 = vdwg.mxu0
    %v651 = vld [vmem:[%s8] sm:$0x1]
    %v652 = vld [vmem:[%s9] sm:$0x1]
    %v653 = vld [vmem:[%s1] sm:$0xff]
    %v654 = vld [vmem:[%s1 + $0x8] sm:$0xff]
    %v655 = vld [vmem:[%s1 + $0x10] sm:$0xff]
    %v656 = vld [vmem:[%s1 + $0x18] sm:$0xff]
    %v657 = vld [vmem:[%s1 + $0x20] sm:$0xff]
    %v658 = vld [vmem:[%s1 + $0x28] sm:$0xff]
    %v659 = vld [vmem:[%s1 + $0x30] sm:$0xff]
    %v660 = vld [vmem:[%s1 + $0x38] sm:$0xff]
    %v661 = vld [vmem:[%s1 + $0x40] sm:$0xff]
    %v662 = vld [vmem:[%s1 + $0x48] sm:$0xff]
    %v663 = vld [vmem:[%s1 + $0x50] sm:$0xff]
    %v664 = vld [vmem:[%s1 + $0x58] sm:$0xff]
    %v665 = vld [vmem:[%s1 + $0x60] sm:$0xff]
    %v666 = vld [vmem:[%s1 + $0x68] sm:$0xff]
    %v667 = vld [vmem:[%s1 + $0x70] sm:$0xff]
    %v668 = vld [vmem:[%s1 + $0x78] sm:$0xff]
    %v669 = vld [vmem:[%s1 + $0x80] sm:$0xff]
    %v670 = vld [vmem:[%s1 + $0x88] sm:$0xff]
    %v671 = vld [vmem:[%s1 + $0x90] sm:$0xff]
    %v672 = vld [vmem:[%s1 + $0x98] sm:$0xff]
    %v673 = vld [vmem:[%s1 + $0xa0] sm:$0xff]
    %v674 = vld [vmem:[%s1 + $0xa8] sm:$0xff]
    %v675 = vld [vmem:[%s1 + $0xb0] sm:$0xff]
    %v676 = vld [vmem:[%s1 + $0xb8] sm:$0xff]
    %v677 = vld [vmem:[%s1 + $0xc0] sm:$0xff]
    %v678 = vld [vmem:[%s1 + $0xc8] sm:$0xff]
    %v679 = vld [vmem:[%s1 + $0xd0] sm:$0xff]
    %v680 = vld [vmem:[%s1 + $0xd8] sm:$0xff]
    %v681 = vld [vmem:[%s1 + $0xe0] sm:$0xff]
    %v682 = vld [vmem:[%s1 + $0xe8] sm:$0xff]
    %v683 = vld [vmem:[%s1 + $0xf0] sm:$0xff]
    %v684 = vld [vmem:[%s1 + $0xf8] sm:$0xff]
    %v685 = vld [vmem:[#allocation8] sm:$0xf]
    %v686 = vld [vmem:[#allocation8 + $0x4] sm:$0xf]
    %v687 = vld [vmem:[#allocation8 + $0x8] sm:$0xf]
    %v688 = vld [vmem:[#allocation8 + $0xc] sm:$0xf]
    %v689 = vld [vmem:[#allocation8 + $0x10] sm:$0xf]
    %v690 = vld [vmem:[#allocation8 + $0x14] sm:$0xf]
    %v691 = vld [vmem:[#allocation8 + $0x18] sm:$0xf]
    %v692 = vld [vmem:[#allocation8 + $0x1c] sm:$0xf]
    %v701 = vunpack.c.l.b16 %v685
    %v702 = vunpack.c.l.b16 %v686
    %v703 = vunpack.c.l.b16 %v687
    %v704 = vunpack.c.l.b16 %v688
    %v705 = vunpack.c.l.b16 %v689
    %v706 = vunpack.c.l.b16 %v690
    %v707 = vunpack.c.l.b16 %v691
    %v708 = vunpack.c.l.b16 %v692
    %v709 = vpack.c.b16 %v702, %v701
    %v710 = vpack.c.b16 %v704, %v703
    %v711 = vpack.c.b16 %v706, %v705
    %v712 = vpack.c.b16 %v708, %v707
    %717 = vmatprep.subr.bf16.mxu0 0
    %718 = vmatpush1.bf16.msra.mxu0 %v709
    %719 = vmatprep.subr.bf16.mxu0 0
    %720 = vmatpush1.bf16.msra.mxu0 %v710
    %721 = vmatprep.subr.bf16.mxu0 0
    %722 = vmatpush1.bf16.msra.mxu0 %v711
    %723 = vmatprep.subr.bf16.mxu0 0
    %724 = vmatpush1.bf16.msra.mxu0 %v712
    %725 = vmatprep.subr.bf16.mxu0 0
    %726 = vmatpush1.bf16.msra.mxu0 0
    %727 = vmatprep.subr.bf16.mxu0 0
    %728 = vmatpush1.bf16.msra.mxu0 0
    %729 = vmatprep.subr.bf16.mxu0 0
    %730 = vmatpush1.bf16.msra.mxu0 0
    %731 = vmatprep.subr.bf16.mxu0 0
    %732 = vmatpush1.bf16.msra.mxu0 0
    %733 = vmatprep.subr.bf16.mxu0 0
    %734 = vmatpush1.bf16.msra.mxu0 0
    %735 = vmatprep.subr.bf16.mxu0 0
    %736 = vmatpush1.bf16.msra.mxu0 0
    %737 = vmatprep.subr.bf16.mxu0 0
    %738 = vmatpush1.bf16.msra.mxu0 0
    %739 = vmatprep.subr.bf16.mxu0 0
    %740 = vmatpush1.bf16.msra.mxu0 0
    %741 = vmatprep.subr.bf16.mxu0 0
    %742 = vmatpush1.bf16.msra.mxu0 0
    %743 = vmatprep.subr.bf16.mxu0 0
    %744 = vmatpush1.bf16.msra.mxu0 0
    %745 = vmatprep.subr.bf16.mxu0 0
    %746 = vmatpush1.bf16.msra.mxu0 0
    %747 = vmatprep.subr.bf16.mxu0 0
    %748 = vmatpush1.bf16.msra.mxu0 0
    %749 = vmatprep.mubr.bf16.mxu0 0
    %750 = vmatmul.mubr.bf16.gmra.mrb[0].mxu0 %v443
    %v751 = vpop.f32.mrb[0].mxu0
    %v752 = vadd.f32 0.0, %v751
    %v753 = vpop.f32.mrb[0].mxu0
    %v754 = vpop.f32.mrb[0].mxu0
    %v755 = vadd.f32 0.0, %v754
    %v756 = vpop.f32.mrb[0].mxu0
    %757 = vmatprep.mubr.bf16.mxu0 0
    %758 = vmatmul.mubr.bf16.gmra.mrb[0].mxu0 %v446
    %v759 = vpop.f32.mrb[0].mxu0
    %v760 = vadd.f32 0.0, %v759
    %v761 = vpop.f32.mrb[0].mxu0
    %v762 = vpop.f32.mrb[0].mxu0
    %v763 = vadd.f32 0.0, %v762
    %v764 = vpop.f32.mrb[0].mxu0
    %765 = vmatprep.mubr.bf16.mxu0 0
    %766 = vmatmul.mubr.bf16.gmra.mrb[0].mxu0 %v449
    %v767 = vpop.f32.mrb[0].mxu0
    %v768 = vadd.f32 0.0, %v767
    %v769 = vpop.f32.mrb[0].mxu0
    %v770 = vpop.f32.mrb[0].mxu0
    %v771 = vadd.f32 0.0, %v770
    %v772 = vpop.f32.mrb[0].mxu0
    %773 = vmatprep.mubr.bf16.mxu0 0
    %774 = vmatmul.mubr.bf16.gmra.mrb[0].mxu0 %v452
    %v775 = vpop.f32.mrb[0].mxu0
    %v776 = vadd.f32 0.0, %v775
    %v777 = vpop.f32.mrb[0].mxu0
    %v778 = vpop.f32.mrb[0].mxu0
    %v779 = vadd.f32 0.0, %v778
    %v780 = vpop.f32.mrb[0].mxu0
    %781 = vmatprep.mubr.bf16.mxu0 0
    %782 = vmatmul.mubr.bf16.gmra.mrb[0].mxu0 %v455
    %v783 = vpop.f32.mrb[0].mxu0
    %v784 = vadd.f32 0.0, %v783
    %v785 = vpop.f32.mrb[0].mxu0
    %v786 = vpop.f32.mrb[0].mxu0
    %v787 = vadd.f32 0.0, %v786
    %v788 = vpop.f32.mrb[0].mxu0
    %789 = vmatprep.mubr.bf16.mxu0 0
    %790 = vmatmul.mubr.bf16.gmra.mrb[0].mxu0 %v458
    %v791 = vpop.f32.mrb[0].mxu0
    %v792 = vadd.f32 0.0, %v791
    %v793 = vpop.f32.mrb[0].mxu0
    %v794 = vpop.f32.mrb[0].mxu0
    %v795 = vadd.f32 0.0, %v794
    %v796 = vpop.f32.mrb[0].mxu0
    %797 = vmatprep.mubr.bf16.mxu0 0
    %798 = vmatmul.mubr.bf16.gmra.mrb[0].mxu0 %v461
    %v799 = vpop.f32.mrb[0].mxu0
    %v800 = vadd.f32 0.0, %v799
    %v801 = vpop.f32.mrb[0].mxu0
    %v802 = vpop.f32.mrb[0].mxu0
    %v803 = vadd.f32 0.0, %v802
    %v804 = vpop.f32.mrb[0].mxu0
    %805 = vmatprep.mubr.bf16.mxu0 0
    %806 = vmatmul.mubr.bf16.gmra.mrb[0].mxu0 %v464
    %v807 = vpop.f32.mrb[0].mxu0
    %v808 = vadd.f32 0.0, %v807
    %v809 = vpop.f32.mrb[0].mxu0
    %v810 = vpop.f32.mrb[0].mxu0
    %v811 = vadd.f32 0.0, %v810
    %v812 = vpop.f32.mrb[0].mxu0
    %813 = vmatprep.mubr.bf16.mxu0 0
    %814 = vmatmul.mubr.bf16.gmra.mrb[0].mxu0 %v467
    %v815 = vpop.f32.mrb[0].mxu0
    %v816 = vadd.f32 0.0, %v815
    %v817 = vpop.f32.mrb[0].mxu0
    %v818 = vpop.f32.mrb[0].mxu0
    %v819 = vadd.f32 0.0, %v818
    %v820 = vpop.f32.mrb[0].mxu0
    %821 = vmatprep.mubr.bf16.mxu0 0
    %822 = vmatmul.mubr.bf16.gmra.mrb[0].mxu0 %v470
    %v823 = vpop.f32.mrb[0].mxu0
    %v824 = vadd.f32 0.0, %v823
    %v825 = vpop.f32.mrb[0].mxu0
    %v826 = vpop.f32.mrb[0].mxu0
    %v827 = vadd.f32 0.0, %v826
    %v828 = vpop.f32.mrb[0].mxu0
    %829 = vmatprep.mubr.bf16.mxu0 0
    %830 = vmatmul.mubr.bf16.gmra.mrb[0].mxu0 %v473
    %v831 = vpop.f32.mrb[0].mxu0
    %v832 = vadd.f32 0.0, %v831
    %v833 = vpop.f32.mrb[0].mxu0
    %v834 = vpop.f32.mrb[0].mxu0
    %v835 = vadd.f32 0.0, %v834
    %v836 = vpop.f32.mrb[0].mxu0
    %837 = vmatprep.mubr.bf16.mxu0 0
    %838 = vmatmul.mubr.bf16.gmra.mrb[0].mxu0 %v476
    %v839 = vpop.f32.mrb[0].mxu0
    %v840 = vadd.f32 0.0, %v839
    %v841 = vpop.f32.mrb[0].mxu0
    %v842 = vpop.f32.mrb[0].mxu0
    %v843 = vadd.f32 0.0, %v842
    %v844 = vpop.f32.mrb[0].mxu0
    %845 = vmatprep.mubr.bf16.mxu0 0
    %846 = vmatmul.mubr.bf16.gmra.mrb[0].mxu0 %v479
    %v847 = vpop.f32.mrb[0].mxu0
    %v848 = vadd.f32 0.0, %v847
    %v849 = vpop.f32.mrb[0].mxu0
    %v850 = vpop.f32.mrb[0].mxu0
    %v851 = vadd.f32 0.0, %v850
    %v852 = vpop.f32.mrb[0].mxu0
    %853 = vmatprep.mubr.bf16.mxu0 0
    %854 = vmatmul.mubr.bf16.gmra.mrb[0].mxu0 %v482
    %v855 = vpop.f32.mrb[0].mxu0
    %v856 = vadd.f32 0.0, %v855
    %v857 = vpop.f32.mrb[0].mxu0
    %v858 = vpop.f32.mrb[0].mxu0
    %v859 = vadd.f32 0.0, %v858
    %v860 = vpop.f32.mrb[0].mxu0
    %861 = vmatprep.mubr.bf16.mxu0 0
    %862 = vmatmul.mubr.bf16.gmra.mrb[0].mxu0 %v485
    %v863 = vpop.f32.mrb[0].mxu0
    %v864 = vadd.f32 0.0, %v863
    %v865 = vpop.f32.mrb[0].mxu0
    %v866 = vpop.f32.mrb[0].mxu0
    %v867 = vadd.f32 0.0, %v866
    %v868 = vpop.f32.mrb[0].mxu0
    %869 = vmatprep.mubr.bf16.mxu0 0
    %870 = vmatmul.mubr.bf16.gmra.mrb[0].mxu0 %v488
    %v871 = vpop.f32.mrb[0].mxu0
    %v872 = vadd.f32 0.0, %v871
    %v873 = vpop.f32.mrb[0].mxu0
    %v874 = vpop.f32.mrb[0].mxu0
    %v875 = vadd.f32 0.0, %v874
    %v876 = vpop.f32.mrb[0].mxu0
    %877 = vdwg.mxu0
    %v878 = vpack.c.bf16 %v755, %v752
    %v879 = vpack.c.bf16 %v763, %v760
    %v880 = vpack.c.bf16 %v771, %v768
    %v881 = vpack.c.bf16 %v779, %v776
    %v882 = vpack.c.bf16 %v787, %v784
    %v883 = vpack.c.bf16 %v795, %v792
    %v884 = vpack.c.bf16 %v803, %v800
    %v885 = vpack.c.bf16 %v811, %v808
    %v886 = vpack.c.bf16 %v819, %v816
    %v887 = vpack.c.bf16 %v827, %v824
    %v888 = vpack.c.bf16 %v835, %v832
    %v889 = vpack.c.bf16 %v843, %v840
    %v890 = vpack.c.bf16 %v851, %v848
    %v891 = vpack.c.bf16 %v859, %v856
    %v892 = vpack.c.bf16 %v867, %v864
    %v893 = vpack.c.bf16 %v875, %v872
    %v926 = vunpack.c.l.b16 %v653
    %v927 = vunpack.c.h.b16 %v653
    %v928 = vunpack.c.l.b16 %v654
    %v929 = vunpack.c.h.b16 %v654
    %v930 = vunpack.c.l.b16 %v655
    %v931 = vunpack.c.h.b16 %v655
    %v932 = vunpack.c.l.b16 %v656
    %v933 = vunpack.c.h.b16 %v656
    %v934 = vunpack.c.l.b16 %v657
    %v935 = vunpack.c.h.b16 %v657
    %v936 = vunpack.c.l.b16 %v658
    %v937 = vunpack.c.h.b16 %v658
    %v938 = vunpack.c.l.b16 %v659
    %v939 = vunpack.c.h.b16 %v659
    %v940 = vunpack.c.l.b16 %v660
    %v941 = vunpack.c.h.b16 %v660
    %v942 = vunpack.c.l.b16 %v661
    %v943 = vunpack.c.h.b16 %v661
    %v944 = vunpack.c.l.b16 %v662
    %v945 = vunpack.c.h.b16 %v662
    %v946 = vunpack.c.l.b16 %v663
    %v947 = vunpack.c.h.b16 %v663
    %v948 = vunpack.c.l.b16 %v664
    %v949 = vunpack.c.h.b16 %v664
    %v950 = vunpack.c.l.b16 %v665
    %v951 = vunpack.c.h.b16 %v665
    %v952 = vunpack.c.l.b16 %v666
    %v953 = vunpack.c.h.b16 %v666
    %v954 = vunpack.c.l.b16 %v667
    %v955 = vunpack.c.h.b16 %v667
    %v956 = vunpack.c.l.b16 %v668
    %v957 = vunpack.c.h.b16 %v668
    %v958 = vunpack.c.l.b16 %v669
    %v959 = vunpack.c.h.b16 %v669
    %v960 = vunpack.c.l.b16 %v670
    %v961 = vunpack.c.h.b16 %v670
    %v962 = vunpack.c.l.b16 %v671
    %v963 = vunpack.c.h.b16 %v671
    %v964 = vunpack.c.l.b16 %v672
    %v965 = vunpack.c.h.b16 %v672
    %v966 = vunpack.c.l.b16 %v673
    %v967 = vunpack.c.h.b16 %v673
    %v968 = vunpack.c.l.b16 %v674
    %v969 = vunpack.c.h.b16 %v674
    %v970 = vunpack.c.l.b16 %v675
    %v971 = vunpack.c.h.b16 %v675
    %v972 = vunpack.c.l.b16 %v676
    %v973 = vunpack.c.h.b16 %v676
    %v974 = vunpack.c.l.b16 %v677
    %v975 = vunpack.c.h.b16 %v677
    %v976 = vunpack.c.l.b16 %v678
    %v977 = vunpack.c.h.b16 %v678
    %v978 = vunpack.c.l.b16 %v679
    %v979 = vunpack.c.h.b16 %v679
    %v980 = vunpack.c.l.b16 %v680
    %v981 = vunpack.c.h.b16 %v680
    %v982 = vunpack.c.l.b16 %v681
    %v983 = vunpack.c.h.b16 %v681
    %v984 = vunpack.c.l.b16 %v682
    %v985 = vunpack.c.h.b16 %v682
    %v986 = vunpack.c.l.b16 %v683
    %v987 = vunpack.c.h.b16 %v683
    %v988 = vunpack.c.l.b16 %v684
    %v989 = vunpack.c.h.b16 %v684
    %v990 = vpack.c.b16 %v928, %v926
    %v991 = vpack.c.b16 %v929, %v927
    %v992 = vpack.c.b16 %v932, %v930
    %v993 = vpack.c.b16 %v933, %v931
    %v994 = vpack.c.b16 %v936, %v934
    %v995 = vpack.c.b16 %v937, %v935
    %v996 = vpack.c.b16 %v940, %v938
    %v997 = vpack.c.b16 %v941, %v939
    %v998 = vpack.c.b16 %v944, %v942
    %v999 = vpack.c.b16 %v945, %v943
    %v1000 = vpack.c.b16 %v948, %v946
    %v1001 = vpack.c.b16 %v949, %v947
    %v1002 = vpack.c.b16 %v952, %v950
    %v1003 = vpack.c.b16 %v953, %v951
    %v1004 = vpack.c.b16 %v956, %v954
    %v1005 = vpack.c.b16 %v957, %v955
    %v1006 = vpack.c.b16 %v960, %v958
    %v1007 = vpack.c.b16 %v961, %v959
    %v1008 = vpack.c.b16 %v964, %v962
    %v1009 = vpack.c.b16 %v965, %v963
    %v1010 = vpack.c.b16 %v968, %v966
    %v1011 = vpack.c.b16 %v969, %v967
    %v1012 = vpack.c.b16 %v972, %v970
    %v1013 = vpack.c.b16 %v973, %v971
    %v1014 = vpack.c.b16 %v976, %v974
    %v1015 = vpack.c.b16 %v977, %v975
    %v1016 = vpack.c.b16 %v980, %v978
    %v1017 = vpack.c.b16 %v981, %v979
    %v1018 = vpack.c.b16 %v984, %v982
    %v1019 = vpack.c.b16 %v985, %v983
    %v1020 = vpack.c.b16 %v988, %v986
    %v1021 = vpack.c.b16 %v989, %v987
    %1070 = vrot.lane.b32.xlu0 %v878, 64
    %v1071 = vpop.permute.xlu0 %1070
    %1072 = vrot.lane.b32.xlu0 %v879, 64
    %v1073 = vpop.permute.xlu0 %1072
    %1074 = vrot.lane.b32.xlu0 %v880, 64
    %v1075 = vpop.permute.xlu0 %1074
    %1076 = vrot.lane.b32.xlu0 %v881, 64
    %v1077 = vpop.permute.xlu0 %1076
    %1078 = vrot.lane.b32.xlu0 %v882, 64
    %v1079 = vpop.permute.xlu0 %1078
    %1080 = vrot.lane.b32.xlu0 %v883, 64
    %v1081 = vpop.permute.xlu0 %1080
    %1082 = vrot.lane.b32.xlu0 %v884, 64
    %v1083 = vpop.permute.xlu0 %1082
    %1084 = vrot.lane.b32.xlu0 %v885, 64
    %v1085 = vpop.permute.xlu0 %1084
    %1086 = vrot.lane.b32.xlu0 %v886, 64
    %v1087 = vpop.permute.xlu0 %1086
    %1088 = vrot.lane.b32.xlu0 %v887, 64
    %v1089 = vpop.permute.xlu0 %1088
    %1090 = vrot.lane.b32.xlu0 %v888, 64
    %v1091 = vpop.permute.xlu0 %1090
    %1092 = vrot.lane.b32.xlu0 %v889, 64
    %v1093 = vpop.permute.xlu0 %1092
    %1094 = vrot.lane.b32.xlu0 %v890, 64
    %v1095 = vpop.permute.xlu0 %1094
    %1096 = vrot.lane.b32.xlu0 %v891, 64
    %v1097 = vpop.permute.xlu0 %1096
    %1098 = vrot.lane.b32.xlu0 %v892, 64
    %v1099 = vpop.permute.xlu0 %1098
    %1100 = vrot.lane.b32.xlu0 %v893, 64
    %v1101 = vpop.permute.xlu0 %1100
    %1118 = vmatprep.subr.bf16.mxu0 0
    %1119 = vmatpush1.bf16.msra.mxu0 %v1071
    %1120 = vmatprep.subr.bf16.mxu0 0
    %1121 = vmatpush1.bf16.msra.mxu0 %v1073
    %1122 = vmatprep.subr.bf16.mxu0 0
    %1123 = vmatpush1.bf16.msra.mxu0 %v1075
    %1124 = vmatprep.subr.bf16.mxu0 0
    %1125 = vmatpush1.bf16.msra.mxu0 %v1077
    %1126 = vmatprep.subr.bf16.mxu0 0
    %1127 = vmatpush1.bf16.msra.mxu0 %v1079
    %1128 = vmatprep.subr.bf16.mxu0 0
    %1129 = vmatpush1.bf16.msra.mxu0 %v1081
    %1130 = vmatprep.subr.bf16.mxu0 0
    %1131 = vmatpush1.bf16.msra.mxu0 %v1083
    %1132 = vmatprep.subr.bf16.mxu0 0
    %1133 = vmatpush1.bf16.msra.mxu0 %v1085
    %1134 = vmatprep.subr.bf16.mxu0 0
    %1135 = vmatpush1.bf16.msra.mxu0 %v1087
    %1136 = vmatprep.subr.bf16.mxu0 0
    %1137 = vmatpush1.bf16.msra.mxu0 %v1089
    %1138 = vmatprep.subr.bf16.mxu0 0
    %1139 = vmatpush1.bf16.msra.mxu0 %v1091
    %1140 = vmatprep.subr.bf16.mxu0 0
    %1141 = vmatpush1.bf16.msra.mxu0 %v1093
    %1142 = vmatprep.subr.bf16.mxu0 0
    %1143 = vmatpush1.bf16.msra.mxu0 %v1095
    %1144 = vmatprep.subr.bf16.mxu0 0
    %1145 = vmatpush1.bf16.msra.mxu0 %v1097
    %1146 = vmatprep.subr.bf16.mxu0 0
    %1147 = vmatpush1.bf16.msra.mxu0 %v1099
    %1148 = vmatprep.subr.bf16.mxu0 0
    %1149 = vmatpush1.bf16.msra.mxu0 %v1101
    %1150 = vmatprep.mubr.bf16.mxu0 %v991
    %1151 = vmatmul.mubr.bf16.gmra.mrb[0].mxu0 %v990
    %v1152 = vpop.f32.mrb[0].mxu0
    %v1153 = vadd.f32 0.0, %v1152
    %v1154 = vpop.f32.mrb[0].mxu0
    %v1155 = vpop.f32.mrb[0].mxu0
    %v1156 = vadd.f32 0.0, %v1155
    %v1157 = vpop.f32.mrb[0].mxu0
    %1158 = vmatprep.mubr.bf16.mxu0 %v993
    %1159 = vmatmul.mubr.bf16.gmra.mrb[0].mxu0 %v992
    %v1160 = vpop.f32.mrb[0].mxu0
    %v1161 = vadd.f32 0.0, %v1160
    %v1162 = vpop.f32.mrb[0].mxu0
    %v1163 = vpop.f32.mrb[0].mxu0
    %v1164 = vadd.f32 0.0, %v1163
    %v1165 = vpop.f32.mrb[0].mxu0
    %1166 = vmatprep.mubr.bf16.mxu0 %v995
    %1167 = vmatmul.mubr.bf16.gmra.mrb[0].mxu0 %v994
    %v1168 = vpop.f32.mrb[0].mxu0
    %v1169 = vadd.f32 0.0, %v1168
    %v1170 = vpop.f32.mrb[0].mxu0
    %v1171 = vpop.f32.mrb[0].mxu0
    %v1172 = vadd.f32 0.0, %v1171
    %v1173 = vpop.f32.mrb[0].mxu0
    %1174 = vmatprep.mubr.bf16.mxu0 %v997
    %1175 = vmatmul.mubr.bf16.gmra.mrb[0].mxu0 %v996
    %v1176 = vpop.f32.mrb[0].mxu0
    %v1177 = vadd.f32 0.0, %v1176
    %v1178 = vpop.f32.mrb[0].mxu0
    %v1179 = vpop.f32.mrb[0].mxu0
    %v1180 = vadd.f32 0.0, %v1179
    %v1181 = vpop.f32.mrb[0].mxu0
    %1182 = vmatprep.mubr.bf16.mxu0 %v999
    %1183 = vmatmul.mubr.bf16.gmra.mrb[0].mxu0 %v998
    %v1184 = vpop.f32.mrb[0].mxu0
    %v1185 = vadd.f32 0.0, %v1184
    %v1186 = vpop.f32.mrb[0].mxu0
    %v1187 = vpop.f32.mrb[0].mxu0
    %v1188 = vadd.f32 0.0, %v1187
    %v1189 = vpop.f32.mrb[0].mxu0
    %1190 = vmatprep.mubr.bf16.mxu0 %v1001
    %1191 = vmatmul.mubr.bf16.gmra.mrb[0].mxu0 %v1000
    %v1192 = vpop.f32.mrb[0].mxu0
    %v1193 = vadd.f32 0.0, %v1192
    %v1194 = vpop.f32.mrb[0].mxu0
    %v1195 = vpop.f32.mrb[0].mxu0
    %v1196 = vadd.f32 0.0, %v1195
    %v1197 = vpop.f32.mrb[0].mxu0
    %1198 = vmatprep.mubr.bf16.mxu0 %v1003
    %1199 = vmatmul.mubr.bf16.gmra.mrb[0].mxu0 %v1002
    %v1200 = vpop.f32.mrb[0].mxu0
    %v1201 = vadd.f32 0.0, %v1200
    %v1202 = vpop.f32.mrb[0].mxu0
    %v1203 = vpop.f32.mrb[0].mxu0
    %v1204 = vadd.f32 0.0, %v1203
    %v1205 = vpop.f32.mrb[0].mxu0
    %1206 = vmatprep.mubr.bf16.mxu0 %v1005
    %1207 = vmatmul.mubr.bf16.gmra.mrb[0].mxu0 %v1004
    %v1208 = vpop.f32.mrb[0].mxu0
    %v1209 = vadd.f32 0.0, %v1208
    %v1210 = vpop.f32.mrb[0].mxu0
    %v1211 = vpop.f32.mrb[0].mxu0
    %v1212 = vadd.f32 0.0, %v1211
    %v1213 = vpop.f32.mrb[0].mxu0
    %1214 = vmatprep.mubr.bf16.mxu0 %v1007
    %1215 = vmatmul.mubr.bf16.gmra.mrb[0].mxu0 %v1006
    %v1216 = vpop.f32.mrb[0].mxu0
    %v1217 = vadd.f32 0.0, %v1216
    %v1218 = vpop.f32.mrb[0].mxu0
    %v1219 = vpop.f32.mrb[0].mxu0
    %v1220 = vadd.f32 0.0, %v1219
    %v1221 = vpop.f32.mrb[0].mxu0
    %1222 = vmatprep.mubr.bf16.mxu0 %v1009
    %1223 = vmatmul.mubr.bf16.gmra.mrb[0].mxu0 %v1008
    %v1224 = vpop.f32.mrb[0].mxu0
    %v1225 = vadd.f32 0.0, %v1224
    %v1226 = vpop.f32.mrb[0].mxu0
    %v1227 = vpop.f32.mrb[0].mxu0
    %v1228 = vadd.f32 0.0, %v1227
    %v1229 = vpop.f32.mrb[0].mxu0
    %1230 = vmatprep.mubr.bf16.mxu0 %v1011
    %1231 = vmatmul.mubr.bf16.gmra.mrb[0].mxu0 %v1010
    %v1232 = vpop.f32.mrb[0].mxu0
    %v1233 = vadd.f32 0.0, %v1232
    %v1234 = vpop.f32.mrb[0].mxu0
    %v1235 = vpop.f32.mrb[0].mxu0
    %v1236 = vadd.f32 0.0, %v1235
    %v1237 = vpop.f32.mrb[0].mxu0
    %1238 = vmatprep.mubr.bf16.mxu0 %v1013
    %1239 = vmatmul.mubr.bf16.gmra.mrb[0].mxu0 %v1012
    %v1240 = vpop.f32.mrb[0].mxu0
    %v1241 = vadd.f32 0.0, %v1240
    %v1242 = vpop.f32.mrb[0].mxu0
    %v1243 = vpop.f32.mrb[0].mxu0
    %v1244 = vadd.f32 0.0, %v1243
    %v1245 = vpop.f32.mrb[0].mxu0
    %1246 = vmatprep.mubr.bf16.mxu0 %v1015
    %1247 = vmatmul.mubr.bf16.gmra.mrb[0].mxu0 %v1014
    %v1248 = vpop.f32.mrb[0].mxu0
    %v1249 = vadd.f32 0.0, %v1248
    %v1250 = vpop.f32.mrb[0].mxu0
    %v1251 = vpop.f32.mrb[0].mxu0
    %v1252 = vadd.f32 0.0, %v1251
    %v1253 = vpop.f32.mrb[0].mxu0
    %1254 = vmatprep.mubr.bf16.mxu0 %v1017
    %1255 = vmatmul.mubr.bf16.gmra.mrb[0].mxu0 %v1016
    %v1256 = vpop.f32.mrb[0].mxu0
    %v1257 = vadd.f32 0.0, %v1256
    %v1258 = vpop.f32.mrb[0].mxu0
    %v1259 = vpop.f32.mrb[0].mxu0
    %v1260 = vadd.f32 0.0, %v1259
    %v1261 = vpop.f32.mrb[0].mxu0
    %1262 = vmatprep.mubr.bf16.mxu0 %v1019
    %1263 = vmatmul.mubr.bf16.gmra.mrb[0].mxu0 %v1018
    %v1264 = vpop.f32.mrb[0].mxu0
    %v1265 = vadd.f32 0.0, %v1264
    %v1266 = vpop.f32.mrb[0].mxu0
    %v1267 = vpop.f32.mrb[0].mxu0
    %v1268 = vadd.f32 0.0, %v1267
    %v1269 = vpop.f32.mrb[0].mxu0
    %1270 = vmatprep.mubr.bf16.mxu0 %v1021
    %1271 = vmatmul.mubr.bf16.gmra.mrb[0].mxu0 %v1020
    %v1272 = vpop.f32.mrb[0].mxu0
    %v1273 = vadd.f32 0.0, %v1272
    %v1274 = vpop.f32.mrb[0].mxu0
    %v1275 = vpop.f32.mrb[0].mxu0
    %v1276 = vadd.f32 0.0, %v1275
    %v1277 = vpop.f32.mrb[0].mxu0
    %1278 = vdwg.mxu0
    %v1279 = vadd.f32 %v752, %v1153
    %v1280 = vadd.f32 %v755, %v1156
    %v1281 = vadd.f32 %v760, %v1161
    %v1282 = vadd.f32 %v763, %v1164
    %v1283 = vadd.f32 %v768, %v1169
    %v1284 = vadd.f32 %v771, %v1172
    %v1285 = vadd.f32 %v776, %v1177
    %v1286 = vadd.f32 %v779, %v1180
    %v1287 = vadd.f32 %v784, %v1185
    %v1288 = vadd.f32 %v787, %v1188
    %v1289 = vadd.f32 %v792, %v1193
    %v1290 = vadd.f32 %v795, %v1196
    %v1291 = vadd.f32 %v800, %v1201
    %v1292 = vadd.f32 %v803, %v1204
    %v1293 = vadd.f32 %v808, %v1209
    %v1294 = vadd.f32 %v811, %v1212
    %v1295 = vadd.f32 %v816, %v1217
    %v1296 = vadd.f32 %v819, %v1220
    %v1297 = vadd.f32 %v824, %v1225
    %v1298 = vadd.f32 %v827, %v1228
    %v1299 = vadd.f32 %v832, %v1233
    %v1300 = vadd.f32 %v835, %v1236
    %v1301 = vadd.f32 %v840, %v1241
    %v1302 = vadd.f32 %v843, %v1244
    %v1303 = vadd.f32 %v848, %v1249
    %v1304 = vadd.f32 %v851, %v1252
    %v1305 = vadd.f32 %v856, %v1257
    %v1306 = vadd.f32 %v859, %v1260
    %v1307 = vadd.f32 %v864, %v1265
    %v1308 = vadd.f32 %v867, %v1268
    %v1309 = vadd.f32 %v872, %v1273
    %v1310 = vadd.f32 %v875, %v1276
    %v1311 = vld [vmem:[%s7] sm:$0x1]
    %v1313 = vlaneseq
    %v1314 = vshrl.u32 %v1313, 7
    %v1315 = vsub.s32 0, %v1314
    %v1316 = vrot.slane %v1311, %v1315
    %v1318 = vadd.f32 %v1279, %v1316
    %v1319 = vadd.f32 %v1280, %v1316
    %v1320 = vadd.f32 %v1281, %v1316
    %v1321 = vadd.f32 %v1282, %v1316
    %v1322 = vadd.f32 %v1283, %v1316
    %v1323 = vadd.f32 %v1284, %v1316
    %v1324 = vadd.f32 %v1285, %v1316
    %v1325 = vadd.f32 %v1286, %v1316
    %v1326 = vadd.f32 %v1287, %v1316
    %v1327 = vadd.f32 %v1288, %v1316
    %v1328 = vadd.f32 %v1289, %v1316
    %v1329 = vadd.f32 %v1290, %v1316
    %v1330 = vadd.f32 %v1291, %v1316
    %v1331 = vadd.f32 %v1292, %v1316
    %v1332 = vadd.f32 %v1293, %v1316
    %v1333 = vadd.f32 %v1294, %v1316
    %v1334 = vadd.f32 %v1295, %v1316
    %v1335 = vadd.f32 %v1296, %v1316
    %v1336 = vadd.f32 %v1297, %v1316
    %v1337 = vadd.f32 %v1298, %v1316
    %v1338 = vadd.f32 %v1299, %v1316
    %v1339 = vadd.f32 %v1300, %v1316
    %v1340 = vadd.f32 %v1301, %v1316
    %v1341 = vadd.f32 %v1302, %v1316
    %v1342 = vadd.f32 %v1303, %v1316
    %v1343 = vadd.f32 %v1304, %v1316
    %v1344 = vadd.f32 %v1305, %v1316
    %v1345 = vadd.f32 %v1306, %v1316
    %v1346 = vadd.f32 %v1307, %v1316
    %v1347 = vadd.f32 %v1308, %v1316
    %v1348 = vadd.f32 %v1309, %v1316
    %v1349 = vadd.f32 %v1310, %v1316
    %v1350 = vsel %vm441, %v1318, 0.0
    %1351 = vadd.xlane.f32.xlu0 %v1350
    %v1352 = vpop.xlane.xlu0 %1351
    %v1353 = vsel %vm441, %v1319, 0.0
    %1354 = vadd.xlane.f32.xlu0 %v1353
    %v1355 = vpop.xlane.xlu0 %1354
    %v1356 = vsel %vm441, %v1320, 0.0
    %1357 = vadd.xlane.f32.xlu0 %v1356
    %v1358 = vpop.xlane.xlu0 %1357
    %v1359 = vsel %vm441, %v1321, 0.0
    %1360 = vadd.xlane.f32.xlu0 %v1359
    %v1361 = vpop.xlane.xlu0 %1360
    %v1362 = vsel %vm441, %v1322, 0.0
    %1363 = vadd.xlane.f32.xlu0 %v1362
    %v1364 = vpop.xlane.xlu0 %1363
    %v1365 = vsel %vm441, %v1323, 0.0
    %1366 = vadd.xlane.f32.xlu0 %v1365
    %v1367 = vpop.xlane.xlu0 %1366
    %v1368 = vsel %vm441, %v1324, 0.0
    %1369 = vadd.xlane.f32.xlu0 %v1368
    %v1370 = vpop.xlane.xlu0 %1369
    %v1371 = vsel %vm441, %v1325, 0.0
    %1372 = vadd.xlane.f32.xlu0 %v1371
    %v1373 = vpop.xlane.xlu0 %1372
    %v1374 = vsel %vm441, %v1326, 0.0
    %1375 = vadd.xlane.f32.xlu0 %v1374
    %v1376 = vpop.xlane.xlu0 %1375
    %v1377 = vsel %vm441, %v1327, 0.0
    %1378 = vadd.xlane.f32.xlu0 %v1377
    %v1379 = vpop.xlane.xlu0 %1378
    %v1380 = vsel %vm441, %v1328, 0.0
    %1381 = vadd.xlane.f32.xlu0 %v1380
    %v1382 = vpop.xlane.xlu0 %1381
    %v1383 = vsel %vm441, %v1329, 0.0
    %1384 = vadd.xlane.f32.xlu0 %v1383
    %v1385 = vpop.xlane.xlu0 %1384
    %v1386 = vsel %vm441, %v1330, 0.0
    %1387 = vadd.xlane.f32.xlu0 %v1386
    %v1388 = vpop.xlane.xlu0 %1387
    %v1389 = vsel %vm441, %v1331, 0.0
    %1390 = vadd.xlane.f32.xlu0 %v1389
    %v1391 = vpop.xlane.xlu0 %1390
    %v1392 = vsel %vm441, %v1332, 0.0
    %1393 = vadd.xlane.f32.xlu0 %v1392
    %v1394 = vpop.xlane.xlu0 %1393
    %v1395 = vsel %vm441, %v1333, 0.0
    %1396 = vadd.xlane.f32.xlu0 %v1395
    %v1397 = vpop.xlane.xlu0 %1396
    %v1398 = vsel %vm441, %v1334, 0.0
    %1399 = vadd.xlane.f32.xlu0 %v1398
    %v1400 = vpop.xlane.xlu0 %1399
    %v1401 = vsel %vm441, %v1335, 0.0
    %1402 = vadd.xlane.f32.xlu0 %v1401
    %v1403 = vpop.xlane.xlu0 %1402
    %v1404 = vsel %vm441, %v1336, 0.0
    %1405 = vadd.xlane.f32.xlu0 %v1404
    %v1406 = vpop.xlane.xlu0 %1405
    %v1407 = vsel %vm441, %v1337, 0.0
    %1408 = vadd.xlane.f32.xlu0 %v1407
    %v1409 = vpop.xlane.xlu0 %1408
    %v1410 = vsel %vm441, %v1338, 0.0
    %1411 = vadd.xlane.f32.xlu0 %v1410
    %v1412 = vpop.xlane.xlu0 %1411
    %v1413 = vsel %vm441, %v1339, 0.0
    %1414 = vadd.xlane.f32.xlu0 %v1413
    %v1415 = vpop.xlane.xlu0 %1414
    %v1416 = vsel %vm441, %v1340, 0.0
    %1417 = vadd.xlane.f32.xlu0 %v1416
    %v1418 = vpop.xlane.xlu0 %1417
    %v1419 = vsel %vm441, %v1341, 0.0
    %1420 = vadd.xlane.f32.xlu0 %v1419
    %v1421 = vpop.xlane.xlu0 %1420
    %v1422 = vsel %vm441, %v1342, 0.0
    %1423 = vadd.xlane.f32.xlu0 %v1422
    %v1424 = vpop.xlane.xlu0 %1423
    %v1425 = vsel %vm441, %v1343, 0.0
    %1426 = vadd.xlane.f32.xlu0 %v1425
    %v1427 = vpop.xlane.xlu0 %1426
    %v1428 = vsel %vm441, %v1344, 0.0
    %1429 = vadd.xlane.f32.xlu0 %v1428
    %v1430 = vpop.xlane.xlu0 %1429
    %v1431 = vsel %vm441, %v1345, 0.0
    %1432 = vadd.xlane.f32.xlu0 %v1431
    %v1433 = vpop.xlane.xlu0 %1432
    %v1434 = vsel %vm441, %v1346, 0.0
    %1435 = vadd.xlane.f32.xlu0 %v1434
    %v1436 = vpop.xlane.xlu0 %1435
    %v1437 = vsel %vm441, %v1347, 0.0
    %1438 = vadd.xlane.f32.xlu0 %v1437
    %v1439 = vpop.xlane.xlu0 %1438
    %v1440 = vsel %vm441, %v1348, 0.0
    %1441 = vadd.xlane.f32.xlu0 %v1440
    %v1442 = vpop.xlane.xlu0 %1441
    %v1443 = vsel %vm441, %v1349, 0.0
    %1444 = vadd.xlane.f32.xlu0 %v1443
    %v1445 = vpop.xlane.xlu0 %1444
    %v1446 = vrcp.pop 64.0
    %v1447 = vmul.f32 %v1352, %v1446
    %v1448 = vmul.f32 %v1355, %v1446
    %v1449 = vmul.f32 %v1358, %v1446
    %v1450 = vmul.f32 %v1361, %v1446
    %v1451 = vmul.f32 %v1364, %v1446
    %v1452 = vmul.f32 %v1367, %v1446
    %v1453 = vmul.f32 %v1370, %v1446
    %v1454 = vmul.f32 %v1373, %v1446
    %v1455 = vmul.f32 %v1376, %v1446
    %v1456 = vmul.f32 %v1379, %v1446
    %v1457 = vmul.f32 %v1382, %v1446
    %v1458 = vmul.f32 %v1385, %v1446
    %v1459 = vmul.f32 %v1388, %v1446
    %v1460 = vmul.f32 %v1391, %v1446
    %v1461 = vmul.f32 %v1394, %v1446
    %v1462 = vmul.f32 %v1397, %v1446
    %v1463 = vmul.f32 %v1400, %v1446
    %v1464 = vmul.f32 %v1403, %v1446
    %v1465 = vmul.f32 %v1406, %v1446
    %v1466 = vmul.f32 %v1409, %v1446
    %v1467 = vmul.f32 %v1412, %v1446
    %v1468 = vmul.f32 %v1415, %v1446
    %v1469 = vmul.f32 %v1418, %v1446
    %v1470 = vmul.f32 %v1421, %v1446
    %v1471 = vmul.f32 %v1424, %v1446
    %v1472 = vmul.f32 %v1427, %v1446
    %v1473 = vmul.f32 %v1430, %v1446
    %v1474 = vmul.f32 %v1433, %v1446
    %v1475 = vmul.f32 %v1436, %v1446
    %v1476 = vmul.f32 %v1439, %v1446
    %v1477 = vmul.f32 %v1442, %v1446
    %v1478 = vmul.f32 %v1445, %v1446
    %v1479 = vsub.f32 %v1318, %v1447
    %v1480 = vsub.f32 %v1319, %v1448
    %v1481 = vsub.f32 %v1320, %v1449
    %v1482 = vsub.f32 %v1321, %v1450
    %v1483 = vsub.f32 %v1322, %v1451
    %v1484 = vsub.f32 %v1323, %v1452
    %v1485 = vsub.f32 %v1324, %v1453
    %v1486 = vsub.f32 %v1325, %v1454
    %v1487 = vsub.f32 %v1326, %v1455
    %v1488 = vsub.f32 %v1327, %v1456
    %v1489 = vsub.f32 %v1328, %v1457
    %v1490 = vsub.f32 %v1329, %v1458
    %v1491 = vsub.f32 %v1330, %v1459
    %v1492 = vsub.f32 %v1331, %v1460
    %v1493 = vsub.f32 %v1332, %v1461
    %v1494 = vsub.f32 %v1333, %v1462
    %v1495 = vsub.f32 %v1334, %v1463
    %v1496 = vsub.f32 %v1335, %v1464
    %v1497 = vsub.f32 %v1336, %v1465
    %v1498 = vsub.f32 %v1337, %v1466
    %v1499 = vsub.f32 %v1338, %v1467
    %v1500 = vsub.f32 %v1339, %v1468
    %v1501 = vsub.f32 %v1340, %v1469
    %v1502 = vsub.f32 %v1341, %v1470
    %v1503 = vsub.f32 %v1342, %v1471
    %v1504 = vsub.f32 %v1343, %v1472
    %v1505 = vsub.f32 %v1344, %v1473
    %v1506 = vsub.f32 %v1345, %v1474
    %v1507 = vsub.f32 %v1346, %v1475
    %v1508 = vsub.f32 %v1347, %v1476
    %v1509 = vsub.f32 %v1348, %v1477
    %v1510 = vsub.f32 %v1349, %v1478
    %v1511 = vmul.f32 %v1479, %v1479
    %v1512 = vmul.f32 %v1480, %v1480
    %v1513 = vmul.f32 %v1481, %v1481
    %v1514 = vmul.f32 %v1482, %v1482
    %v1515 = vmul.f32 %v1483, %v1483
    %v1516 = vmul.f32 %v1484, %v1484
    %v1517 = vmul.f32 %v1485, %v1485
    %v1518 = vmul.f32 %v1486, %v1486
    %v1519 = vmul.f32 %v1487, %v1487
    %v1520 = vmul.f32 %v1488, %v1488
    %v1521 = vmul.f32 %v1489, %v1489
    %v1522 = vmul.f32 %v1490, %v1490
    %v1523 = vmul.f32 %v1491, %v1491
    %v1524 = vmul.f32 %v1492, %v1492
    %v1525 = vmul.f32 %v1493, %v1493
    %v1526 = vmul.f32 %v1494, %v1494
    %v1527 = vmul.f32 %v1495, %v1495
    %v1528 = vmul.f32 %v1496, %v1496
    %v1529 = vmul.f32 %v1497, %v1497
    %v1530 = vmul.f32 %v1498, %v1498
    %v1531 = vmul.f32 %v1499, %v1499
    %v1532 = vmul.f32 %v1500, %v1500
    %v1533 = vmul.f32 %v1501, %v1501
    %v1534 = vmul.f32 %v1502, %v1502
    %v1535 = vmul.f32 %v1503, %v1503
    %v1536 = vmul.f32 %v1504, %v1504
    %v1537 = vmul.f32 %v1505, %v1505
    %v1538 = vmul.f32 %v1506, %v1506
    %v1539 = vmul.f32 %v1507, %v1507
    %v1540 = vmul.f32 %v1508, %v1508
    %v1541 = vmul.f32 %v1509, %v1509
    %v1542 = vmul.f32 %v1510, %v1510
    %v1543 = vsel %vm441, %v1511, 0.0
    %1544 = vadd.xlane.f32.xlu0 %v1543
    %v1545 = vpop.xlane.xlu0 %1544
    %v1546 = vsel %vm441, %v1512, 0.0
    %1547 = vadd.xlane.f32.xlu0 %v1546
    %v1548 = vpop.xlane.xlu0 %1547
    %v1549 = vsel %vm441, %v1513, 0.0
    %1550 = vadd.xlane.f32.xlu0 %v1549
    %v1551 = vpop.xlane.xlu0 %1550
    %v1552 = vsel %vm441, %v1514, 0.0
    %1553 = vadd.xlane.f32.xlu0 %v1552
    %v1554 = vpop.xlane.xlu0 %1553
    %v1555 = vsel %vm441, %v1515, 0.0
    %1556 = vadd.xlane.f32.xlu0 %v1555
    %v1557 = vpop.xlane.xlu0 %1556
    %v1558 = vsel %vm441, %v1516, 0.0
    %1559 = vadd.xlane.f32.xlu0 %v1558
    %v1560 = vpop.xlane.xlu0 %1559
    %v1561 = vsel %vm441, %v1517, 0.0
    %1562 = vadd.xlane.f32.xlu0 %v1561
    %v1563 = vpop.xlane.xlu0 %1562
    %v1564 = vsel %vm441, %v1518, 0.0
    %1565 = vadd.xlane.f32.xlu0 %v1564
    %v1566 = vpop.xlane.xlu0 %1565
    %v1567 = vsel %vm441, %v1519, 0.0
    %1568 = vadd.xlane.f32.xlu0 %v1567
    %v1569 = vpop.xlane.xlu0 %1568
    %v1570 = vsel %vm441, %v1520, 0.0
    %1571 = vadd.xlane.f32.xlu0 %v1570
    %v1572 = vpop.xlane.xlu0 %1571
    %v1573 = vsel %vm441, %v1521, 0.0
    %1574 = vadd.xlane.f32.xlu0 %v1573
    %v1575 = vpop.xlane.xlu0 %1574
    %v1576 = vsel %vm441, %v1522, 0.0
    %1577 = vadd.xlane.f32.xlu0 %v1576
    %v1578 = vpop.xlane.xlu0 %1577
    %v1579 = vsel %vm441, %v1523, 0.0
    %1580 = vadd.xlane.f32.xlu0 %v1579
    %v1581 = vpop.xlane.xlu0 %1580
    %v1582 = vsel %vm441, %v1524, 0.0
    %1583 = vadd.xlane.f32.xlu0 %v1582
    %v1584 = vpop.xlane.xlu0 %1583
    %v1585 = vsel %vm441, %v1525, 0.0
    %1586 = vadd.xlane.f32.xlu0 %v1585
    %v1587 = vpop.xlane.xlu0 %1586
    %v1588 = vsel %vm441, %v1526, 0.0
    %1589 = vadd.xlane.f32.xlu0 %v1588
    %v1590 = vpop.xlane.xlu0 %1589
    %v1591 = vsel %vm441, %v1527, 0.0
    %1592 = vadd.xlane.f32.xlu0 %v1591
    %v1593 = vpop.xlane.xlu0 %1592
    %v1594 = vsel %vm441, %v1528, 0.0
    %1595 = vadd.xlane.f32.xlu0 %v1594
    %v1596 = vpop.xlane.xlu0 %1595
    %v1597 = vsel %vm441, %v1529, 0.0
    %1598 = vadd.xlane.f32.xlu0 %v1597
    %v1599 = vpop.xlane.xlu0 %1598
    %v1600 = vsel %vm441, %v1530, 0.0
    %1601 = vadd.xlane.f32.xlu0 %v1600
    %v1602 = vpop.xlane.xlu0 %1601
    %v1603 = vsel %vm441, %v1531, 0.0
    %1604 = vadd.xlane.f32.xlu0 %v1603
    %v1605 = vpop.xlane.xlu0 %1604
    %v1606 = vsel %vm441, %v1532, 0.0
    %1607 = vadd.xlane.f32.xlu0 %v1606
    %v1608 = vpop.xlane.xlu0 %1607
    %v1609 = vsel %vm441, %v1533, 0.0
    %1610 = vadd.xlane.f32.xlu0 %v1609
    %v1611 = vpop.xlane.xlu0 %1610
    %v1612 = vsel %vm441, %v1534, 0.0
    %1613 = vadd.xlane.f32.xlu0 %v1612
    %v1614 = vpop.xlane.xlu0 %1613
    %v1615 = vsel %vm441, %v1535, 0.0
    %1616 = vadd.xlane.f32.xlu0 %v1615
    %v1617 = vpop.xlane.xlu0 %1616
    %v1618 = vsel %vm441, %v1536, 0.0
    %1619 = vadd.xlane.f32.xlu0 %v1618
    %v1620 = vpop.xlane.xlu0 %1619
    %v1621 = vsel %vm441, %v1537, 0.0
    %1622 = vadd.xlane.f32.xlu0 %v1621
    %v1623 = vpop.xlane.xlu0 %1622
    %v1624 = vsel %vm441, %v1538, 0.0
    %1625 = vadd.xlane.f32.xlu0 %v1624
    %v1626 = vpop.xlane.xlu0 %1625
    %v1627 = vsel %vm441, %v1539, 0.0
    %1628 = vadd.xlane.f32.xlu0 %v1627
    %v1629 = vpop.xlane.xlu0 %1628
    %v1630 = vsel %vm441, %v1540, 0.0
    %1631 = vadd.xlane.f32.xlu0 %v1630
    %v1632 = vpop.xlane.xlu0 %1631
    %v1633 = vsel %vm441, %v1541, 0.0
    %1634 = vadd.xlane.f32.xlu0 %v1633
    %v1635 = vpop.xlane.xlu0 %1634
    %v1636 = vsel %vm441, %v1542, 0.0
    %1637 = vadd.xlane.f32.xlu0 %v1636
    %v1638 = vpop.xlane.xlu0 %1637
    %v1639 = vmul.f32 %v1545, %v1446
    %v1640 = vmul.f32 %v1548, %v1446
    %v1641 = vmul.f32 %v1551, %v1446
    %v1642 = vmul.f32 %v1554, %v1446
    %v1643 = vmul.f32 %v1557, %v1446
    %v1644 = vmul.f32 %v1560, %v1446
    %v1645 = vmul.f32 %v1563, %v1446
    %v1646 = vmul.f32 %v1566, %v1446
    %v1647 = vmul.f32 %v1569, %v1446
    %v1648 = vmul.f32 %v1572, %v1446
    %v1649 = vmul.f32 %v1575, %v1446
    %v1650 = vmul.f32 %v1578, %v1446
    %v1651 = vmul.f32 %v1581, %v1446
    %v1652 = vmul.f32 %v1584, %v1446
    %v1653 = vmul.f32 %v1587, %v1446
    %v1654 = vmul.f32 %v1590, %v1446
    %v1655 = vmul.f32 %v1593, %v1446
    %v1656 = vmul.f32 %v1596, %v1446
    %v1657 = vmul.f32 %v1599, %v1446
    %v1658 = vmul.f32 %v1602, %v1446
    %v1659 = vmul.f32 %v1605, %v1446
    %v1660 = vmul.f32 %v1608, %v1446
    %v1661 = vmul.f32 %v1611, %v1446
    %v1662 = vmul.f32 %v1614, %v1446
    %v1663 = vmul.f32 %v1617, %v1446
    %v1664 = vmul.f32 %v1620, %v1446
    %v1665 = vmul.f32 %v1623, %v1446
    %v1666 = vmul.f32 %v1626, %v1446
    %v1667 = vmul.f32 %v1629, %v1446
    %v1668 = vmul.f32 %v1632, %v1446
    %v1669 = vmul.f32 %v1635, %v1446
    %v1670 = vmul.f32 %v1638, %v1446
    %v1671 = vadd.f32 %v1639, 1e-05
    %v1672 = vadd.f32 %v1640, 1e-05
    %v1673 = vadd.f32 %v1641, 1e-05
    %v1674 = vadd.f32 %v1642, 1e-05
    %v1675 = vadd.f32 %v1643, 1e-05
    %v1676 = vadd.f32 %v1644, 1e-05
    %v1677 = vadd.f32 %v1645, 1e-05
    %v1678 = vadd.f32 %v1646, 1e-05
    %v1679 = vadd.f32 %v1647, 1e-05
    %v1680 = vadd.f32 %v1648, 1e-05
    %v1681 = vadd.f32 %v1649, 1e-05
    %v1682 = vadd.f32 %v1650, 1e-05
    %v1683 = vadd.f32 %v1651, 1e-05
    %v1684 = vadd.f32 %v1652, 1e-05
    %v1685 = vadd.f32 %v1653, 1e-05
    %v1686 = vadd.f32 %v1654, 1e-05
    %v1687 = vadd.f32 %v1655, 1e-05
    %v1688 = vadd.f32 %v1656, 1e-05
    %v1689 = vadd.f32 %v1657, 1e-05
    %v1690 = vadd.f32 %v1658, 1e-05
    %v1691 = vadd.f32 %v1659, 1e-05
    %v1692 = vadd.f32 %v1660, 1e-05
    %v1693 = vadd.f32 %v1661, 1e-05
    %v1694 = vadd.f32 %v1662, 1e-05
    %v1695 = vadd.f32 %v1663, 1e-05
    %v1696 = vadd.f32 %v1664, 1e-05
    %v1697 = vadd.f32 %v1665, 1e-05
    %v1698 = vadd.f32 %v1666, 1e-05
    %v1699 = vadd.f32 %v1667, 1e-05
    %v1700 = vadd.f32 %v1668, 1e-05
    %v1701 = vadd.f32 %v1669, 1e-05
    %v1702 = vadd.f32 %v1670, 1e-05
    %v1703 = vrsqrt.pop %v1671
    %v1704 = vrsqrt.pop %v1672
    %v1705 = vrsqrt.pop %v1673
    %v1706 = vrsqrt.pop %v1674
    %v1707 = vrsqrt.pop %v1675
    %v1708 = vrsqrt.pop %v1676
    %v1709 = vrsqrt.pop %v1677
    %v1710 = vrsqrt.pop %v1678
    %v1711 = vrsqrt.pop %v1679
    %v1712 = vrsqrt.pop %v1680
    %v1713 = vrsqrt.pop %v1681
    %v1714 = vrsqrt.pop %v1682
    %v1715 = vrsqrt.pop %v1683
    %v1716 = vrsqrt.pop %v1684
    %v1717 = vrsqrt.pop %v1685
    %v1718 = vrsqrt.pop %v1686
    %v1719 = vrsqrt.pop %v1687
    %v1720 = vrsqrt.pop %v1688
    %v1721 = vrsqrt.pop %v1689
    %v1722 = vrsqrt.pop %v1690
    %v1723 = vrsqrt.pop %v1691
    %v1724 = vrsqrt.pop %v1692
    %v1725 = vrsqrt.pop %v1693
    %v1726 = vrsqrt.pop %v1694
    %v1727 = vrsqrt.pop %v1695
    %v1728 = vrsqrt.pop %v1696
    %v1729 = vrsqrt.pop %v1697
    %v1730 = vrsqrt.pop %v1698
    %v1731 = vrsqrt.pop %v1699
    %v1732 = vrsqrt.pop %v1700
    %v1733 = vrsqrt.pop %v1701
    %v1734 = vrsqrt.pop %v1702
    %v1735 = vmul.f32 %v1479, %v1703
    %v1736 = vmul.f32 %v1480, %v1704
    %v1737 = vmul.f32 %v1481, %v1705
    %v1738 = vmul.f32 %v1482, %v1706
    %v1739 = vmul.f32 %v1483, %v1707
    %v1740 = vmul.f32 %v1484, %v1708
    %v1741 = vmul.f32 %v1485, %v1709
    %v1742 = vmul.f32 %v1486, %v1710
    %v1743 = vmul.f32 %v1487, %v1711
    %v1744 = vmul.f32 %v1488, %v1712
    %v1745 = vmul.f32 %v1489, %v1713
    %v1746 = vmul.f32 %v1490, %v1714
    %v1747 = vmul.f32 %v1491, %v1715
    %v1748 = vmul.f32 %v1492, %v1716
    %v1749 = vmul.f32 %v1493, %v1717
    %v1750 = vmul.f32 %v1494, %v1718
    %v1751 = vmul.f32 %v1495, %v1719
    %v1752 = vmul.f32 %v1496, %v1720
    %v1753 = vmul.f32 %v1497, %v1721
    %v1754 = vmul.f32 %v1498, %v1722
    %v1755 = vmul.f32 %v1499, %v1723
    %v1756 = vmul.f32 %v1500, %v1724
    %v1757 = vmul.f32 %v1501, %v1725
    %v1758 = vmul.f32 %v1502, %v1726
    %v1759 = vmul.f32 %v1503, %v1727
    %v1760 = vmul.f32 %v1504, %v1728
    %v1761 = vmul.f32 %v1505, %v1729
    %v1762 = vmul.f32 %v1506, %v1730
    %v1763 = vmul.f32 %v1507, %v1731
    %v1764 = vmul.f32 %v1508, %v1732
    %v1765 = vmul.f32 %v1509, %v1733
    %v1766 = vmul.f32 %v1510, %v1734
    %v1768 = vlaneseq
    %v1769 = vshrl.u32 %v1768, 7
    %v1770 = vsub.s32 0, %v1769
    %v1771 = vrot.slane %v651, %v1770
    %v1773 = vmul.f32 %v1735, %v1771
    %v1774 = vmul.f32 %v1736, %v1771
    %v1775 = vmul.f32 %v1737, %v1771
    %v1776 = vmul.f32 %v1738, %v1771
    %v1777 = vmul.f32 %v1739, %v1771
    %v1778 = vmul.f32 %v1740, %v1771
    %v1779 = vmul.f32 %v1741, %v1771
    %v1780 = vmul.f32 %v1742, %v1771
    %v1781 = vmul.f32 %v1743, %v1771
    %v1782 = vmul.f32 %v1744, %v1771
    %v1783 = vmul.f32 %v1745, %v1771
    %v1784 = vmul.f32 %v1746, %v1771
    %v1785 = vmul.f32 %v1747, %v1771
    %v1786 = vmul.f32 %v1748, %v1771
    %v1787 = vmul.f32 %v1749, %v1771
    %v1788 = vmul.f32 %v1750, %v1771
    %v1789 = vmul.f32 %v1751, %v1771
    %v1790 = vmul.f32 %v1752, %v1771
    %v1791 = vmul.f32 %v1753, %v1771
    %v1792 = vmul.f32 %v1754, %v1771
    %v1793 = vmul.f32 %v1755, %v1771
    %v1794 = vmul.f32 %v1756, %v1771
    %v1795 = vmul.f32 %v1757, %v1771
    %v1796 = vmul.f32 %v1758, %v1771
    %v1797 = vmul.f32 %v1759, %v1771
    %v1798 = vmul.f32 %v1760, %v1771
    %v1799 = vmul.f32 %v1761, %v1771
    %v1800 = vmul.f32 %v1762, %v1771
    %v1801 = vmul.f32 %v1763, %v1771
    %v1802 = vmul.f32 %v1764, %v1771
    %v1803 = vmul.f32 %v1765, %v1771
    %v1804 = vmul.f32 %v1766, %v1771
    %v1806 = vlaneseq
    %v1807 = vshrl.u32 %v1806, 7
    %v1808 = vsub.s32 0, %v1807
    %v1809 = vrot.slane %v652, %v1808
    %v1811 = vadd.f32 %v1773, %v1809
    %v1812 = vadd.f32 %v1774, %v1809
    %v1813 = vadd.f32 %v1775, %v1809
    %v1814 = vadd.f32 %v1776, %v1809
    %v1815 = vadd.f32 %v1777, %v1809
    %v1816 = vadd.f32 %v1778, %v1809
    %v1817 = vadd.f32 %v1779, %v1809
    %v1818 = vadd.f32 %v1780, %v1809
    %v1819 = vadd.f32 %v1781, %v1809
    %v1820 = vadd.f32 %v1782, %v1809
    %v1821 = vadd.f32 %v1783, %v1809
    %v1822 = vadd.f32 %v1784, %v1809
    %v1823 = vadd.f32 %v1785, %v1809
    %v1824 = vadd.f32 %v1786, %v1809
    %v1825 = vadd.f32 %v1787, %v1809
    %v1826 = vadd.f32 %v1788, %v1809
    %v1827 = vadd.f32 %v1789, %v1809
    %v1828 = vadd.f32 %v1790, %v1809
    %v1829 = vadd.f32 %v1791, %v1809
    %v1830 = vadd.f32 %v1792, %v1809
    %v1831 = vadd.f32 %v1793, %v1809
    %v1832 = vadd.f32 %v1794, %v1809
    %v1833 = vadd.f32 %v1795, %v1809
    %v1834 = vadd.f32 %v1796, %v1809
    %v1835 = vadd.f32 %v1797, %v1809
    %v1836 = vadd.f32 %v1798, %v1809
    %v1837 = vadd.f32 %v1799, %v1809
    %v1838 = vadd.f32 %v1800, %v1809
    %v1839 = vadd.f32 %v1801, %v1809
    %v1840 = vadd.f32 %v1802, %v1809
    %v1841 = vadd.f32 %v1803, %v1809
    %v1842 = vadd.f32 %v1804, %v1809
    %vm1843 = vcmp.gt.f32.partialorder %v1811, 0.0
    %vm1844 = vcmp.gt.f32.partialorder %v1812, 0.0
    %vm1845 = vcmp.gt.f32.partialorder %v1813, 0.0
    %vm1846 = vcmp.gt.f32.partialorder %v1814, 0.0
    %vm1847 = vcmp.gt.f32.partialorder %v1815, 0.0
    %vm1848 = vcmp.gt.f32.partialorder %v1816, 0.0
    %vm1849 = vcmp.gt.f32.partialorder %v1817, 0.0
    %vm1850 = vcmp.gt.f32.partialorder %v1818, 0.0
    %vm1851 = vcmp.gt.f32.partialorder %v1819, 0.0
    %vm1852 = vcmp.gt.f32.partialorder %v1820, 0.0
    %vm1853 = vcmp.gt.f32.partialorder %v1821, 0.0
    %vm1854 = vcmp.gt.f32.partialorder %v1822, 0.0
    %vm1855 = vcmp.gt.f32.partialorder %v1823, 0.0
    %vm1856 = vcmp.gt.f32.partialorder %v1824, 0.0
    %vm1857 = vcmp.gt.f32.partialorder %v1825, 0.0
    %vm1858 = vcmp.gt.f32.partialorder %v1826, 0.0
    %vm1859 = vcmp.gt.f32.partialorder %v1827, 0.0
    %vm1860 = vcmp.gt.f32.partialorder %v1828, 0.0
    %vm1861 = vcmp.gt.f32.partialorder %v1829, 0.0
    %vm1862 = vcmp.gt.f32.partialorder %v1830, 0.0
    %vm1863 = vcmp.gt.f32.partialorder %v1831, 0.0
    %vm1864 = vcmp.gt.f32.partialorder %v1832, 0.0
    %vm1865 = vcmp.gt.f32.partialorder %v1833, 0.0
    %vm1866 = vcmp.gt.f32.partialorder %v1834, 0.0
    %vm1867 = vcmp.gt.f32.partialorder %v1835, 0.0
    %vm1868 = vcmp.gt.f32.partialorder %v1836, 0.0
    %vm1869 = vcmp.gt.f32.partialorder %v1837, 0.0
    %vm1870 = vcmp.gt.f32.partialorder %v1838, 0.0
    %vm1871 = vcmp.gt.f32.partialorder %v1839, 0.0
    %vm1872 = vcmp.gt.f32.partialorder %v1840, 0.0
    %vm1873 = vcmp.gt.f32.partialorder %v1841, 0.0
    %vm1874 = vcmp.gt.f32.partialorder %v1842, 0.0
    %v1875 = vmul.f32 %v1811, 0.01
    %v1876 = vmul.f32 %v1812, 0.01
    %v1877 = vmul.f32 %v1813, 0.01
    %v1878 = vmul.f32 %v1814, 0.01
    %v1879 = vmul.f32 %v1815, 0.01
    %v1880 = vmul.f32 %v1816, 0.01
    %v1881 = vmul.f32 %v1817, 0.01
    %v1882 = vmul.f32 %v1818, 0.01
    %v1883 = vmul.f32 %v1819, 0.01
    %v1884 = vmul.f32 %v1820, 0.01
    %v1885 = vmul.f32 %v1821, 0.01
    %v1886 = vmul.f32 %v1822, 0.01
    %v1887 = vmul.f32 %v1823, 0.01
    %v1888 = vmul.f32 %v1824, 0.01
    %v1889 = vmul.f32 %v1825, 0.01
    %v1890 = vmul.f32 %v1826, 0.01
    %v1891 = vmul.f32 %v1827, 0.01
    %v1892 = vmul.f32 %v1828, 0.01
    %v1893 = vmul.f32 %v1829, 0.01
    %v1894 = vmul.f32 %v1830, 0.01
    %v1895 = vmul.f32 %v1831, 0.01
    %v1896 = vmul.f32 %v1832, 0.01
    %v1897 = vmul.f32 %v1833, 0.01
    %v1898 = vmul.f32 %v1834, 0.01
    %v1899 = vmul.f32 %v1835, 0.01
    %v1900 = vmul.f32 %v1836, 0.01
    %v1901 = vmul.f32 %v1837, 0.01
    %v1902 = vmul.f32 %v1838, 0.01
    %v1903 = vmul.f32 %v1839, 0.01
    %v1904 = vmul.f32 %v1840, 0.01
    %v1905 = vmul.f32 %v1841, 0.01
    %v1906 = vmul.f32 %v1842, 0.01
    %v1907 = vsel %vm1843, %v1811, %v1875
    %v1908 = vsel %vm1844, %v1812, %v1876
    %v1909 = vsel %vm1845, %v1813, %v1877
    %v1910 = vsel %vm1846, %v1814, %v1878
    %v1911 = vsel %vm1847, %v1815, %v1879
    %v1912 = vsel %vm1848, %v1816, %v1880
    %v1913 = vsel %vm1849, %v1817, %v1881
    %v1914 = vsel %vm1850, %v1818, %v1882
    %v1915 = vsel %vm1851, %v1819, %v1883
    %v1916 = vsel %vm1852, %v1820, %v1884
    %v1917 = vsel %vm1853, %v1821, %v1885
    %v1918 = vsel %vm1854, %v1822, %v1886
    %v1919 = vsel %vm1855, %v1823, %v1887
    %v1920 = vsel %vm1856, %v1824, %v1888
    %v1921 = vsel %vm1857, %v1825, %v1889
    %v1922 = vsel %vm1858, %v1826, %v1890
    %v1923 = vsel %vm1859, %v1827, %v1891
    %v1924 = vsel %vm1860, %v1828, %v1892
    %v1925 = vsel %vm1861, %v1829, %v1893
    %v1926 = vsel %vm1862, %v1830, %v1894
    %v1927 = vsel %vm1863, %v1831, %v1895
    %v1928 = vsel %vm1864, %v1832, %v1896
    %v1929 = vsel %vm1865, %v1833, %v1897
    %v1930 = vsel %vm1866, %v1834, %v1898
    %v1931 = vsel %vm1867, %v1835, %v1899
    %v1932 = vsel %vm1868, %v1836, %v1900
    %v1933 = vsel %vm1869, %v1837, %v1901
    %v1934 = vsel %vm1870, %v1838, %v1902
    %v1935 = vsel %vm1871, %v1839, %v1903
    %v1936 = vsel %vm1872, %v1840, %v1904
    %v1937 = vsel %vm1873, %v1841, %v1905
    %v1938 = vsel %vm1874, %v1842, %v1906
    %v1939 = vadd.f32 %v1907, %v525
    %v1940 = vadd.f32 %v1908, %v528
    %v1941 = vadd.f32 %v1909, %v533
    %v1942 = vadd.f32 %v1910, %v536
    %v1943 = vadd.f32 %v1911, %v541
    %v1944 = vadd.f32 %v1912, %v544
    %v1945 = vadd.f32 %v1913, %v549
    %v1946 = vadd.f32 %v1914, %v552
    %v1947 = vadd.f32 %v1915, %v557
    %v1948 = vadd.f32 %v1916, %v560
    %v1949 = vadd.f32 %v1917, %v565
    %v1950 = vadd.f32 %v1918, %v568
    %v1951 = vadd.f32 %v1919, %v573
    %v1952 = vadd.f32 %v1920, %v576
    %v1953 = vadd.f32 %v1921, %v581
    %v1954 = vadd.f32 %v1922, %v584
    %v1955 = vadd.f32 %v1923, %v589
    %v1956 = vadd.f32 %v1924, %v592
    %v1957 = vadd.f32 %v1925, %v597
    %v1958 = vadd.f32 %v1926, %v600
    %v1959 = vadd.f32 %v1927, %v605
    %v1960 = vadd.f32 %v1928, %v608
    %v1961 = vadd.f32 %v1929, %v613
    %v1962 = vadd.f32 %v1930, %v616
    %v1963 = vadd.f32 %v1931, %v621
    %v1964 = vadd.f32 %v1932, %v624
    %v1965 = vadd.f32 %v1933, %v629
    %v1966 = vadd.f32 %v1934, %v632
    %v1967 = vadd.f32 %v1935, %v637
    %v1968 = vadd.f32 %v1936, %v640
    %v1969 = vadd.f32 %v1937, %v645
    %v1970 = vadd.f32 %v1938, %v648
    %v1971 = vpack.c.bf16 %v1940, %v1939
    %v1972 = vpack.c.bf16 %v1942, %v1941
    %v1973 = vpack.c.bf16 %v1944, %v1943
    %v1974 = vpack.c.bf16 %v1946, %v1945
    %v1975 = vpack.c.bf16 %v1948, %v1947
    %v1976 = vpack.c.bf16 %v1950, %v1949
    %v1977 = vpack.c.bf16 %v1952, %v1951
    %v1978 = vpack.c.bf16 %v1954, %v1953
    %v1979 = vpack.c.bf16 %v1956, %v1955
    %v1980 = vpack.c.bf16 %v1958, %v1957
    %v1981 = vpack.c.bf16 %v1960, %v1959
    %v1982 = vpack.c.bf16 %v1962, %v1961
    %v1983 = vpack.c.bf16 %v1964, %v1963
    %v1984 = vpack.c.bf16 %v1966, %v1965
    %v1985 = vpack.c.bf16 %v1968, %v1967
    %v1986 = vpack.c.bf16 %v1970, %v1969
    %s1987 = scalar_lea.vmem [#allocation8], 32
    %v1988 = vld [vmem:[%s1987] sm:$0xf]
    %v1989 = vld [vmem:[%s1987 + $0x4] sm:$0xf]
    %v1990 = vld [vmem:[%s1987 + $0x8] sm:$0xf]
    %v1991 = vld [vmem:[%s1987 + $0xc] sm:$0xf]
    %v1992 = vld [vmem:[%s1987 + $0x10] sm:$0xf]
    %v1993 = vld [vmem:[%s1987 + $0x14] sm:$0xf]
    %v1994 = vld [vmem:[%s1987 + $0x18] sm:$0xf]
    %v1995 = vld [vmem:[%s1987 + $0x1c] sm:$0xf]
    %v2004 = vunpack.c.l.b16 %v1988
    %v2005 = vunpack.c.l.b16 %v1989
    %v2006 = vunpack.c.l.b16 %v1990
    %v2007 = vunpack.c.l.b16 %v1991
    %v2008 = vunpack.c.l.b16 %v1992
    %v2009 = vunpack.c.l.b16 %v1993
    %v2010 = vunpack.c.l.b16 %v1994
    %v2011 = vunpack.c.l.b16 %v1995
    %v2012 = vpack.c.b16 %v2005, %v2004
    %v2013 = vpack.c.b16 %v2007, %v2006
    %v2014 = vpack.c.b16 %v2009, %v2008
    %v2015 = vpack.c.b16 %v2011, %v2010
    %v2021 = vsel %vm441, %v1971, 0
    %v2024 = vsel %vm441, %v1972, 0
    %v2027 = vsel %vm441, %v1973, 0
    %v2030 = vsel %vm441, %v1974, 0
    %v2033 = vsel %vm441, %v1975, 0
    %v2036 = vsel %vm441, %v1976, 0
    %v2039 = vsel %vm441, %v1977, 0
    %v2042 = vsel %vm441, %v1978, 0
    %v2045 = vsel %vm441, %v1979, 0
    %v2048 = vsel %vm441, %v1980, 0
    %v2051 = vsel %vm441, %v1981, 0
    %v2054 = vsel %vm441, %v1982, 0
    %v2057 = vsel %vm441, %v1983, 0
    %v2060 = vsel %vm441, %v1984, 0
    %v2063 = vsel %vm441, %v1985, 0
    %v2066 = vsel %vm441, %v1986, 0
    %2068 = vmatprep.subr.bf16.mxu0 0
    %2069 = vmatpush1.bf16.msra.mxu0 %v2012
    %2070 = vmatprep.subr.bf16.mxu0 0
    %2071 = vmatpush1.bf16.msra.mxu0 %v2013
    %2072 = vmatprep.subr.bf16.mxu0 0
    %2073 = vmatpush1.bf16.msra.mxu0 %v2014
    %2074 = vmatprep.subr.bf16.mxu0 0
    %2075 = vmatpush1.bf16.msra.mxu0 %v2015
    %2076 = vmatprep.subr.bf16.mxu0 0
    %2077 = vmatpush1.bf16.msra.mxu0 0
    %2078 = vmatprep.subr.bf16.mxu0 0
    %2079 = vmatpush1.bf16.msra.mxu0 0
    %2080 = vmatprep.subr.bf16.mxu0 0
    %2081 = vmatpush1.bf16.msra.mxu0 0
    %2082 = vmatprep.subr.bf16.mxu0 0
    %2083 = vmatpush1.bf16.msra.mxu0 0
    %2084 = vmatprep.subr.bf16.mxu0 0
    %2085 = vmatpush1.bf16.msra.mxu0 0
    %2086 = vmatprep.subr.bf16.mxu0 0
    %2087 = vmatpush1.bf16.msra.mxu0 0
    %2088 = vmatprep.subr.bf16.mxu0 0
    %2089 = vmatpush1.bf16.msra.mxu0 0
    %2090 = vmatprep.subr.bf16.mxu0 0
    %2091 = vmatpush1.bf16.msra.mxu0 0
    %2092 = vmatprep.subr.bf16.mxu0 0
    %2093 = vmatpush1.bf16.msra.mxu0 0
    %2094 = vmatprep.subr.bf16.mxu0 0
    %2095 = vmatpush1.bf16.msra.mxu0 0
    %2096 = vmatprep.subr.bf16.mxu0 0
    %2097 = vmatpush1.bf16.msra.mxu0 0
    %2098 = vmatprep.subr.bf16.mxu0 0
    %2099 = vmatpush1.bf16.msra.mxu0 0
    %2100 = vmatprep.mubr.bf16.mxu0 0
    %2101 = vmatmul.mubr.bf16.gmra.mrb[0].mxu0 %v2021
    %v2102 = vpop.f32.mrb[0].mxu0
    %v2103 = vadd.f32 0.0, %v2102
    %v2104 = vpop.f32.mrb[0].mxu0
    %v2105 = vpop.f32.mrb[0].mxu0
    %v2106 = vadd.f32 0.0, %v2105
    %v2107 = vpop.f32.mrb[0].mxu0
    %2108 = vmatprep.mubr.bf16.mxu0 0
    %2109 = vmatmul.mubr.bf16.gmra.mrb[0].mxu0 %v2024
    %v2110 = vpop.f32.mrb[0].mxu0
    %v2111 = vadd.f32 0.0, %v2110
    %v2112 = vpop.f32.mrb[0].mxu0
    %v2113 = vpop.f32.mrb[0].mxu0
    %v2114 = vadd.f32 0.0, %v2113
    %v2115 = vpop.f32.mrb[0].mxu0
    %2116 = vmatprep.mubr.bf16.mxu0 0
    %2117 = vmatmul.mubr.bf16.gmra.mrb[0].mxu0 %v2027
    %v2118 = vpop.f32.mrb[0].mxu0
    %v2119 = vadd.f32 0.0, %v2118
    %v2120 = vpop.f32.mrb[0].mxu0
    %v2121 = vpop.f32.mrb[0].mxu0
    %v2122 = vadd.f32 0.0, %v2121
    %v2123 = vpop.f32.mrb[0].mxu0
    %2124 = vmatprep.mubr.bf16.mxu0 0
    %2125 = vmatmul.mubr.bf16.gmra.mrb[0].mxu0 %v2030
    %v2126 = vpop.f32.mrb[0].mxu0
    %v2127 = vadd.f32 0.0, %v2126
    %v2128 = vpop.f32.mrb[0].mxu0
    %v2129 = vpop.f32.mrb[0].mxu0
    %v2130 = vadd.f32 0.0, %v2129
    %v2131 = vpop.f32.mrb[0].mxu0
    %2132 = vmatprep.mubr.bf16.mxu0 0
    %2133 = vmatmul.mubr.bf16.gmra.mrb[0].mxu0 %v2033
    %v2134 = vpop.f32.mrb[0].mxu0
    %v2135 = vadd.f32 0.0, %v2134
    %v2136 = vpop.f32.mrb[0].mxu0
    %v2137 = vpop.f32.mrb[0].mxu0
    %v2138 = vadd.f32 0.0, %v2137
    %v2139 = vpop.f32.mrb[0].mxu0
    %2140 = vmatprep.mubr.bf16.mxu0 0
    %2141 = vmatmul.mubr.bf16.gmra.mrb[0].mxu0 %v2036
    %v2142 = vpop.f32.mrb[0].mxu0
    %v2143 = vadd.f32 0.0, %v2142
    %v2144 = vpop.f32.mrb[0].mxu0
    %v2145 = vpop.f32.mrb[0].mxu0
    %v2146 = vadd.f32 0.0, %v2145
    %v2147 = vpop.f32.mrb[0].mxu0
    %2148 = vmatprep.mubr.bf16.mxu0 0
    %2149 = vmatmul.mubr.bf16.gmra.mrb[0].mxu0 %v2039
    %v2150 = vpop.f32.mrb[0].mxu0
    %v2151 = vadd.f32 0.0, %v2150
    %v2152 = vpop.f32.mrb[0].mxu0
    %v2153 = vpop.f32.mrb[0].mxu0
    %v2154 = vadd.f32 0.0, %v2153
    %v2155 = vpop.f32.mrb[0].mxu0
    %2156 = vmatprep.mubr.bf16.mxu0 0
    %2157 = vmatmul.mubr.bf16.gmra.mrb[0].mxu0 %v2042
    %v2158 = vpop.f32.mrb[0].mxu0
    %v2159 = vadd.f32 0.0, %v2158
    %v2160 = vpop.f32.mrb[0].mxu0
    %v2161 = vpop.f32.mrb[0].mxu0
    %v2162 = vadd.f32 0.0, %v2161
    %v2163 = vpop.f32.mrb[0].mxu0
    %2164 = vmatprep.mubr.bf16.mxu0 0
    %2165 = vmatmul.mubr.bf16.gmra.mrb[0].mxu0 %v2045
    %v2166 = vpop.f32.mrb[0].mxu0
    %v2167 = vadd.f32 0.0, %v2166
    %v2168 = vpop.f32.mrb[0].mxu0
    %v2169 = vpop.f32.mrb[0].mxu0
    %v2170 = vadd.f32 0.0, %v2169
    %v2171 = vpop.f32.mrb[0].mxu0
    %2172 = vmatprep.mubr.bf16.mxu0 0
    %2173 = vmatmul.mubr.bf16.gmra.mrb[0].mxu0 %v2048
    %v2174 = vpop.f32.mrb[0].mxu0
    %v2175 = vadd.f32 0.0, %v2174
    %v2176 = vpop.f32.mrb[0].mxu0
    %v2177 = vpop.f32.mrb[0].mxu0
    %v2178 = vadd.f32 0.0, %v2177
    %v2179 = vpop.f32.mrb[0].mxu0
    %2180 = vmatprep.mubr.bf16.mxu0 0
    %2181 = vmatmul.mubr.bf16.gmra.mrb[0].mxu0 %v2051
    %v2182 = vpop.f32.mrb[0].mxu0
    %v2183 = vadd.f32 0.0, %v2182
    %v2184 = vpop.f32.mrb[0].mxu0
    %v2185 = vpop.f32.mrb[0].mxu0
    %v2186 = vadd.f32 0.0, %v2185
    %v2187 = vpop.f32.mrb[0].mxu0
    %2188 = vmatprep.mubr.bf16.mxu0 0
    %2189 = vmatmul.mubr.bf16.gmra.mrb[0].mxu0 %v2054
    %v2190 = vpop.f32.mrb[0].mxu0
    %v2191 = vadd.f32 0.0, %v2190
    %v2192 = vpop.f32.mrb[0].mxu0
    %v2193 = vpop.f32.mrb[0].mxu0
    %v2194 = vadd.f32 0.0, %v2193
    %v2195 = vpop.f32.mrb[0].mxu0
    %2196 = vmatprep.mubr.bf16.mxu0 0
    %2197 = vmatmul.mubr.bf16.gmra.mrb[0].mxu0 %v2057
    %v2198 = vpop.f32.mrb[0].mxu0
    %v2199 = vadd.f32 0.0, %v2198
    %v2200 = vpop.f32.mrb[0].mxu0
    %v2201 = vpop.f32.mrb[0].mxu0
    %v2202 = vadd.f32 0.0, %v2201
    %v2203 = vpop.f32.mrb[0].mxu0
    %2204 = vmatprep.mubr.bf16.mxu0 0
    %2205 = vmatmul.mubr.bf16.gmra.mrb[0].mxu0 %v2060
    %v2206 = vpop.f32.mrb[0].mxu0
    %v2207 = vadd.f32 0.0, %v2206
    %v2208 = vpop.f32.mrb[0].mxu0
    %v2209 = vpop.f32.mrb[0].mxu0
    %v2210 = vadd.f32 0.0, %v2209
    %v2211 = vpop.f32.mrb[0].mxu0
    %2212 = vmatprep.mubr.bf16.mxu0 0
    %2213 = vmatmul.mubr.bf16.gmra.mrb[0].mxu0 %v2063
    %v2214 = vpop.f32.mrb[0].mxu0
    %v2215 = vadd.f32 0.0, %v2214
    %v2216 = vpop.f32.mrb[0].mxu0
    %v2217 = vpop.f32.mrb[0].mxu0
    %v2218 = vadd.f32 0.0, %v2217
    %v2219 = vpop.f32.mrb[0].mxu0
    %2220 = vmatprep.mubr.bf16.mxu0 0
    %2221 = vmatmul.mubr.bf16.gmra.mrb[0].mxu0 %v2066
    %v2222 = vpop.f32.mrb[0].mxu0
    %v2223 = vadd.f32 0.0, %v2222
    %v2224 = vpop.f32.mrb[0].mxu0
    %v2225 = vpop.f32.mrb[0].mxu0
    %v2226 = vadd.f32 0.0, %v2225
    %v2227 = vpop.f32.mrb[0].mxu0
    %2228 = vdwg.mxu0
    %v2229 = vpack.c.bf16 %v2106, %v2103
    %v2230 = vpack.c.bf16 %v2114, %v2111
    %v2231 = vpack.c.bf16 %v2122, %v2119
    %v2232 = vpack.c.bf16 %v2130, %v2127
    %v2233 = vpack.c.bf16 %v2138, %v2135
    %v2234 = vpack.c.bf16 %v2146, %v2143
    %v2235 = vpack.c.bf16 %v2154, %v2151
    %v2236 = vpack.c.bf16 %v2162, %v2159
    %v2237 = vpack.c.bf16 %v2170, %v2167
    %v2238 = vpack.c.bf16 %v2178, %v2175
    %v2239 = vpack.c.bf16 %v2186, %v2183
    %v2240 = vpack.c.bf16 %v2194, %v2191
    %v2241 = vpack.c.bf16 %v2202, %v2199
    %v2242 = vpack.c.bf16 %v2210, %v2207
    %v2243 = vpack.c.bf16 %v2218, %v2215
    %v2244 = vpack.c.bf16 %v2226, %v2223
    %2261 = vrot.lane.b32.xlu0 %v2229, 64
    %v2262 = vpop.permute.xlu0 %2261
    %2263 = vrot.lane.b32.xlu0 %v2230, 64
    %v2264 = vpop.permute.xlu0 %2263
    %2265 = vrot.lane.b32.xlu0 %v2231, 64
    %v2266 = vpop.permute.xlu0 %2265
    %2267 = vrot.lane.b32.xlu0 %v2232, 64
    %v2268 = vpop.permute.xlu0 %2267
    %2269 = vrot.lane.b32.xlu0 %v2233, 64
    %v2270 = vpop.permute.xlu0 %2269
    %2271 = vrot.lane.b32.xlu0 %v2234, 64
    %v2272 = vpop.permute.xlu0 %2271
    %2273 = vrot.lane.b32.xlu0 %v2235, 64
    %v2274 = vpop.permute.xlu0 %2273
    %2275 = vrot.lane.b32.xlu0 %v2236, 64
    %v2276 = vpop.permute.xlu0 %2275
    %2277 = vrot.lane.b32.xlu0 %v2237, 64
    %v2278 = vpop.permute.xlu0 %2277
    %2279 = vrot.lane.b32.xlu0 %v2238, 64
    %v2280 = vpop.permute.xlu0 %2279
    %2281 = vrot.lane.b32.xlu0 %v2239, 64
    %v2282 = vpop.permute.xlu0 %2281
    %2283 = vrot.lane.b32.xlu0 %v2240, 64
    %v2284 = vpop.permute.xlu0 %2283
    %2285 = vrot.lane.b32.xlu0 %v2241, 64
    %v2286 = vpop.permute.xlu0 %2285
    %2287 = vrot.lane.b32.xlu0 %v2242, 64
    %v2288 = vpop.permute.xlu0 %2287
    %2289 = vrot.lane.b32.xlu0 %v2243, 64
    %v2290 = vpop.permute.xlu0 %2289
    %2291 = vrot.lane.b32.xlu0 %v2244, 64
    %v2292 = vpop.permute.xlu0 %2291
    %2309 = vmatprep.subr.bf16.mxu0 0
    %2310 = vmatpush1.bf16.msra.mxu0 %v2262
    %2311 = vmatprep.subr.bf16.mxu0 0
    %2312 = vmatpush1.bf16.msra.mxu0 %v2264
    %2313 = vmatprep.subr.bf16.mxu0 0
    %2314 = vmatpush1.bf16.msra.mxu0 %v2266
    %2315 = vmatprep.subr.bf16.mxu0 0
    %2316 = vmatpush1.bf16.msra.mxu0 %v2268
    %2317 = vmatprep.subr.bf16.mxu0 0
    %2318 = vmatpush1.bf16.msra.mxu0 %v2270
    %2319 = vmatprep.subr.bf16.mxu0 0
    %2320 = vmatpush1.bf16.msra.mxu0 %v2272
    %2321 = vmatprep.subr.bf16.mxu0 0
    %2322 = vmatpush1.bf16.msra.mxu0 %v2274
    %2323 = vmatprep.subr.bf16.mxu0 0
    %2324 = vmatpush1.bf16.msra.mxu0 %v2276
    %2325 = vmatprep.subr.bf16.mxu0 0
    %2326 = vmatpush1.bf16.msra.mxu0 %v2278
    %2327 = vmatprep.subr.bf16.mxu0 0
    %2328 = vmatpush1.bf16.msra.mxu0 %v2280
    %2329 = vmatprep.subr.bf16.mxu0 0
    %2330 = vmatpush1.bf16.msra.mxu0 %v2282
    %2331 = vmatprep.subr.bf16.mxu0 0
    %2332 = vmatpush1.bf16.msra.mxu0 %v2284
    %2333 = vmatprep.subr.bf16.mxu0 0
    %2334 = vmatpush1.bf16.msra.mxu0 %v2286
    %2335 = vmatprep.subr.bf16.mxu0 0
    %2336 = vmatpush1.bf16.msra.mxu0 %v2288
    %2337 = vmatprep.subr.bf16.mxu0 0
    %2338 = vmatpush1.bf16.msra.mxu0 %v2290
    %2339 = vmatprep.subr.bf16.mxu0 0
    %2340 = vmatpush1.bf16.msra.mxu0 %v2292
    %2341 = vmatprep.mubr.bf16.mxu0 %v991
    %2342 = vmatmul.mubr.bf16.gmra.mrb[0].mxu0 %v990
    %v2343 = vpop.f32.mrb[0].mxu0
    %v2344 = vadd.f32 0.0, %v2343
    %v2345 = vpop.f32.mrb[0].mxu0
    %v2346 = vpop.f32.mrb[0].mxu0
    %v2347 = vadd.f32 0.0, %v2346
    %v2348 = vpop.f32.mrb[0].mxu0
    %2349 = vmatprep.mubr.bf16.mxu0 %v993
    %2350 = vmatmul.mubr.bf16.gmra.mrb[0].mxu0 %v992
    %v2351 = vpop.f32.mrb[0].mxu0
    %v2352 = vadd.f32 0.0, %v2351
    %v2353 = vpop.f32.mrb[0].mxu0
    %v2354 = vpop.f32.mrb[0].mxu0
    %v2355 = vadd.f32 0.0, %v2354
    %v2356 = vpop.f32.mrb[0].mxu0
    %2357 = vmatprep.mubr.bf16.mxu0 %v995
    %2358 = vmatmul.mubr.bf16.gmra.mrb[0].mxu0 %v994
    %v2359 = vpop.f32.mrb[0].mxu0
    %v2360 = vadd.f32 0.0, %v2359
    %v2361 = vpop.f32.mrb[0].mxu0
    %v2362 = vpop.f32.mrb[0].mxu0
    %v2363 = vadd.f32 0.0, %v2362
    %v2364 = vpop.f32.mrb[0].mxu0
    %2365 = vmatprep.mubr.bf16.mxu0 %v997
    %2366 = vmatmul.mubr.bf16.gmra.mrb[0].mxu0 %v996
    %v2367 = vpop.f32.mrb[0].mxu0
    %v2368 = vadd.f32 0.0, %v2367
    %v2369 = vpop.f32.mrb[0].mxu0
    %v2370 = vpop.f32.mrb[0].mxu0
    %v2371 = vadd.f32 0.0, %v2370
    %v2372 = vpop.f32.mrb[0].mxu0
    %2373 = vmatprep.mubr.bf16.mxu0 %v999
    %2374 = vmatmul.mubr.bf16.gmra.mrb[0].mxu0 %v998
    %v2375 = vpop.f32.mrb[0].mxu0
    %v2376 = vadd.f32 0.0, %v2375
    %v2377 = vpop.f32.mrb[0].mxu0
    %v2378 = vpop.f32.mrb[0].mxu0
    %v2379 = vadd.f32 0.0, %v2378
    %v2380 = vpop.f32.mrb[0].mxu0
    %2381 = vmatprep.mubr.bf16.mxu0 %v1001
    %2382 = vmatmul.mubr.bf16.gmra.mrb[0].mxu0 %v1000
    %v2383 = vpop.f32.mrb[0].mxu0
    %v2384 = vadd.f32 0.0, %v2383
    %v2385 = vpop.f32.mrb[0].mxu0
    %v2386 = vpop.f32.mrb[0].mxu0
    %v2387 = vadd.f32 0.0, %v2386
    %v2388 = vpop.f32.mrb[0].mxu0
    %2389 = vmatprep.mubr.bf16.mxu0 %v1003
    %2390 = vmatmul.mubr.bf16.gmra.mrb[0].mxu0 %v1002
    %v2391 = vpop.f32.mrb[0].mxu0
    %v2392 = vadd.f32 0.0, %v2391
    %v2393 = vpop.f32.mrb[0].mxu0
    %v2394 = vpop.f32.mrb[0].mxu0
    %v2395 = vadd.f32 0.0, %v2394
    %v2396 = vpop.f32.mrb[0].mxu0
    %2397 = vmatprep.mubr.bf16.mxu0 %v1005
    %2398 = vmatmul.mubr.bf16.gmra.mrb[0].mxu0 %v1004
    %v2399 = vpop.f32.mrb[0].mxu0
    %v2400 = vadd.f32 0.0, %v2399
    %v2401 = vpop.f32.mrb[0].mxu0
    %v2402 = vpop.f32.mrb[0].mxu0
    %v2403 = vadd.f32 0.0, %v2402
    %v2404 = vpop.f32.mrb[0].mxu0
    %2405 = vmatprep.mubr.bf16.mxu0 %v1007
    %2406 = vmatmul.mubr.bf16.gmra.mrb[0].mxu0 %v1006
    %v2407 = vpop.f32.mrb[0].mxu0
    %v2408 = vadd.f32 0.0, %v2407
    %v2409 = vpop.f32.mrb[0].mxu0
    %v2410 = vpop.f32.mrb[0].mxu0
    %v2411 = vadd.f32 0.0, %v2410
    %v2412 = vpop.f32.mrb[0].mxu0
    %2413 = vmatprep.mubr.bf16.mxu0 %v1009
    %2414 = vmatmul.mubr.bf16.gmra.mrb[0].mxu0 %v1008
    %v2415 = vpop.f32.mrb[0].mxu0
    %v2416 = vadd.f32 0.0, %v2415
    %v2417 = vpop.f32.mrb[0].mxu0
    %v2418 = vpop.f32.mrb[0].mxu0
    %v2419 = vadd.f32 0.0, %v2418
    %v2420 = vpop.f32.mrb[0].mxu0
    %2421 = vmatprep.mubr.bf16.mxu0 %v1011
    %2422 = vmatmul.mubr.bf16.gmra.mrb[0].mxu0 %v1010
    %v2423 = vpop.f32.mrb[0].mxu0
    %v2424 = vadd.f32 0.0, %v2423
    %v2425 = vpop.f32.mrb[0].mxu0
    %v2426 = vpop.f32.mrb[0].mxu0
    %v2427 = vadd.f32 0.0, %v2426
    %v2428 = vpop.f32.mrb[0].mxu0
    %2429 = vmatprep.mubr.bf16.mxu0 %v1013
    %2430 = vmatmul.mubr.bf16.gmra.mrb[0].mxu0 %v1012
    %v2431 = vpop.f32.mrb[0].mxu0
    %v2432 = vadd.f32 0.0, %v2431
    %v2433 = vpop.f32.mrb[0].mxu0
    %v2434 = vpop.f32.mrb[0].mxu0
    %v2435 = vadd.f32 0.0, %v2434
    %v2436 = vpop.f32.mrb[0].mxu0
    %2437 = vmatprep.mubr.bf16.mxu0 %v1015
    %2438 = vmatmul.mubr.bf16.gmra.mrb[0].mxu0 %v1014
    %v2439 = vpop.f32.mrb[0].mxu0
    %v2440 = vadd.f32 0.0, %v2439
    %v2441 = vpop.f32.mrb[0].mxu0
    %v2442 = vpop.f32.mrb[0].mxu0
    %v2443 = vadd.f32 0.0, %v2442
    %v2444 = vpop.f32.mrb[0].mxu0
    %2445 = vmatprep.mubr.bf16.mxu0 %v1017
    %2446 = vmatmul.mubr.bf16.gmra.mrb[0].mxu0 %v1016
    %v2447 = vpop.f32.mrb[0].mxu0
    %v2448 = vadd.f32 0.0, %v2447
    %v2449 = vpop.f32.mrb[0].mxu0
    %v2450 = vpop.f32.mrb[0].mxu0
    %v2451 = vadd.f32 0.0, %v2450
    %v2452 = vpop.f32.mrb[0].mxu0
    %2453 = vmatprep.mubr.bf16.mxu0 %v1019
    %2454 = vmatmul.mubr.bf16.gmra.mrb[0].mxu0 %v1018
    %v2455 = vpop.f32.mrb[0].mxu0
    %v2456 = vadd.f32 0.0, %v2455
    %v2457 = vpop.f32.mrb[0].mxu0
    %v2458 = vpop.f32.mrb[0].mxu0
    %v2459 = vadd.f32 0.0, %v2458
    %v2460 = vpop.f32.mrb[0].mxu0
    %2461 = vmatprep.mubr.bf16.mxu0 %v1021
    %2462 = vmatmul.mubr.bf16.gmra.mrb[0].mxu0 %v1020
    %v2463 = vpop.f32.mrb[0].mxu0
    %v2464 = vadd.f32 0.0, %v2463
    %v2465 = vpop.f32.mrb[0].mxu0
    %v2466 = vpop.f32.mrb[0].mxu0
    %v2467 = vadd.f32 0.0, %v2466
    %v2468 = vpop.f32.mrb[0].mxu0
    %2469 = vdwg.mxu0
    %v2470 = vadd.f32 %v2103, %v2344
    %v2471 = vadd.f32 %v2106, %v2347
    %v2472 = vadd.f32 %v2111, %v2352
    %v2473 = vadd.f32 %v2114, %v2355
    %v2474 = vadd.f32 %v2119, %v2360
    %v2475 = vadd.f32 %v2122, %v2363
    %v2476 = vadd.f32 %v2127, %v2368
    %v2477 = vadd.f32 %v2130, %v2371
    %v2478 = vadd.f32 %v2135, %v2376
    %v2479 = vadd.f32 %v2138, %v2379
    %v2480 = vadd.f32 %v2143, %v2384
    %v2481 = vadd.f32 %v2146, %v2387
    %v2482 = vadd.f32 %v2151, %v2392
    %v2483 = vadd.f32 %v2154, %v2395
    %v2484 = vadd.f32 %v2159, %v2400
    %v2485 = vadd.f32 %v2162, %v2403
    %v2486 = vadd.f32 %v2167, %v2408
    %v2487 = vadd.f32 %v2170, %v2411
    %v2488 = vadd.f32 %v2175, %v2416
    %v2489 = vadd.f32 %v2178, %v2419
    %v2490 = vadd.f32 %v2183, %v2424
    %v2491 = vadd.f32 %v2186, %v2427
    %v2492 = vadd.f32 %v2191, %v2432
    %v2493 = vadd.f32 %v2194, %v2435
    %v2494 = vadd.f32 %v2199, %v2440
    %v2495 = vadd.f32 %v2202, %v2443
    %v2496 = vadd.f32 %v2207, %v2448
    %v2497 = vadd.f32 %v2210, %v2451
    %v2498 = vadd.f32 %v2215, %v2456
    %v2499 = vadd.f32 %v2218, %v2459
    %v2500 = vadd.f32 %v2223, %v2464
    %v2501 = vadd.f32 %v2226, %v2467
    %s2502 = scalar_lea.vmem %s7, 1
    %v2503 = vld [vmem:[%s2502] sm:$0x1]
    %v2505 = vlaneseq
    %v2506 = vshrl.u32 %v2505, 7
    %v2507 = vsub.s32 0, %v2506
    %v2508 = vrot.slane %v2503, %v2507
    %v2510 = vadd.f32 %v2470, %v2508
    %v2511 = vadd.f32 %v2471, %v2508
    %v2512 = vadd.f32 %v2472, %v2508
    %v2513 = vadd.f32 %v2473, %v2508
    %v2514 = vadd.f32 %v2474, %v2508
    %v2515 = vadd.f32 %v2475, %v2508
    %v2516 = vadd.f32 %v2476, %v2508
    %v2517 = vadd.f32 %v2477, %v2508
    %v2518 = vadd.f32 %v2478, %v2508
    %v2519 = vadd.f32 %v2479, %v2508
    %v2520 = vadd.f32 %v2480, %v2508
    %v2521 = vadd.f32 %v2481, %v2508
    %v2522 = vadd.f32 %v2482, %v2508
    %v2523 = vadd.f32 %v2483, %v2508
    %v2524 = vadd.f32 %v2484, %v2508
    %v2525 = vadd.f32 %v2485, %v2508
    %v2526 = vadd.f32 %v2486, %v2508
    %v2527 = vadd.f32 %v2487, %v2508
    %v2528 = vadd.f32 %v2488, %v2508
    %v2529 = vadd.f32 %v2489, %v2508
    %v2530 = vadd.f32 %v2490, %v2508
    %v2531 = vadd.f32 %v2491, %v2508
    %v2532 = vadd.f32 %v2492, %v2508
    %v2533 = vadd.f32 %v2493, %v2508
    %v2534 = vadd.f32 %v2494, %v2508
    %v2535 = vadd.f32 %v2495, %v2508
    %v2536 = vadd.f32 %v2496, %v2508
    %v2537 = vadd.f32 %v2497, %v2508
    %v2538 = vadd.f32 %v2498, %v2508
    %v2539 = vadd.f32 %v2499, %v2508
    %v2540 = vadd.f32 %v2500, %v2508
    %v2541 = vadd.f32 %v2501, %v2508
    %v2542 = vsel %vm441, %v2510, 0.0
    %2543 = vadd.xlane.f32.xlu0 %v2542
    %v2544 = vpop.xlane.xlu0 %2543
    %v2545 = vsel %vm441, %v2511, 0.0
    %2546 = vadd.xlane.f32.xlu0 %v2545
    %v2547 = vpop.xlane.xlu0 %2546
    %v2548 = vsel %vm441, %v2512, 0.0
    %2549 = vadd.xlane.f32.xlu0 %v2548
    %v2550 = vpop.xlane.xlu0 %2549
    %v2551 = vsel %vm441, %v2513, 0.0
    %2552 = vadd.xlane.f32.xlu0 %v2551
    %v2553 = vpop.xlane.xlu0 %2552
    %v2554 = vsel %vm441, %v2514, 0.0
    %2555 = vadd.xlane.f32.xlu0 %v2554
    %v2556 = vpop.xlane.xlu0 %2555
    %v2557 = vsel %vm441, %v2515, 0.0
    %2558 = vadd.xlane.f32.xlu0 %v2557
    %v2559 = vpop.xlane.xlu0 %2558
    %v2560 = vsel %vm441, %v2516, 0.0
    %2561 = vadd.xlane.f32.xlu0 %v2560
    %v2562 = vpop.xlane.xlu0 %2561
    %v2563 = vsel %vm441, %v2517, 0.0
    %2564 = vadd.xlane.f32.xlu0 %v2563
    %v2565 = vpop.xlane.xlu0 %2564
    %v2566 = vsel %vm441, %v2518, 0.0
    %2567 = vadd.xlane.f32.xlu0 %v2566
    %v2568 = vpop.xlane.xlu0 %2567
    %v2569 = vsel %vm441, %v2519, 0.0
    %2570 = vadd.xlane.f32.xlu0 %v2569
    %v2571 = vpop.xlane.xlu0 %2570
    %v2572 = vsel %vm441, %v2520, 0.0
    %2573 = vadd.xlane.f32.xlu0 %v2572
    %v2574 = vpop.xlane.xlu0 %2573
    %v2575 = vsel %vm441, %v2521, 0.0
    %2576 = vadd.xlane.f32.xlu0 %v2575
    %v2577 = vpop.xlane.xlu0 %2576
    %v2578 = vsel %vm441, %v2522, 0.0
    %2579 = vadd.xlane.f32.xlu0 %v2578
    %v2580 = vpop.xlane.xlu0 %2579
    %v2581 = vsel %vm441, %v2523, 0.0
    %2582 = vadd.xlane.f32.xlu0 %v2581
    %v2583 = vpop.xlane.xlu0 %2582
    %v2584 = vsel %vm441, %v2524, 0.0
    %2585 = vadd.xlane.f32.xlu0 %v2584
    %v2586 = vpop.xlane.xlu0 %2585
    %v2587 = vsel %vm441, %v2525, 0.0
    %2588 = vadd.xlane.f32.xlu0 %v2587
    %v2589 = vpop.xlane.xlu0 %2588
    %v2590 = vsel %vm441, %v2526, 0.0
    %2591 = vadd.xlane.f32.xlu0 %v2590
    %v2592 = vpop.xlane.xlu0 %2591
    %v2593 = vsel %vm441, %v2527, 0.0
    %2594 = vadd.xlane.f32.xlu0 %v2593
    %v2595 = vpop.xlane.xlu0 %2594
    %v2596 = vsel %vm441, %v2528, 0.0
    %2597 = vadd.xlane.f32.xlu0 %v2596
    %v2598 = vpop.xlane.xlu0 %2597
    %v2599 = vsel %vm441, %v2529, 0.0
    %2600 = vadd.xlane.f32.xlu0 %v2599
    %v2601 = vpop.xlane.xlu0 %2600
    %v2602 = vsel %vm441, %v2530, 0.0
    %2603 = vadd.xlane.f32.xlu0 %v2602
    %v2604 = vpop.xlane.xlu0 %2603
    %v2605 = vsel %vm441, %v2531, 0.0
    %2606 = vadd.xlane.f32.xlu0 %v2605
    %v2607 = vpop.xlane.xlu0 %2606
    %v2608 = vsel %vm441, %v2532, 0.0
    %2609 = vadd.xlane.f32.xlu0 %v2608
    %v2610 = vpop.xlane.xlu0 %2609
    %v2611 = vsel %vm441, %v2533, 0.0
    %2612 = vadd.xlane.f32.xlu0 %v2611
    %v2613 = vpop.xlane.xlu0 %2612
    %v2614 = vsel %vm441, %v2534, 0.0
    %2615 = vadd.xlane.f32.xlu0 %v2614
    %v2616 = vpop.xlane.xlu0 %2615
    %v2617 = vsel %vm441, %v2535, 0.0
    %2618 = vadd.xlane.f32.xlu0 %v2617
    %v2619 = vpop.xlane.xlu0 %2618
    %v2620 = vsel %vm441, %v2536, 0.0
    %2621 = vadd.xlane.f32.xlu0 %v2620
    %v2622 = vpop.xlane.xlu0 %2621
    %v2623 = vsel %vm441, %v2537, 0.0
    %2624 = vadd.xlane.f32.xlu0 %v2623
    %v2625 = vpop.xlane.xlu0 %2624
    %v2626 = vsel %vm441, %v2538, 0.0
    %2627 = vadd.xlane.f32.xlu0 %v2626
    %v2628 = vpop.xlane.xlu0 %2627
    %v2629 = vsel %vm441, %v2539, 0.0
    %2630 = vadd.xlane.f32.xlu0 %v2629
    %v2631 = vpop.xlane.xlu0 %2630
    %v2632 = vsel %vm441, %v2540, 0.0
    %2633 = vadd.xlane.f32.xlu0 %v2632
    %v2634 = vpop.xlane.xlu0 %2633
    %v2635 = vsel %vm441, %v2541, 0.0
    %2636 = vadd.xlane.f32.xlu0 %v2635
    %v2637 = vpop.xlane.xlu0 %2636
    %v2638 = vmul.f32 %v2544, %v1446
    %v2639 = vmul.f32 %v2547, %v1446
    %v2640 = vmul.f32 %v2550, %v1446
    %v2641 = vmul.f32 %v2553, %v1446
    %v2642 = vmul.f32 %v2556, %v1446
    %v2643 = vmul.f32 %v2559, %v1446
    %v2644 = vmul.f32 %v2562, %v1446
    %v2645 = vmul.f32 %v2565, %v1446
    %v2646 = vmul.f32 %v2568, %v1446
    %v2647 = vmul.f32 %v2571, %v1446
    %v2648 = vmul.f32 %v2574, %v1446
    %v2649 = vmul.f32 %v2577, %v1446
    %v2650 = vmul.f32 %v2580, %v1446
    %v2651 = vmul.f32 %v2583, %v1446
    %v2652 = vmul.f32 %v2586, %v1446
    %v2653 = vmul.f32 %v2589, %v1446
    %v2654 = vmul.f32 %v2592, %v1446
    %v2655 = vmul.f32 %v2595, %v1446
    %v2656 = vmul.f32 %v2598, %v1446
    %v2657 = vmul.f32 %v2601, %v1446
    %v2658 = vmul.f32 %v2604, %v1446
    %v2659 = vmul.f32 %v2607, %v1446
    %v2660 = vmul.f32 %v2610, %v1446
    %v2661 = vmul.f32 %v2613, %v1446
    %v2662 = vmul.f32 %v2616, %v1446
    %v2663 = vmul.f32 %v2619, %v1446
    %v2664 = vmul.f32 %v2622, %v1446
    %v2665 = vmul.f32 %v2625, %v1446
    %v2666 = vmul.f32 %v2628, %v1446
    %v2667 = vmul.f32 %v2631, %v1446
    %v2668 = vmul.f32 %v2634, %v1446
    %v2669 = vmul.f32 %v2637, %v1446
    %v2670 = vsub.f32 %v2510, %v2638
    %v2671 = vsub.f32 %v2511, %v2639
    %v2672 = vsub.f32 %v2512, %v2640
    %v2673 = vsub.f32 %v2513, %v2641
    %v2674 = vsub.f32 %v2514, %v2642
    %v2675 = vsub.f32 %v2515, %v2643
    %v2676 = vsub.f32 %v2516, %v2644
    %v2677 = vsub.f32 %v2517, %v2645
    %v2678 = vsub.f32 %v2518, %v2646
    %v2679 = vsub.f32 %v2519, %v2647
    %v2680 = vsub.f32 %v2520, %v2648
    %v2681 = vsub.f32 %v2521, %v2649
    %v2682 = vsub.f32 %v2522, %v2650
    %v2683 = vsub.f32 %v2523, %v2651
    %v2684 = vsub.f32 %v2524, %v2652
    %v2685 = vsub.f32 %v2525, %v2653
    %v2686 = vsub.f32 %v2526, %v2654
    %v2687 = vsub.f32 %v2527, %v2655
    %v2688 = vsub.f32 %v2528, %v2656
    %v2689 = vsub.f32 %v2529, %v2657
    %v2690 = vsub.f32 %v2530, %v2658
    %v2691 = vsub.f32 %v2531, %v2659
    %v2692 = vsub.f32 %v2532, %v2660
    %v2693 = vsub.f32 %v2533, %v2661
    %v2694 = vsub.f32 %v2534, %v2662
    %v2695 = vsub.f32 %v2535, %v2663
    %v2696 = vsub.f32 %v2536, %v2664
    %v2697 = vsub.f32 %v2537, %v2665
    %v2698 = vsub.f32 %v2538, %v2666
    %v2699 = vsub.f32 %v2539, %v2667
    %v2700 = vsub.f32 %v2540, %v2668
    %v2701 = vsub.f32 %v2541, %v2669
    %v2702 = vmul.f32 %v2670, %v2670
    %v2703 = vmul.f32 %v2671, %v2671
    %v2704 = vmul.f32 %v2672, %v2672
    %v2705 = vmul.f32 %v2673, %v2673
    %v2706 = vmul.f32 %v2674, %v2674
    %v2707 = vmul.f32 %v2675, %v2675
    %v2708 = vmul.f32 %v2676, %v2676
    %v2709 = vmul.f32 %v2677, %v2677
    %v2710 = vmul.f32 %v2678, %v2678
    %v2711 = vmul.f32 %v2679, %v2679
    %v2712 = vmul.f32 %v2680, %v2680
    %v2713 = vmul.f32 %v2681, %v2681
    %v2714 = vmul.f32 %v2682, %v2682
    %v2715 = vmul.f32 %v2683, %v2683
    %v2716 = vmul.f32 %v2684, %v2684
    %v2717 = vmul.f32 %v2685, %v2685
    %v2718 = vmul.f32 %v2686, %v2686
    %v2719 = vmul.f32 %v2687, %v2687
    %v2720 = vmul.f32 %v2688, %v2688
    %v2721 = vmul.f32 %v2689, %v2689
    %v2722 = vmul.f32 %v2690, %v2690
    %v2723 = vmul.f32 %v2691, %v2691
    %v2724 = vmul.f32 %v2692, %v2692
    %v2725 = vmul.f32 %v2693, %v2693
    %v2726 = vmul.f32 %v2694, %v2694
    %v2727 = vmul.f32 %v2695, %v2695
    %v2728 = vmul.f32 %v2696, %v2696
    %v2729 = vmul.f32 %v2697, %v2697
    %v2730 = vmul.f32 %v2698, %v2698
    %v2731 = vmul.f32 %v2699, %v2699
    %v2732 = vmul.f32 %v2700, %v2700
    %v2733 = vmul.f32 %v2701, %v2701
    %v2734 = vsel %vm441, %v2702, 0.0
    %2735 = vadd.xlane.f32.xlu0 %v2734
    %v2736 = vpop.xlane.xlu0 %2735
    %v2737 = vsel %vm441, %v2703, 0.0
    %2738 = vadd.xlane.f32.xlu0 %v2737
    %v2739 = vpop.xlane.xlu0 %2738
    %v2740 = vsel %vm441, %v2704, 0.0
    %2741 = vadd.xlane.f32.xlu0 %v2740
    %v2742 = vpop.xlane.xlu0 %2741
    %v2743 = vsel %vm441, %v2705, 0.0
    %2744 = vadd.xlane.f32.xlu0 %v2743
    %v2745 = vpop.xlane.xlu0 %2744
    %v2746 = vsel %vm441, %v2706, 0.0
    %2747 = vadd.xlane.f32.xlu0 %v2746
    %v2748 = vpop.xlane.xlu0 %2747
    %v2749 = vsel %vm441, %v2707, 0.0
    %2750 = vadd.xlane.f32.xlu0 %v2749
    %v2751 = vpop.xlane.xlu0 %2750
    %v2752 = vsel %vm441, %v2708, 0.0
    %2753 = vadd.xlane.f32.xlu0 %v2752
    %v2754 = vpop.xlane.xlu0 %2753
    %v2755 = vsel %vm441, %v2709, 0.0
    %2756 = vadd.xlane.f32.xlu0 %v2755
    %v2757 = vpop.xlane.xlu0 %2756
    %v2758 = vsel %vm441, %v2710, 0.0
    %2759 = vadd.xlane.f32.xlu0 %v2758
    %v2760 = vpop.xlane.xlu0 %2759
    %v2761 = vsel %vm441, %v2711, 0.0
    %2762 = vadd.xlane.f32.xlu0 %v2761
    %v2763 = vpop.xlane.xlu0 %2762
    %v2764 = vsel %vm441, %v2712, 0.0
    %2765 = vadd.xlane.f32.xlu0 %v2764
    %v2766 = vpop.xlane.xlu0 %2765
    %v2767 = vsel %vm441, %v2713, 0.0
    %2768 = vadd.xlane.f32.xlu0 %v2767
    %v2769 = vpop.xlane.xlu0 %2768
    %v2770 = vsel %vm441, %v2714, 0.0
    %2771 = vadd.xlane.f32.xlu0 %v2770
    %v2772 = vpop.xlane.xlu0 %2771
    %v2773 = vsel %vm441, %v2715, 0.0
    %2774 = vadd.xlane.f32.xlu0 %v2773
    %v2775 = vpop.xlane.xlu0 %2774
    %v2776 = vsel %vm441, %v2716, 0.0
    %2777 = vadd.xlane.f32.xlu0 %v2776
    %v2778 = vpop.xlane.xlu0 %2777
    %v2779 = vsel %vm441, %v2717, 0.0
    %2780 = vadd.xlane.f32.xlu0 %v2779
    %v2781 = vpop.xlane.xlu0 %2780
    %v2782 = vsel %vm441, %v2718, 0.0
    %2783 = vadd.xlane.f32.xlu0 %v2782
    %v2784 = vpop.xlane.xlu0 %2783
    %v2785 = vsel %vm441, %v2719, 0.0
    %2786 = vadd.xlane.f32.xlu0 %v2785
    %v2787 = vpop.xlane.xlu0 %2786
    %v2788 = vsel %vm441, %v2720, 0.0
    %2789 = vadd.xlane.f32.xlu0 %v2788
    %v2790 = vpop.xlane.xlu0 %2789
    %v2791 = vsel %vm441, %v2721, 0.0
    %2792 = vadd.xlane.f32.xlu0 %v2791
    %v2793 = vpop.xlane.xlu0 %2792
    %v2794 = vsel %vm441, %v2722, 0.0
    %2795 = vadd.xlane.f32.xlu0 %v2794
    %v2796 = vpop.xlane.xlu0 %2795
    %v2797 = vsel %vm441, %v2723, 0.0
    %2798 = vadd.xlane.f32.xlu0 %v2797
    %v2799 = vpop.xlane.xlu0 %2798
    %v2800 = vsel %vm441, %v2724, 0.0
    %2801 = vadd.xlane.f32.xlu0 %v2800
    %v2802 = vpop.xlane.xlu0 %2801
    %v2803 = vsel %vm441, %v2725, 0.0
    %2804 = vadd.xlane.f32.xlu0 %v2803
    %v2805 = vpop.xlane.xlu0 %2804
    %v2806 = vsel %vm441, %v2726, 0.0
    %2807 = vadd.xlane.f32.xlu0 %v2806
    %v2808 = vpop.xlane.xlu0 %2807
    %v2809 = vsel %vm441, %v2727, 0.0
    %2810 = vadd.xlane.f32.xlu0 %v2809
    %v2811 = vpop.xlane.xlu0 %2810
    %v2812 = vsel %vm441, %v2728, 0.0
    %2813 = vadd.xlane.f32.xlu0 %v2812
    %v2814 = vpop.xlane.xlu0 %2813
    %v2815 = vsel %vm441, %v2729, 0.0
    %2816 = vadd.xlane.f32.xlu0 %v2815
    %v2817 = vpop.xlane.xlu0 %2816
    %v2818 = vsel %vm441, %v2730, 0.0
    %2819 = vadd.xlane.f32.xlu0 %v2818
    %v2820 = vpop.xlane.xlu0 %2819
    %v2821 = vsel %vm441, %v2731, 0.0
    %2822 = vadd.xlane.f32.xlu0 %v2821
    %v2823 = vpop.xlane.xlu0 %2822
    %v2824 = vsel %vm441, %v2732, 0.0
    %2825 = vadd.xlane.f32.xlu0 %v2824
    %v2826 = vpop.xlane.xlu0 %2825
    %v2827 = vsel %vm441, %v2733, 0.0
    %2828 = vadd.xlane.f32.xlu0 %v2827
    %v2829 = vpop.xlane.xlu0 %2828
    %v2830 = vmul.f32 %v2736, %v1446
    %v2831 = vmul.f32 %v2739, %v1446
    %v2832 = vmul.f32 %v2742, %v1446
    %v2833 = vmul.f32 %v2745, %v1446
    %v2834 = vmul.f32 %v2748, %v1446
    %v2835 = vmul.f32 %v2751, %v1446
    %v2836 = vmul.f32 %v2754, %v1446
    %v2837 = vmul.f32 %v2757, %v1446
    %v2838 = vmul.f32 %v2760, %v1446
    %v2839 = vmul.f32 %v2763, %v1446
    %v2840 = vmul.f32 %v2766, %v1446
    %v2841 = vmul.f32 %v2769, %v1446
    %v2842 = vmul.f32 %v2772, %v1446
    %v2843 = vmul.f32 %v2775, %v1446
    %v2844 = vmul.f32 %v2778, %v1446
    %v2845 = vmul.f32 %v2781, %v1446
    %v2846 = vmul.f32 %v2784, %v1446
    %v2847 = vmul.f32 %v2787, %v1446
    %v2848 = vmul.f32 %v2790, %v1446
    %v2849 = vmul.f32 %v2793, %v1446
    %v2850 = vmul.f32 %v2796, %v1446
    %v2851 = vmul.f32 %v2799, %v1446
    %v2852 = vmul.f32 %v2802, %v1446
    %v2853 = vmul.f32 %v2805, %v1446
    %v2854 = vmul.f32 %v2808, %v1446
    %v2855 = vmul.f32 %v2811, %v1446
    %v2856 = vmul.f32 %v2814, %v1446
    %v2857 = vmul.f32 %v2817, %v1446
    %v2858 = vmul.f32 %v2820, %v1446
    %v2859 = vmul.f32 %v2823, %v1446
    %v2860 = vmul.f32 %v2826, %v1446
    %v2861 = vmul.f32 %v2829, %v1446
    %v2862 = vadd.f32 %v2830, 1e-05
    %v2863 = vadd.f32 %v2831, 1e-05
    %v2864 = vadd.f32 %v2832, 1e-05
    %v2865 = vadd.f32 %v2833, 1e-05
    %v2866 = vadd.f32 %v2834, 1e-05
    %v2867 = vadd.f32 %v2835, 1e-05
    %v2868 = vadd.f32 %v2836, 1e-05
    %v2869 = vadd.f32 %v2837, 1e-05
    %v2870 = vadd.f32 %v2838, 1e-05
    %v2871 = vadd.f32 %v2839, 1e-05
    %v2872 = vadd.f32 %v2840, 1e-05
    %v2873 = vadd.f32 %v2841, 1e-05
    %v2874 = vadd.f32 %v2842, 1e-05
    %v2875 = vadd.f32 %v2843, 1e-05
    %v2876 = vadd.f32 %v2844, 1e-05
    %v2877 = vadd.f32 %v2845, 1e-05
    %v2878 = vadd.f32 %v2846, 1e-05
    %v2879 = vadd.f32 %v2847, 1e-05
    %v2880 = vadd.f32 %v2848, 1e-05
    %v2881 = vadd.f32 %v2849, 1e-05
    %v2882 = vadd.f32 %v2850, 1e-05
    %v2883 = vadd.f32 %v2851, 1e-05
    %v2884 = vadd.f32 %v2852, 1e-05
    %v2885 = vadd.f32 %v2853, 1e-05
    %v2886 = vadd.f32 %v2854, 1e-05
    %v2887 = vadd.f32 %v2855, 1e-05
    %v2888 = vadd.f32 %v2856, 1e-05
    %v2889 = vadd.f32 %v2857, 1e-05
    %v2890 = vadd.f32 %v2858, 1e-05
    %v2891 = vadd.f32 %v2859, 1e-05
    %v2892 = vadd.f32 %v2860, 1e-05
    %v2893 = vadd.f32 %v2861, 1e-05
    %v2894 = vrsqrt.pop %v2862
    %v2895 = vrsqrt.pop %v2863
    %v2896 = vrsqrt.pop %v2864
    %v2897 = vrsqrt.pop %v2865
    %v2898 = vrsqrt.pop %v2866
    %v2899 = vrsqrt.pop %v2867
    %v2900 = vrsqrt.pop %v2868
    %v2901 = vrsqrt.pop %v2869
    %v2902 = vrsqrt.pop %v2870
    %v2903 = vrsqrt.pop %v2871
    %v2904 = vrsqrt.pop %v2872
    %v2905 = vrsqrt.pop %v2873
    %v2906 = vrsqrt.pop %v2874
    %v2907 = vrsqrt.pop %v2875
    %v2908 = vrsqrt.pop %v2876
    %v2909 = vrsqrt.pop %v2877
    %v2910 = vrsqrt.pop %v2878
    %v2911 = vrsqrt.pop %v2879
    %v2912 = vrsqrt.pop %v2880
    %v2913 = vrsqrt.pop %v2881
    %v2914 = vrsqrt.pop %v2882
    %v2915 = vrsqrt.pop %v2883
    %v2916 = vrsqrt.pop %v2884
    %v2917 = vrsqrt.pop %v2885
    %v2918 = vrsqrt.pop %v2886
    %v2919 = vrsqrt.pop %v2887
    %v2920 = vrsqrt.pop %v2888
    %v2921 = vrsqrt.pop %v2889
    %v2922 = vrsqrt.pop %v2890
    %v2923 = vrsqrt.pop %v2891
    %v2924 = vrsqrt.pop %v2892
    %v2925 = vrsqrt.pop %v2893
    %v2926 = vmul.f32 %v2670, %v2894
    %v2927 = vmul.f32 %v2671, %v2895
    %v2928 = vmul.f32 %v2672, %v2896
    %v2929 = vmul.f32 %v2673, %v2897
    %v2930 = vmul.f32 %v2674, %v2898
    %v2931 = vmul.f32 %v2675, %v2899
    %v2932 = vmul.f32 %v2676, %v2900
    %v2933 = vmul.f32 %v2677, %v2901
    %v2934 = vmul.f32 %v2678, %v2902
    %v2935 = vmul.f32 %v2679, %v2903
    %v2936 = vmul.f32 %v2680, %v2904
    %v2937 = vmul.f32 %v2681, %v2905
    %v2938 = vmul.f32 %v2682, %v2906
    %v2939 = vmul.f32 %v2683, %v2907
    %v2940 = vmul.f32 %v2684, %v2908
    %v2941 = vmul.f32 %v2685, %v2909
    %v2942 = vmul.f32 %v2686, %v2910
    %v2943 = vmul.f32 %v2687, %v2911
    %v2944 = vmul.f32 %v2688, %v2912
    %v2945 = vmul.f32 %v2689, %v2913
    %v2946 = vmul.f32 %v2690, %v2914
    %v2947 = vmul.f32 %v2691, %v2915
    %v2948 = vmul.f32 %v2692, %v2916
    %v2949 = vmul.f32 %v2693, %v2917
    %v2950 = vmul.f32 %v2694, %v2918
    %v2951 = vmul.f32 %v2695, %v2919
    %v2952 = vmul.f32 %v2696, %v2920
    %v2953 = vmul.f32 %v2697, %v2921
    %v2954 = vmul.f32 %v2698, %v2922
    %v2955 = vmul.f32 %v2699, %v2923
    %v2956 = vmul.f32 %v2700, %v2924
    %v2957 = vmul.f32 %v2701, %v2925
    %v2958 = vmul.f32 %v2926, %v1771
    %v2959 = vmul.f32 %v2927, %v1771
    %v2960 = vmul.f32 %v2928, %v1771
    %v2961 = vmul.f32 %v2929, %v1771
    %v2962 = vmul.f32 %v2930, %v1771
    %v2963 = vmul.f32 %v2931, %v1771
    %v2964 = vmul.f32 %v2932, %v1771
    %v2965 = vmul.f32 %v2933, %v1771
    %v2966 = vmul.f32 %v2934, %v1771
    %v2967 = vmul.f32 %v2935, %v1771
    %v2968 = vmul.f32 %v2936, %v1771
    %v2969 = vmul.f32 %v2937, %v1771
    %v2970 = vmul.f32 %v2938, %v1771
    %v2971 = vmul.f32 %v2939, %v1771
    %v2972 = vmul.f32 %v2940, %v1771
    %v2973 = vmul.f32 %v2941, %v1771
    %v2974 = vmul.f32 %v2942, %v1771
    %v2975 = vmul.f32 %v2943, %v1771
    %v2976 = vmul.f32 %v2944, %v1771
    %v2977 = vmul.f32 %v2945, %v1771
    %v2978 = vmul.f32 %v2946, %v1771
    %v2979 = vmul.f32 %v2947, %v1771
    %v2980 = vmul.f32 %v2948, %v1771
    %v2981 = vmul.f32 %v2949, %v1771
    %v2982 = vmul.f32 %v2950, %v1771
    %v2983 = vmul.f32 %v2951, %v1771
    %v2984 = vmul.f32 %v2952, %v1771
    %v2985 = vmul.f32 %v2953, %v1771
    %v2986 = vmul.f32 %v2954, %v1771
    %v2987 = vmul.f32 %v2955, %v1771
    %v2988 = vmul.f32 %v2956, %v1771
    %v2989 = vmul.f32 %v2957, %v1771
    %v2990 = vadd.f32 %v2958, %v1809
    %v2991 = vadd.f32 %v2959, %v1809
    %v2992 = vadd.f32 %v2960, %v1809
    %v2993 = vadd.f32 %v2961, %v1809
    %v2994 = vadd.f32 %v2962, %v1809
    %v2995 = vadd.f32 %v2963, %v1809
    %v2996 = vadd.f32 %v2964, %v1809
    %v2997 = vadd.f32 %v2965, %v1809
    %v2998 = vadd.f32 %v2966, %v1809
    %v2999 = vadd.f32 %v2967, %v1809
    %v3000 = vadd.f32 %v2968, %v1809
    %v3001 = vadd.f32 %v2969, %v1809
    %v3002 = vadd.f32 %v2970, %v1809
    %v3003 = vadd.f32 %v2971, %v1809
    %v3004 = vadd.f32 %v2972, %v1809
    %v3005 = vadd.f32 %v2973, %v1809
    %v3006 = vadd.f32 %v2974, %v1809
    %v3007 = vadd.f32 %v2975, %v1809
    %v3008 = vadd.f32 %v2976, %v1809
    %v3009 = vadd.f32 %v2977, %v1809
    %v3010 = vadd.f32 %v2978, %v1809
    %v3011 = vadd.f32 %v2979, %v1809
    %v3012 = vadd.f32 %v2980, %v1809
    %v3013 = vadd.f32 %v2981, %v1809
    %v3014 = vadd.f32 %v2982, %v1809
    %v3015 = vadd.f32 %v2983, %v1809
    %v3016 = vadd.f32 %v2984, %v1809
    %v3017 = vadd.f32 %v2985, %v1809
    %v3018 = vadd.f32 %v2986, %v1809
    %v3019 = vadd.f32 %v2987, %v1809
    %v3020 = vadd.f32 %v2988, %v1809
    %v3021 = vadd.f32 %v2989, %v1809
    %vm3022 = vcmp.gt.f32.partialorder %v2990, 0.0
    %vm3023 = vcmp.gt.f32.partialorder %v2991, 0.0
    %vm3024 = vcmp.gt.f32.partialorder %v2992, 0.0
    %vm3025 = vcmp.gt.f32.partialorder %v2993, 0.0
    %vm3026 = vcmp.gt.f32.partialorder %v2994, 0.0
    %vm3027 = vcmp.gt.f32.partialorder %v2995, 0.0
    %vm3028 = vcmp.gt.f32.partialorder %v2996, 0.0
    %vm3029 = vcmp.gt.f32.partialorder %v2997, 0.0
    %vm3030 = vcmp.gt.f32.partialorder %v2998, 0.0
    %vm3031 = vcmp.gt.f32.partialorder %v2999, 0.0
    %vm3032 = vcmp.gt.f32.partialorder %v3000, 0.0
    %vm3033 = vcmp.gt.f32.partialorder %v3001, 0.0
    %vm3034 = vcmp.gt.f32.partialorder %v3002, 0.0
    %vm3035 = vcmp.gt.f32.partialorder %v3003, 0.0
    %vm3036 = vcmp.gt.f32.partialorder %v3004, 0.0
    %vm3037 = vcmp.gt.f32.partialorder %v3005, 0.0
    %vm3038 = vcmp.gt.f32.partialorder %v3006, 0.0
    %vm3039 = vcmp.gt.f32.partialorder %v3007, 0.0
    %vm3040 = vcmp.gt.f32.partialorder %v3008, 0.0
    %vm3041 = vcmp.gt.f32.partialorder %v3009, 0.0
    %vm3042 = vcmp.gt.f32.partialorder %v3010, 0.0
    %vm3043 = vcmp.gt.f32.partialorder %v3011, 0.0
    %vm3044 = vcmp.gt.f32.partialorder %v3012, 0.0
    %vm3045 = vcmp.gt.f32.partialorder %v3013, 0.0
    %vm3046 = vcmp.gt.f32.partialorder %v3014, 0.0
    %vm3047 = vcmp.gt.f32.partialorder %v3015, 0.0
    %vm3048 = vcmp.gt.f32.partialorder %v3016, 0.0
    %vm3049 = vcmp.gt.f32.partialorder %v3017, 0.0
    %vm3050 = vcmp.gt.f32.partialorder %v3018, 0.0
    %vm3051 = vcmp.gt.f32.partialorder %v3019, 0.0
    %vm3052 = vcmp.gt.f32.partialorder %v3020, 0.0
    %vm3053 = vcmp.gt.f32.partialorder %v3021, 0.0
    %v3054 = vmul.f32 %v2990, 0.01
    %v3055 = vmul.f32 %v2991, 0.01
    %v3056 = vmul.f32 %v2992, 0.01
    %v3057 = vmul.f32 %v2993, 0.01
    %v3058 = vmul.f32 %v2994, 0.01
    %v3059 = vmul.f32 %v2995, 0.01
    %v3060 = vmul.f32 %v2996, 0.01
    %v3061 = vmul.f32 %v2997, 0.01
    %v3062 = vmul.f32 %v2998, 0.01
    %v3063 = vmul.f32 %v2999, 0.01
    %v3064 = vmul.f32 %v3000, 0.01
    %v3065 = vmul.f32 %v3001, 0.01
    %v3066 = vmul.f32 %v3002, 0.01
    %v3067 = vmul.f32 %v3003, 0.01
    %v3068 = vmul.f32 %v3004, 0.01
    %v3069 = vmul.f32 %v3005, 0.01
    %v3070 = vmul.f32 %v3006, 0.01
    %v3071 = vmul.f32 %v3007, 0.01
    %v3072 = vmul.f32 %v3008, 0.01
    %v3073 = vmul.f32 %v3009, 0.01
    %v3074 = vmul.f32 %v3010, 0.01
    %v3075 = vmul.f32 %v3011, 0.01
    %v3076 = vmul.f32 %v3012, 0.01
    %v3077 = vmul.f32 %v3013, 0.01
    %v3078 = vmul.f32 %v3014, 0.01
    %v3079 = vmul.f32 %v3015, 0.01
    %v3080 = vmul.f32 %v3016, 0.01
    %v3081 = vmul.f32 %v3017, 0.01
    %v3082 = vmul.f32 %v3018, 0.01
    %v3083 = vmul.f32 %v3019, 0.01
    %v3084 = vmul.f32 %v3020, 0.01
    %v3085 = vmul.f32 %v3021, 0.01
    %v3086 = vsel %vm3022, %v2990, %v3054
    %v3087 = vsel %vm3023, %v2991, %v3055
    %v3088 = vsel %vm3024, %v2992, %v3056
    %v3089 = vsel %vm3025, %v2993, %v3057
    %v3090 = vsel %vm3026, %v2994, %v3058
    %v3091 = vsel %vm3027, %v2995, %v3059
    %v3092 = vsel %vm3028, %v2996, %v3060
    %v3093 = vsel %vm3029, %v2997, %v3061
    %v3094 = vsel %vm3030, %v2998, %v3062
    %v3095 = vsel %vm3031, %v2999, %v3063
    %v3096 = vsel %vm3032, %v3000, %v3064
    %v3097 = vsel %vm3033, %v3001, %v3065
    %v3098 = vsel %vm3034, %v3002, %v3066
    %v3099 = vsel %vm3035, %v3003, %v3067
    %v3100 = vsel %vm3036, %v3004, %v3068
    %v3101 = vsel %vm3037, %v3005, %v3069
    %v3102 = vsel %vm3038, %v3006, %v3070
    %v3103 = vsel %vm3039, %v3007, %v3071
    %v3104 = vsel %vm3040, %v3008, %v3072
    %v3105 = vsel %vm3041, %v3009, %v3073
    %v3106 = vsel %vm3042, %v3010, %v3074
    %v3107 = vsel %vm3043, %v3011, %v3075
    %v3108 = vsel %vm3044, %v3012, %v3076
    %v3109 = vsel %vm3045, %v3013, %v3077
    %v3110 = vsel %vm3046, %v3014, %v3078
    %v3111 = vsel %vm3047, %v3015, %v3079
    %v3112 = vsel %vm3048, %v3016, %v3080
    %v3113 = vsel %vm3049, %v3017, %v3081
    %v3114 = vsel %vm3050, %v3018, %v3082
    %v3115 = vsel %vm3051, %v3019, %v3083
    %v3116 = vsel %vm3052, %v3020, %v3084
    %v3117 = vsel %vm3053, %v3021, %v3085
    %v3118 = vadd.f32 %v3086, %v525
    %v3119 = vadd.f32 %v3087, %v528
    %v3120 = vadd.f32 %v3088, %v533
    %v3121 = vadd.f32 %v3089, %v536
    %v3122 = vadd.f32 %v3090, %v541
    %v3123 = vadd.f32 %v3091, %v544
    %v3124 = vadd.f32 %v3092, %v549
    %v3125 = vadd.f32 %v3093, %v552
    %v3126 = vadd.f32 %v3094, %v557
    %v3127 = vadd.f32 %v3095, %v560
    %v3128 = vadd.f32 %v3096, %v565
    %v3129 = vadd.f32 %v3097, %v568
    %v3130 = vadd.f32 %v3098, %v573
    %v3131 = vadd.f32 %v3099, %v576
    %v3132 = vadd.f32 %v3100, %v581
    %v3133 = vadd.f32 %v3101, %v584
    %v3134 = vadd.f32 %v3102, %v589
    %v3135 = vadd.f32 %v3103, %v592
    %v3136 = vadd.f32 %v3104, %v597
    %v3137 = vadd.f32 %v3105, %v600
    %v3138 = vadd.f32 %v3106, %v605
    %v3139 = vadd.f32 %v3107, %v608
    %v3140 = vadd.f32 %v3108, %v613
    %v3141 = vadd.f32 %v3109, %v616
    %v3142 = vadd.f32 %v3110, %v621
    %v3143 = vadd.f32 %v3111, %v624
    %v3144 = vadd.f32 %v3112, %v629
    %v3145 = vadd.f32 %v3113, %v632
    %v3146 = vadd.f32 %v3114, %v637
    %v3147 = vadd.f32 %v3115, %v640
    %v3148 = vadd.f32 %v3116, %v645
    %v3149 = vadd.f32 %v3117, %v648
    %v3150 = vpack.c.bf16 %v3119, %v3118
    %v3151 = vpack.c.bf16 %v3121, %v3120
    %v3152 = vpack.c.bf16 %v3123, %v3122
    %v3153 = vpack.c.bf16 %v3125, %v3124
    %v3154 = vpack.c.bf16 %v3127, %v3126
    %v3155 = vpack.c.bf16 %v3129, %v3128
    %v3156 = vpack.c.bf16 %v3131, %v3130
    %v3157 = vpack.c.bf16 %v3133, %v3132
    %v3158 = vpack.c.bf16 %v3135, %v3134
    %v3159 = vpack.c.bf16 %v3137, %v3136
    %v3160 = vpack.c.bf16 %v3139, %v3138
    %v3161 = vpack.c.bf16 %v3141, %v3140
    %v3162 = vpack.c.bf16 %v3143, %v3142
    %v3163 = vpack.c.bf16 %v3145, %v3144
    %v3164 = vpack.c.bf16 %v3147, %v3146
    %v3165 = vpack.c.bf16 %v3149, %v3148
    %s3166 = scalar_lea.vmem [#allocation8], 64
    %v3167 = vld [vmem:[%s3166] sm:$0xf]
    %v3168 = vld [vmem:[%s3166 + $0x4] sm:$0xf]
    %v3169 = vld [vmem:[%s3166 + $0x8] sm:$0xf]
    %v3170 = vld [vmem:[%s3166 + $0xc] sm:$0xf]
    %v3171 = vld [vmem:[%s3166 + $0x10] sm:$0xf]
    %v3172 = vld [vmem:[%s3166 + $0x14] sm:$0xf]
    %v3173 = vld [vmem:[%s3166 + $0x18] sm:$0xf]
    %v3174 = vld [vmem:[%s3166 + $0x1c] sm:$0xf]
    %v3183 = vunpack.c.l.b16 %v3167
    %v3184 = vunpack.c.l.b16 %v3168
    %v3185 = vunpack.c.l.b16 %v3169
    %v3186 = vunpack.c.l.b16 %v3170
    %v3187 = vunpack.c.l.b16 %v3171
    %v3188 = vunpack.c.l.b16 %v3172
    %v3189 = vunpack.c.l.b16 %v3173
    %v3190 = vunpack.c.l.b16 %v3174
    %v3191 = vpack.c.b16 %v3184, %v3183
    %v3192 = vpack.c.b16 %v3186, %v3185
    %v3193 = vpack.c.b16 %v3188, %v3187
    %v3194 = vpack.c.b16 %v3190, %v3189
    %v3200 = vsel %vm441, %v3150, 0
    %v3203 = vsel %vm441, %v3151, 0
    %v3206 = vsel %vm441, %v3152, 0
    %v3209 = vsel %vm441, %v3153, 0
    %v3212 = vsel %vm441, %v3154, 0
    %v3215 = vsel %vm441, %v3155, 0
    %v3218 = vsel %vm441, %v3156, 0
    %v3221 = vsel %vm441, %v3157, 0
    %v3224 = vsel %vm441, %v3158, 0
    %v3227 = vsel %vm441, %v3159, 0
    %v3230 = vsel %vm441, %v3160, 0
    %v3233 = vsel %vm441, %v3161, 0
    %v3236 = vsel %vm441, %v3162, 0
    %v3239 = vsel %vm441, %v3163, 0
    %v3242 = vsel %vm441, %v3164, 0
    %v3245 = vsel %vm441, %v3165, 0
    %3247 = vmatprep.subr.bf16.mxu0 0
    %3248 = vmatpush1.bf16.msra.mxu0 %v3191
    %3249 = vmatprep.subr.bf16.mxu0 0
    %3250 = vmatpush1.bf16.msra.mxu0 %v3192
    %3251 = vmatprep.subr.bf16.mxu0 0
    %3252 = vmatpush1.bf16.msra.mxu0 %v3193
    %3253 = vmatprep.subr.bf16.mxu0 0
    %3254 = vmatpush1.bf16.msra.mxu0 %v3194
    %3255 = vmatprep.subr.bf16.mxu0 0
    %3256 = vmatpush1.bf16.msra.mxu0 0
    %3257 = vmatprep.subr.bf16.mxu0 0
    %3258 = vmatpush1.bf16.msra.mxu0 0
    %3259 = vmatprep.subr.bf16.mxu0 0
    %3260 = vmatpush1.bf16.msra.mxu0 0
    %3261 = vmatprep.subr.bf16.mxu0 0
    %3262 = vmatpush1.bf16.msra.mxu0 0
    %3263 = vmatprep.subr.bf16.mxu0 0
    %3264 = vmatpush1.bf16.msra.mxu0 0
    %3265 = vmatprep.subr.bf16.mxu0 0
    %3266 = vmatpush1.bf16.msra.mxu0 0
    %3267 = vmatprep.subr.bf16.mxu0 0
    %3268 = vmatpush1.bf16.msra.mxu0 0
    %3269 = vmatprep.subr.bf16.mxu0 0
    %3270 = vmatpush1.bf16.msra.mxu0 0
    %3271 = vmatprep.subr.bf16.mxu0 0
    %3272 = vmatpush1.bf16.msra.mxu0 0
    %3273 = vmatprep.subr.bf16.mxu0 0
    %3274 = vmatpush1.bf16.msra.mxu0 0
    %3275 = vmatprep.subr.bf16.mxu0 0
    %3276 = vmatpush1.bf16.msra.mxu0 0
    %3277 = vmatprep.subr.bf16.mxu0 0
    %3278 = vmatpush1.bf16.msra.mxu0 0
    %3279 = vmatprep.mubr.bf16.mxu0 0
    %3280 = vmatmul.mubr.bf16.gmra.mrb[0].mxu0 %v3200
    %v3281 = vpop.f32.mrb[0].mxu0
    %v3282 = vadd.f32 0.0, %v3281
    %v3283 = vpop.f32.mrb[0].mxu0
    %v3284 = vpop.f32.mrb[0].mxu0
    %v3285 = vadd.f32 0.0, %v3284
    %v3286 = vpop.f32.mrb[0].mxu0
    %3287 = vmatprep.mubr.bf16.mxu0 0
    %3288 = vmatmul.mubr.bf16.gmra.mrb[0].mxu0 %v3203
    %v3289 = vpop.f32.mrb[0].mxu0
    %v3290 = vadd.f32 0.0, %v3289
    %v3291 = vpop.f32.mrb[0].mxu0
    %v3292 = vpop.f32.mrb[0].mxu0
    %v3293 = vadd.f32 0.0, %v3292
    %v3294 = vpop.f32.mrb[0].mxu0
    %3295 = vmatprep.mubr.bf16.mxu0 0
    %3296 = vmatmul.mubr.bf16.gmra.mrb[0].mxu0 %v3206
    %v3297 = vpop.f32.mrb[0].mxu0
    %v3298 = vadd.f32 0.0, %v3297
    %v3299 = vpop.f32.mrb[0].mxu0
    %v3300 = vpop.f32.mrb[0].mxu0
    %v3301 = vadd.f32 0.0, %v3300
    %v3302 = vpop.f32.mrb[0].mxu0
    %3303 = vmatprep.mubr.bf16.mxu0 0
    %3304 = vmatmul.mubr.bf16.gmra.mrb[0].mxu0 %v3209
    %v3305 = vpop.f32.mrb[0].mxu0
    %v3306 = vadd.f32 0.0, %v3305
    %v3307 = vpop.f32.mrb[0].mxu0
    %v3308 = vpop.f32.mrb[0].mxu0
    %v3309 = vadd.f32 0.0, %v3308
    %v3310 = vpop.f32.mrb[0].mxu0
    %3311 = vmatprep.mubr.bf16.mxu0 0
    %3312 = vmatmul.mubr.bf16.gmra.mrb[0].mxu0 %v3212
    %v3313 = vpop.f32.mrb[0].mxu0
    %v3314 = vadd.f32 0.0, %v3313
    %v3315 = vpop.f32.mrb[0].mxu0
    %v3316 = vpop.f32.mrb[0].mxu0
    %v3317 = vadd.f32 0.0, %v3316
    %v3318 = vpop.f32.mrb[0].mxu0
    %3319 = vmatprep.mubr.bf16.mxu0 0
    %3320 = vmatmul.mubr.bf16.gmra.mrb[0].mxu0 %v3215
    %v3321 = vpop.f32.mrb[0].mxu0
    %v3322 = vadd.f32 0.0, %v3321
    %v3323 = vpop.f32.mrb[0].mxu0
    %v3324 = vpop.f32.mrb[0].mxu0
    %v3325 = vadd.f32 0.0, %v3324
    %v3326 = vpop.f32.mrb[0].mxu0
    %3327 = vmatprep.mubr.bf16.mxu0 0
    %3328 = vmatmul.mubr.bf16.gmra.mrb[0].mxu0 %v3218
    %v3329 = vpop.f32.mrb[0].mxu0
    %v3330 = vadd.f32 0.0, %v3329
    %v3331 = vpop.f32.mrb[0].mxu0
    %v3332 = vpop.f32.mrb[0].mxu0
    %v3333 = vadd.f32 0.0, %v3332
    %v3334 = vpop.f32.mrb[0].mxu0
    %3335 = vmatprep.mubr.bf16.mxu0 0
    %3336 = vmatmul.mubr.bf16.gmra.mrb[0].mxu0 %v3221
    %v3337 = vpop.f32.mrb[0].mxu0
    %v3338 = vadd.f32 0.0, %v3337
    %v3339 = vpop.f32.mrb[0].mxu0
    %v3340 = vpop.f32.mrb[0].mxu0
    %v3341 = vadd.f32 0.0, %v3340
    %v3342 = vpop.f32.mrb[0].mxu0
    %3343 = vmatprep.mubr.bf16.mxu0 0
    %3344 = vmatmul.mubr.bf16.gmra.mrb[0].mxu0 %v3224
    %v3345 = vpop.f32.mrb[0].mxu0
    %v3346 = vadd.f32 0.0, %v3345
    %v3347 = vpop.f32.mrb[0].mxu0
    %v3348 = vpop.f32.mrb[0].mxu0
    %v3349 = vadd.f32 0.0, %v3348
    %v3350 = vpop.f32.mrb[0].mxu0
    %3351 = vmatprep.mubr.bf16.mxu0 0
    %3352 = vmatmul.mubr.bf16.gmra.mrb[0].mxu0 %v3227
    %v3353 = vpop.f32.mrb[0].mxu0
    %v3354 = vadd.f32 0.0, %v3353
    %v3355 = vpop.f32.mrb[0].mxu0
    %v3356 = vpop.f32.mrb[0].mxu0
    %v3357 = vadd.f32 0.0, %v3356
    %v3358 = vpop.f32.mrb[0].mxu0
    %3359 = vmatprep.mubr.bf16.mxu0 0
    %3360 = vmatmul.mubr.bf16.gmra.mrb[0].mxu0 %v3230
    %v3361 = vpop.f32.mrb[0].mxu0
    %v3362 = vadd.f32 0.0, %v3361
    %v3363 = vpop.f32.mrb[0].mxu0
    %v3364 = vpop.f32.mrb[0].mxu0
    %v3365 = vadd.f32 0.0, %v3364
    %v3366 = vpop.f32.mrb[0].mxu0
    %3367 = vmatprep.mubr.bf16.mxu0 0
    %3368 = vmatmul.mubr.bf16.gmra.mrb[0].mxu0 %v3233
    %v3369 = vpop.f32.mrb[0].mxu0
    %v3370 = vadd.f32 0.0, %v3369
    %v3371 = vpop.f32.mrb[0].mxu0
    %v3372 = vpop.f32.mrb[0].mxu0
    %v3373 = vadd.f32 0.0, %v3372
    %v3374 = vpop.f32.mrb[0].mxu0
    %3375 = vmatprep.mubr.bf16.mxu0 0
    %3376 = vmatmul.mubr.bf16.gmra.mrb[0].mxu0 %v3236
    %v3377 = vpop.f32.mrb[0].mxu0
    %v3378 = vadd.f32 0.0, %v3377
    %v3379 = vpop.f32.mrb[0].mxu0
    %v3380 = vpop.f32.mrb[0].mxu0
    %v3381 = vadd.f32 0.0, %v3380
    %v3382 = vpop.f32.mrb[0].mxu0
    %3383 = vmatprep.mubr.bf16.mxu0 0
    %3384 = vmatmul.mubr.bf16.gmra.mrb[0].mxu0 %v3239
    %v3385 = vpop.f32.mrb[0].mxu0
    %v3386 = vadd.f32 0.0, %v3385
    %v3387 = vpop.f32.mrb[0].mxu0
    %v3388 = vpop.f32.mrb[0].mxu0
    %v3389 = vadd.f32 0.0, %v3388
    %v3390 = vpop.f32.mrb[0].mxu0
    %3391 = vmatprep.mubr.bf16.mxu0 0
    %3392 = vmatmul.mubr.bf16.gmra.mrb[0].mxu0 %v3242
    %v3393 = vpop.f32.mrb[0].mxu0
    %v3394 = vadd.f32 0.0, %v3393
    %v3395 = vpop.f32.mrb[0].mxu0
    %v3396 = vpop.f32.mrb[0].mxu0
    %v3397 = vadd.f32 0.0, %v3396
    %v3398 = vpop.f32.mrb[0].mxu0
    %3399 = vmatprep.mubr.bf16.mxu0 0
    %3400 = vmatmul.mubr.bf16.gmra.mrb[0].mxu0 %v3245
    %v3401 = vpop.f32.mrb[0].mxu0
    %v3402 = vadd.f32 0.0, %v3401
    %v3403 = vpop.f32.mrb[0].mxu0
    %v3404 = vpop.f32.mrb[0].mxu0
    %v3405 = vadd.f32 0.0, %v3404
    %v3406 = vpop.f32.mrb[0].mxu0
    %3407 = vdwg.mxu0
    %v3408 = vpack.c.bf16 %v3285, %v3282
    %v3409 = vpack.c.bf16 %v3293, %v3290
    %v3410 = vpack.c.bf16 %v3301, %v3298
    %v3411 = vpack.c.bf16 %v3309, %v3306
    %v3412 = vpack.c.bf16 %v3317, %v3314
    %v3413 = vpack.c.bf16 %v3325, %v3322
    %v3414 = vpack.c.bf16 %v3333, %v3330
    %v3415 = vpack.c.bf16 %v3341, %v3338
    %v3416 = vpack.c.bf16 %v3349, %v3346
    %v3417 = vpack.c.bf16 %v3357, %v3354
    %v3418 = vpack.c.bf16 %v3365, %v3362
    %v3419 = vpack.c.bf16 %v3373, %v3370
    %v3420 = vpack.c.bf16 %v3381, %v3378
    %v3421 = vpack.c.bf16 %v3389, %v3386
    %v3422 = vpack.c.bf16 %v3397, %v3394
    %v3423 = vpack.c.bf16 %v3405, %v3402
    %3440 = vrot.lane.b32.xlu0 %v3408, 64
    %v3441 = vpop.permute.xlu0 %3440
    %3442 = vrot.lane.b32.xlu0 %v3409, 64
    %v3443 = vpop.permute.xlu0 %3442
    %3444 = vrot.lane.b32.xlu0 %v3410, 64
    %v3445 = vpop.permute.xlu0 %3444
    %3446 = vrot.lane.b32.xlu0 %v3411, 64
    %v3447 = vpop.permute.xlu0 %3446
    %3448 = vrot.lane.b32.xlu0 %v3412, 64
    %v3449 = vpop.permute.xlu0 %3448
    %3450 = vrot.lane.b32.xlu0 %v3413, 64
    %v3451 = vpop.permute.xlu0 %3450
    %3452 = vrot.lane.b32.xlu0 %v3414, 64
    %v3453 = vpop.permute.xlu0 %3452
    %3454 = vrot.lane.b32.xlu0 %v3415, 64
    %v3455 = vpop.permute.xlu0 %3454
    %3456 = vrot.lane.b32.xlu0 %v3416, 64
    %v3457 = vpop.permute.xlu0 %3456
    %3458 = vrot.lane.b32.xlu0 %v3417, 64
    %v3459 = vpop.permute.xlu0 %3458
    %3460 = vrot.lane.b32.xlu0 %v3418, 64
    %v3461 = vpop.permute.xlu0 %3460
    %3462 = vrot.lane.b32.xlu0 %v3419, 64
    %v3463 = vpop.permute.xlu0 %3462
    %3464 = vrot.lane.b32.xlu0 %v3420, 64
    %v3465 = vpop.permute.xlu0 %3464
    %3466 = vrot.lane.b32.xlu0 %v3421, 64
    %v3467 = vpop.permute.xlu0 %3466
    %3468 = vrot.lane.b32.xlu0 %v3422, 64
    %v3469 = vpop.permute.xlu0 %3468
    %3470 = vrot.lane.b32.xlu0 %v3423, 64
    %v3471 = vpop.permute.xlu0 %3470
    %3488 = vmatprep.subr.bf16.mxu0 0
    %3489 = vmatpush1.bf16.msra.mxu0 %v3441
    %3490 = vmatprep.subr.bf16.mxu0 0
    %3491 = vmatpush1.bf16.msra.mxu0 %v3443
    %3492 = vmatprep.subr.bf16.mxu0 0
    %3493 = vmatpush1.bf16.msra.mxu0 %v3445
    %3494 = vmatprep.subr.bf16.mxu0 0
    %3495 = vmatpush1.bf16.msra.mxu0 %v3447
    %3496 = vmatprep.subr.bf16.mxu0 0
    %3497 = vmatpush1.bf16.msra.mxu0 %v3449
    %3498 = vmatprep.subr.bf16.mxu0 0
    %3499 = vmatpush1.bf16.msra.mxu0 %v3451
    %3500 = vmatprep.subr.bf16.mxu0 0
    %3501 = vmatpush1.bf16.msra.mxu0 %v3453
    %3502 = vmatprep.subr.bf16.mxu0 0
    %3503 = vmatpush1.bf16.msra.mxu0 %v3455
    %3504 = vmatprep.subr.bf16.mxu0 0
    %3505 = vmatpush1.bf16.msra.mxu0 %v3457
    %3506 = vmatprep.subr.bf16.mxu0 0
    %3507 = vmatpush1.bf16.msra.mxu0 %v3459
    %3508 = vmatprep.subr.bf16.mxu0 0
    %3509 = vmatpush1.bf16.msra.mxu0 %v3461
    %3510 = vmatprep.subr.bf16.mxu0 0
    %3511 = vmatpush1.bf16.msra.mxu0 %v3463
    %3512 = vmatprep.subr.bf16.mxu0 0
    %3513 = vmatpush1.bf16.msra.mxu0 %v3465
    %3514 = vmatprep.subr.bf16.mxu0 0
    %3515 = vmatpush1.bf16.msra.mxu0 %v3467
    %3516 = vmatprep.subr.bf16.mxu0 0
    %3517 = vmatpush1.bf16.msra.mxu0 %v3469
    %3518 = vmatprep.subr.bf16.mxu0 0
    %3519 = vmatpush1.bf16.msra.mxu0 %v3471
    %3520 = vmatprep.mubr.bf16.mxu0 %v991
    %3521 = vmatmul.mubr.bf16.gmra.mrb[0].mxu0 %v990
    %v3522 = vpop.f32.mrb[0].mxu0
    %v3523 = vadd.f32 0.0, %v3522
    %v3524 = vpop.f32.mrb[0].mxu0
    %v3525 = vpop.f32.mrb[0].mxu0
    %v3526 = vadd.f32 0.0, %v3525
    %v3527 = vpop.f32.mrb[0].mxu0
    %3528 = vmatprep.mubr.bf16.mxu0 %v993
    %3529 = vmatmul.mubr.bf16.gmra.mrb[0].mxu0 %v992
    %v3530 = vpop.f32.mrb[0].mxu0
    %v3531 = vadd.f32 0.0, %v3530
    %v3532 = vpop.f32.mrb[0].mxu0
    %v3533 = vpop.f32.mrb[0].mxu0
    %v3534 = vadd.f32 0.0, %v3533
    %v3535 = vpop.f32.mrb[0].mxu0
    %3536 = vmatprep.mubr.bf16.mxu0 %v995
    %3537 = vmatmul.mubr.bf16.gmra.mrb[0].mxu0 %v994
    %v3538 = vpop.f32.mrb[0].mxu0
    %v3539 = vadd.f32 0.0, %v3538
    %v3540 = vpop.f32.mrb[0].mxu0
    %v3541 = vpop.f32.mrb[0].mxu0
    %v3542 = vadd.f32 0.0, %v3541
    %v3543 = vpop.f32.mrb[0].mxu0
    %3544 = vmatprep.mubr.bf16.mxu0 %v997
    %3545 = vmatmul.mubr.bf16.gmra.mrb[0].mxu0 %v996
    %v3546 = vpop.f32.mrb[0].mxu0
    %v3547 = vadd.f32 0.0, %v3546
    %v3548 = vpop.f32.mrb[0].mxu0
    %v3549 = vpop.f32.mrb[0].mxu0
    %v3550 = vadd.f32 0.0, %v3549
    %v3551 = vpop.f32.mrb[0].mxu0
    %3552 = vmatprep.mubr.bf16.mxu0 %v999
    %3553 = vmatmul.mubr.bf16.gmra.mrb[0].mxu0 %v998
    %v3554 = vpop.f32.mrb[0].mxu0
    %v3555 = vadd.f32 0.0, %v3554
    %v3556 = vpop.f32.mrb[0].mxu0
    %v3557 = vpop.f32.mrb[0].mxu0
    %v3558 = vadd.f32 0.0, %v3557
    %v3559 = vpop.f32.mrb[0].mxu0
    %3560 = vmatprep.mubr.bf16.mxu0 %v1001
    %3561 = vmatmul.mubr.bf16.gmra.mrb[0].mxu0 %v1000
    %v3562 = vpop.f32.mrb[0].mxu0
    %v3563 = vadd.f32 0.0, %v3562
    %v3564 = vpop.f32.mrb[0].mxu0
    %v3565 = vpop.f32.mrb[0].mxu0
    %v3566 = vadd.f32 0.0, %v3565
    %v3567 = vpop.f32.mrb[0].mxu0
    %3568 = vmatprep.mubr.bf16.mxu0 %v1003
    %3569 = vmatmul.mubr.bf16.gmra.mrb[0].mxu0 %v1002
    %v3570 = vpop.f32.mrb[0].mxu0
    %v3571 = vadd.f32 0.0, %v3570
    %v3572 = vpop.f32.mrb[0].mxu0
    %v3573 = vpop.f32.mrb[0].mxu0
    %v3574 = vadd.f32 0.0, %v3573
    %v3575 = vpop.f32.mrb[0].mxu0
    %3576 = vmatprep.mubr.bf16.mxu0 %v1005
    %3577 = vmatmul.mubr.bf16.gmra.mrb[0].mxu0 %v1004
    %v3578 = vpop.f32.mrb[0].mxu0
    %v3579 = vadd.f32 0.0, %v3578
    %v3580 = vpop.f32.mrb[0].mxu0
    %v3581 = vpop.f32.mrb[0].mxu0
    %v3582 = vadd.f32 0.0, %v3581
    %v3583 = vpop.f32.mrb[0].mxu0
    %3584 = vmatprep.mubr.bf16.mxu0 %v1007
    %3585 = vmatmul.mubr.bf16.gmra.mrb[0].mxu0 %v1006
    %v3586 = vpop.f32.mrb[0].mxu0
    %v3587 = vadd.f32 0.0, %v3586
    %v3588 = vpop.f32.mrb[0].mxu0
    %v3589 = vpop.f32.mrb[0].mxu0
    %v3590 = vadd.f32 0.0, %v3589
    %v3591 = vpop.f32.mrb[0].mxu0
    %3592 = vmatprep.mubr.bf16.mxu0 %v1009
    %3593 = vmatmul.mubr.bf16.gmra.mrb[0].mxu0 %v1008
    %v3594 = vpop.f32.mrb[0].mxu0
    %v3595 = vadd.f32 0.0, %v3594
    %v3596 = vpop.f32.mrb[0].mxu0
    %v3597 = vpop.f32.mrb[0].mxu0
    %v3598 = vadd.f32 0.0, %v3597
    %v3599 = vpop.f32.mrb[0].mxu0
    %3600 = vmatprep.mubr.bf16.mxu0 %v1011
    %3601 = vmatmul.mubr.bf16.gmra.mrb[0].mxu0 %v1010
    %v3602 = vpop.f32.mrb[0].mxu0
    %v3603 = vadd.f32 0.0, %v3602
    %v3604 = vpop.f32.mrb[0].mxu0
    %v3605 = vpop.f32.mrb[0].mxu0
    %v3606 = vadd.f32 0.0, %v3605
    %v3607 = vpop.f32.mrb[0].mxu0
    %3608 = vmatprep.mubr.bf16.mxu0 %v1013
    %3609 = vmatmul.mubr.bf16.gmra.mrb[0].mxu0 %v1012
    %v3610 = vpop.f32.mrb[0].mxu0
    %v3611 = vadd.f32 0.0, %v3610
    %v3612 = vpop.f32.mrb[0].mxu0
    %v3613 = vpop.f32.mrb[0].mxu0
    %v3614 = vadd.f32 0.0, %v3613
    %v3615 = vpop.f32.mrb[0].mxu0
    %3616 = vmatprep.mubr.bf16.mxu0 %v1015
    %3617 = vmatmul.mubr.bf16.gmra.mrb[0].mxu0 %v1014
    %v3618 = vpop.f32.mrb[0].mxu0
    %v3619 = vadd.f32 0.0, %v3618
    %v3620 = vpop.f32.mrb[0].mxu0
    %v3621 = vpop.f32.mrb[0].mxu0
    %v3622 = vadd.f32 0.0, %v3621
    %v3623 = vpop.f32.mrb[0].mxu0
    %3624 = vmatprep.mubr.bf16.mxu0 %v1017
    %3625 = vmatmul.mubr.bf16.gmra.mrb[0].mxu0 %v1016
    %v3626 = vpop.f32.mrb[0].mxu0
    %v3627 = vadd.f32 0.0, %v3626
    %v3628 = vpop.f32.mrb[0].mxu0
    %v3629 = vpop.f32.mrb[0].mxu0
    %v3630 = vadd.f32 0.0, %v3629
    %v3631 = vpop.f32.mrb[0].mxu0
    %3632 = vmatprep.mubr.bf16.mxu0 %v1019
    %3633 = vmatmul.mubr.bf16.gmra.mrb[0].mxu0 %v1018
    %v3634 = vpop.f32.mrb[0].mxu0
    %v3635 = vadd.f32 0.0, %v3634
    %v3636 = vpop.f32.mrb[0].mxu0
    %v3637 = vpop.f32.mrb[0].mxu0
    %v3638 = vadd.f32 0.0, %v3637
    %v3639 = vpop.f32.mrb[0].mxu0
    %3640 = vmatprep.mubr.bf16.mxu0 %v1021
    %3641 = vmatmul.mubr.bf16.gmra.mrb[0].mxu0 %v1020
    %v3642 = vpop.f32.mrb[0].mxu0
    %v3643 = vadd.f32 0.0, %v3642
    %v3644 = vpop.f32.mrb[0].mxu0
    %v3645 = vpop.f32.mrb[0].mxu0
    %v3646 = vadd.f32 0.0, %v3645
    %v3647 = vpop.f32.mrb[0].mxu0
    %3648 = vdwg.mxu0
    %v3649 = vadd.f32 %v3282, %v3523
    %v3650 = vadd.f32 %v3285, %v3526
    %v3651 = vadd.f32 %v3290, %v3531
    %v3652 = vadd.f32 %v3293, %v3534
    %v3653 = vadd.f32 %v3298, %v3539
    %v3654 = vadd.f32 %v3301, %v3542
    %v3655 = vadd.f32 %v3306, %v3547
    %v3656 = vadd.f32 %v3309, %v3550
    %v3657 = vadd.f32 %v3314, %v3555
    %v3658 = vadd.f32 %v3317, %v3558
    %v3659 = vadd.f32 %v3322, %v3563
    %v3660 = vadd.f32 %v3325, %v3566
    %v3661 = vadd.f32 %v3330, %v3571
    %v3662 = vadd.f32 %v3333, %v3574
    %v3663 = vadd.f32 %v3338, %v3579
    %v3664 = vadd.f32 %v3341, %v3582
    %v3665 = vadd.f32 %v3346, %v3587
    %v3666 = vadd.f32 %v3349, %v3590
    %v3667 = vadd.f32 %v3354, %v3595
    %v3668 = vadd.f32 %v3357, %v3598
    %v3669 = vadd.f32 %v3362, %v3603
    %v3670 = vadd.f32 %v3365, %v3606
    %v3671 = vadd.f32 %v3370, %v3611
    %v3672 = vadd.f32 %v3373, %v3614
    %v3673 = vadd.f32 %v3378, %v3619
    %v3674 = vadd.f32 %v3381, %v3622
    %v3675 = vadd.f32 %v3386, %v3627
    %v3676 = vadd.f32 %v3389, %v3630
    %v3677 = vadd.f32 %v3394, %v3635
    %v3678 = vadd.f32 %v3397, %v3638
    %v3679 = vadd.f32 %v3402, %v3643
    %v3680 = vadd.f32 %v3405, %v3646
    %s3681 = scalar_lea.vmem %s7, 2
    %v3682 = vld [vmem:[%s3681] sm:$0x1]
    %v3684 = vlaneseq
    %v3685 = vshrl.u32 %v3684, 7
    %v3686 = vsub.s32 0, %v3685
    %v3687 = vrot.slane %v3682, %v3686
    %v3689 = vadd.f32 %v3649, %v3687
    %v3690 = vadd.f32 %v3650, %v3687
    %v3691 = vadd.f32 %v3651, %v3687
    %v3692 = vadd.f32 %v3652, %v3687
    %v3693 = vadd.f32 %v3653, %v3687
    %v3694 = vadd.f32 %v3654, %v3687
    %v3695 = vadd.f32 %v3655, %v3687
    %v3696 = vadd.f32 %v3656, %v3687
    %v3697 = vadd.f32 %v3657, %v3687
    %v3698 = vadd.f32 %v3658, %v3687
    %v3699 = vadd.f32 %v3659, %v3687
    %v3700 = vadd.f32 %v3660, %v3687
    %v3701 = vadd.f32 %v3661, %v3687
    %v3702 = vadd.f32 %v3662, %v3687
    %v3703 = vadd.f32 %v3663, %v3687
    %v3704 = vadd.f32 %v3664, %v3687
    %v3705 = vadd.f32 %v3665, %v3687
    %v3706 = vadd.f32 %v3666, %v3687
    %v3707 = vadd.f32 %v3667, %v3687
    %v3708 = vadd.f32 %v3668, %v3687
    %v3709 = vadd.f32 %v3669, %v3687
    %v3710 = vadd.f32 %v3670, %v3687
    %v3711 = vadd.f32 %v3671, %v3687
    %v3712 = vadd.f32 %v3672, %v3687
    %v3713 = vadd.f32 %v3673, %v3687
    %v3714 = vadd.f32 %v3674, %v3687
    %v3715 = vadd.f32 %v3675, %v3687
    %v3716 = vadd.f32 %v3676, %v3687
    %v3717 = vadd.f32 %v3677, %v3687
    %v3718 = vadd.f32 %v3678, %v3687
    %v3719 = vadd.f32 %v3679, %v3687
    %v3720 = vadd.f32 %v3680, %v3687
    %v3721 = vsel %vm441, %v3689, 0.0
    %3722 = vadd.xlane.f32.xlu0 %v3721
    %v3723 = vpop.xlane.xlu0 %3722
    %v3724 = vsel %vm441, %v3690, 0.0
    %3725 = vadd.xlane.f32.xlu0 %v3724
    %v3726 = vpop.xlane.xlu0 %3725
    %v3727 = vsel %vm441, %v3691, 0.0
    %3728 = vadd.xlane.f32.xlu0 %v3727
    %v3729 = vpop.xlane.xlu0 %3728
    %v3730 = vsel %vm441, %v3692, 0.0
    %3731 = vadd.xlane.f32.xlu0 %v3730
    %v3732 = vpop.xlane.xlu0 %3731
    %v3733 = vsel %vm441, %v3693, 0.0
    %3734 = vadd.xlane.f32.xlu0 %v3733
    %v3735 = vpop.xlane.xlu0 %3734
    %v3736 = vsel %vm441, %v3694, 0.0
    %3737 = vadd.xlane.f32.xlu0 %v3736
    %v3738 = vpop.xlane.xlu0 %3737
    %v3739 = vsel %vm441, %v3695, 0.0
    %3740 = vadd.xlane.f32.xlu0 %v3739
    %v3741 = vpop.xlane.xlu0 %3740
    %v3742 = vsel %vm441, %v3696, 0.0
    %3743 = vadd.xlane.f32.xlu0 %v3742
    %v3744 = vpop.xlane.xlu0 %3743
    %v3745 = vsel %vm441, %v3697, 0.0
    %3746 = vadd.xlane.f32.xlu0 %v3745
    %v3747 = vpop.xlane.xlu0 %3746
    %v3748 = vsel %vm441, %v3698, 0.0
    %3749 = vadd.xlane.f32.xlu0 %v3748
    %v3750 = vpop.xlane.xlu0 %3749
    %v3751 = vsel %vm441, %v3699, 0.0
    %3752 = vadd.xlane.f32.xlu0 %v3751
    %v3753 = vpop.xlane.xlu0 %3752
    %v3754 = vsel %vm441, %v3700, 0.0
    %3755 = vadd.xlane.f32.xlu0 %v3754
    %v3756 = vpop.xlane.xlu0 %3755
    %v3757 = vsel %vm441, %v3701, 0.0
    %3758 = vadd.xlane.f32.xlu0 %v3757
    %v3759 = vpop.xlane.xlu0 %3758
    %v3760 = vsel %vm441, %v3702, 0.0
    %3761 = vadd.xlane.f32.xlu0 %v3760
    %v3762 = vpop.xlane.xlu0 %3761
    %v3763 = vsel %vm441, %v3703, 0.0
    %3764 = vadd.xlane.f32.xlu0 %v3763
    %v3765 = vpop.xlane.xlu0 %3764
    %v3766 = vsel %vm441, %v3704, 0.0
    %3767 = vadd.xlane.f32.xlu0 %v3766
    %v3768 = vpop.xlane.xlu0 %3767
    %v3769 = vsel %vm441, %v3705, 0.0
    %3770 = vadd.xlane.f32.xlu0 %v3769
    %v3771 = vpop.xlane.xlu0 %3770
    %v3772 = vsel %vm441, %v3706, 0.0
    %3773 = vadd.xlane.f32.xlu0 %v3772
    %v3774 = vpop.xlane.xlu0 %3773
    %v3775 = vsel %vm441, %v3707, 0.0
    %3776 = vadd.xlane.f32.xlu0 %v3775
    %v3777 = vpop.xlane.xlu0 %3776
    %v3778 = vsel %vm441, %v3708, 0.0
    %3779 = vadd.xlane.f32.xlu0 %v3778
    %v3780 = vpop.xlane.xlu0 %3779
    %v3781 = vsel %vm441, %v3709, 0.0
    %3782 = vadd.xlane.f32.xlu0 %v3781
    %v3783 = vpop.xlane.xlu0 %3782
    %v3784 = vsel %vm441, %v3710, 0.0
    %3785 = vadd.xlane.f32.xlu0 %v3784
    %v3786 = vpop.xlane.xlu0 %3785
    %v3787 = vsel %vm441, %v3711, 0.0
    %3788 = vadd.xlane.f32.xlu0 %v3787
    %v3789 = vpop.xlane.xlu0 %3788
    %v3790 = vsel %vm441, %v3712, 0.0
    %3791 = vadd.xlane.f32.xlu0 %v3790
    %v3792 = vpop.xlane.xlu0 %3791
    %v3793 = vsel %vm441, %v3713, 0.0
    %3794 = vadd.xlane.f32.xlu0 %v3793
    %v3795 = vpop.xlane.xlu0 %3794
    %v3796 = vsel %vm441, %v3714, 0.0
    %3797 = vadd.xlane.f32.xlu0 %v3796
    %v3798 = vpop.xlane.xlu0 %3797
    %v3799 = vsel %vm441, %v3715, 0.0
    %3800 = vadd.xlane.f32.xlu0 %v3799
    %v3801 = vpop.xlane.xlu0 %3800
    %v3802 = vsel %vm441, %v3716, 0.0
    %3803 = vadd.xlane.f32.xlu0 %v3802
    %v3804 = vpop.xlane.xlu0 %3803
    %v3805 = vsel %vm441, %v3717, 0.0
    %3806 = vadd.xlane.f32.xlu0 %v3805
    %v3807 = vpop.xlane.xlu0 %3806
    %v3808 = vsel %vm441, %v3718, 0.0
    %3809 = vadd.xlane.f32.xlu0 %v3808
    %v3810 = vpop.xlane.xlu0 %3809
    %v3811 = vsel %vm441, %v3719, 0.0
    %3812 = vadd.xlane.f32.xlu0 %v3811
    %v3813 = vpop.xlane.xlu0 %3812
    %v3814 = vsel %vm441, %v3720, 0.0
    %3815 = vadd.xlane.f32.xlu0 %v3814
    %v3816 = vpop.xlane.xlu0 %3815
    %v3817 = vmul.f32 %v3723, %v1446
    %v3818 = vmul.f32 %v3726, %v1446
    %v3819 = vmul.f32 %v3729, %v1446
    %v3820 = vmul.f32 %v3732, %v1446
    %v3821 = vmul.f32 %v3735, %v1446
    %v3822 = vmul.f32 %v3738, %v1446
    %v3823 = vmul.f32 %v3741, %v1446
    %v3824 = vmul.f32 %v3744, %v1446
    %v3825 = vmul.f32 %v3747, %v1446
    %v3826 = vmul.f32 %v3750, %v1446
    %v3827 = vmul.f32 %v3753, %v1446
    %v3828 = vmul.f32 %v3756, %v1446
    %v3829 = vmul.f32 %v3759, %v1446
    %v3830 = vmul.f32 %v3762, %v1446
    %v3831 = vmul.f32 %v3765, %v1446
    %v3832 = vmul.f32 %v3768, %v1446
    %v3833 = vmul.f32 %v3771, %v1446
    %v3834 = vmul.f32 %v3774, %v1446
    %v3835 = vmul.f32 %v3777, %v1446
    %v3836 = vmul.f32 %v3780, %v1446
    %v3837 = vmul.f32 %v3783, %v1446
    %v3838 = vmul.f32 %v3786, %v1446
    %v3839 = vmul.f32 %v3789, %v1446
    %v3840 = vmul.f32 %v3792, %v1446
    %v3841 = vmul.f32 %v3795, %v1446
    %v3842 = vmul.f32 %v3798, %v1446
    %v3843 = vmul.f32 %v3801, %v1446
    %v3844 = vmul.f32 %v3804, %v1446
    %v3845 = vmul.f32 %v3807, %v1446
    %v3846 = vmul.f32 %v3810, %v1446
    %v3847 = vmul.f32 %v3813, %v1446
    %v3848 = vmul.f32 %v3816, %v1446
    %v3849 = vsub.f32 %v3689, %v3817
    %v3850 = vsub.f32 %v3690, %v3818
    %v3851 = vsub.f32 %v3691, %v3819
    %v3852 = vsub.f32 %v3692, %v3820
    %v3853 = vsub.f32 %v3693, %v3821
    %v3854 = vsub.f32 %v3694, %v3822
    %v3855 = vsub.f32 %v3695, %v3823
    %v3856 = vsub.f32 %v3696, %v3824
    %v3857 = vsub.f32 %v3697, %v3825
    %v3858 = vsub.f32 %v3698, %v3826
    %v3859 = vsub.f32 %v3699, %v3827
    %v3860 = vsub.f32 %v3700, %v3828
    %v3861 = vsub.f32 %v3701, %v3829
    %v3862 = vsub.f32 %v3702, %v3830
    %v3863 = vsub.f32 %v3703, %v3831
    %v3864 = vsub.f32 %v3704, %v3832
    %v3865 = vsub.f32 %v3705, %v3833
    %v3866 = vsub.f32 %v3706, %v3834
    %v3867 = vsub.f32 %v3707, %v3835
    %v3868 = vsub.f32 %v3708, %v3836
    %v3869 = vsub.f32 %v3709, %v3837
    %v3870 = vsub.f32 %v3710, %v3838
    %v3871 = vsub.f32 %v3711, %v3839
    %v3872 = vsub.f32 %v3712, %v3840
    %v3873 = vsub.f32 %v3713, %v3841
    %v3874 = vsub.f32 %v3714, %v3842
    %v3875 = vsub.f32 %v3715, %v3843
    %v3876 = vsub.f32 %v3716, %v3844
    %v3877 = vsub.f32 %v3717, %v3845
    %v3878 = vsub.f32 %v3718, %v3846
    %v3879 = vsub.f32 %v3719, %v3847
    %v3880 = vsub.f32 %v3720, %v3848
    %v3881 = vmul.f32 %v3849, %v3849
    %v3882 = vmul.f32 %v3850, %v3850
    %v3883 = vmul.f32 %v3851, %v3851
    %v3884 = vmul.f32 %v3852, %v3852
    %v3885 = vmul.f32 %v3853, %v3853
    %v3886 = vmul.f32 %v3854, %v3854
    %v3887 = vmul.f32 %v3855, %v3855
    %v3888 = vmul.f32 %v3856, %v3856
    %v3889 = vmul.f32 %v3857, %v3857
    %v3890 = vmul.f32 %v3858, %v3858
    %v3891 = vmul.f32 %v3859, %v3859
    %v3892 = vmul.f32 %v3860, %v3860
    %v3893 = vmul.f32 %v3861, %v3861
    %v3894 = vmul.f32 %v3862, %v3862
    %v3895 = vmul.f32 %v3863, %v3863
    %v3896 = vmul.f32 %v3864, %v3864
    %v3897 = vmul.f32 %v3865, %v3865
    %v3898 = vmul.f32 %v3866, %v3866
    %v3899 = vmul.f32 %v3867, %v3867
    %v3900 = vmul.f32 %v3868, %v3868
    %v3901 = vmul.f32 %v3869, %v3869
    %v3902 = vmul.f32 %v3870, %v3870
    %v3903 = vmul.f32 %v3871, %v3871
    %v3904 = vmul.f32 %v3872, %v3872
    %v3905 = vmul.f32 %v3873, %v3873
    %v3906 = vmul.f32 %v3874, %v3874
    %v3907 = vmul.f32 %v3875, %v3875
    %v3908 = vmul.f32 %v3876, %v3876
    %v3909 = vmul.f32 %v3877, %v3877
    %v3910 = vmul.f32 %v3878, %v3878
    %v3911 = vmul.f32 %v3879, %v3879
    %v3912 = vmul.f32 %v3880, %v3880
    %v3913 = vsel %vm441, %v3881, 0.0
    %3914 = vadd.xlane.f32.xlu0 %v3913
    %v3915 = vpop.xlane.xlu0 %3914
    %v3916 = vsel %vm441, %v3882, 0.0
    %3917 = vadd.xlane.f32.xlu0 %v3916
    %v3918 = vpop.xlane.xlu0 %3917
    %v3919 = vsel %vm441, %v3883, 0.0
    %3920 = vadd.xlane.f32.xlu0 %v3919
    %v3921 = vpop.xlane.xlu0 %3920
    %v3922 = vsel %vm441, %v3884, 0.0
    %3923 = vadd.xlane.f32.xlu0 %v3922
    %v3924 = vpop.xlane.xlu0 %3923
    %v3925 = vsel %vm441, %v3885, 0.0
    %3926 = vadd.xlane.f32.xlu0 %v3925
    %v3927 = vpop.xlane.xlu0 %3926
    %v3928 = vsel %vm441, %v3886, 0.0
    %3929 = vadd.xlane.f32.xlu0 %v3928
    %v3930 = vpop.xlane.xlu0 %3929
    %v3931 = vsel %vm441, %v3887, 0.0
    %3932 = vadd.xlane.f32.xlu0 %v3931
    %v3933 = vpop.xlane.xlu0 %3932
    %v3934 = vsel %vm441, %v3888, 0.0
    %3935 = vadd.xlane.f32.xlu0 %v3934
    %v3936 = vpop.xlane.xlu0 %3935
    %v3937 = vsel %vm441, %v3889, 0.0
    %3938 = vadd.xlane.f32.xlu0 %v3937
    %v3939 = vpop.xlane.xlu0 %3938
    %v3940 = vsel %vm441, %v3890, 0.0
    %3941 = vadd.xlane.f32.xlu0 %v3940
    %v3942 = vpop.xlane.xlu0 %3941
    %v3943 = vsel %vm441, %v3891, 0.0
    %3944 = vadd.xlane.f32.xlu0 %v3943
    %v3945 = vpop.xlane.xlu0 %3944
    %v3946 = vsel %vm441, %v3892, 0.0
    %3947 = vadd.xlane.f32.xlu0 %v3946
    %v3948 = vpop.xlane.xlu0 %3947
    %v3949 = vsel %vm441, %v3893, 0.0
    %3950 = vadd.xlane.f32.xlu0 %v3949
    %v3951 = vpop.xlane.xlu0 %3950
    %v3952 = vsel %vm441, %v3894, 0.0
    %3953 = vadd.xlane.f32.xlu0 %v3952
    %v3954 = vpop.xlane.xlu0 %3953
    %v3955 = vsel %vm441, %v3895, 0.0
    %3956 = vadd.xlane.f32.xlu0 %v3955
    %v3957 = vpop.xlane.xlu0 %3956
    %v3958 = vsel %vm441, %v3896, 0.0
    %3959 = vadd.xlane.f32.xlu0 %v3958
    %v3960 = vpop.xlane.xlu0 %3959
    %v3961 = vsel %vm441, %v3897, 0.0
    %3962 = vadd.xlane.f32.xlu0 %v3961
    %v3963 = vpop.xlane.xlu0 %3962
    %v3964 = vsel %vm441, %v3898, 0.0
    %3965 = vadd.xlane.f32.xlu0 %v3964
    %v3966 = vpop.xlane.xlu0 %3965
    %v3967 = vsel %vm441, %v3899, 0.0
    %3968 = vadd.xlane.f32.xlu0 %v3967
    %v3969 = vpop.xlane.xlu0 %3968
    %v3970 = vsel %vm441, %v3900, 0.0
    %3971 = vadd.xlane.f32.xlu0 %v3970
    %v3972 = vpop.xlane.xlu0 %3971
    %v3973 = vsel %vm441, %v3901, 0.0
    %3974 = vadd.xlane.f32.xlu0 %v3973
    %v3975 = vpop.xlane.xlu0 %3974
    %v3976 = vsel %vm441, %v3902, 0.0
    %3977 = vadd.xlane.f32.xlu0 %v3976
    %v3978 = vpop.xlane.xlu0 %3977
    %v3979 = vsel %vm441, %v3903, 0.0
    %3980 = vadd.xlane.f32.xlu0 %v3979
    %v3981 = vpop.xlane.xlu0 %3980
    %v3982 = vsel %vm441, %v3904, 0.0
    %3983 = vadd.xlane.f32.xlu0 %v3982
    %v3984 = vpop.xlane.xlu0 %3983
    %v3985 = vsel %vm441, %v3905, 0.0
    %3986 = vadd.xlane.f32.xlu0 %v3985
    %v3987 = vpop.xlane.xlu0 %3986
    %v3988 = vsel %vm441, %v3906, 0.0
    %3989 = vadd.xlane.f32.xlu0 %v3988
    %v3990 = vpop.xlane.xlu0 %3989
    %v3991 = vsel %vm441, %v3907, 0.0
    %3992 = vadd.xlane.f32.xlu0 %v3991
    %v3993 = vpop.xlane.xlu0 %3992
    %v3994 = vsel %vm441, %v3908, 0.0
    %3995 = vadd.xlane.f32.xlu0 %v3994
    %v3996 = vpop.xlane.xlu0 %3995
    %v3997 = vsel %vm441, %v3909, 0.0
    %3998 = vadd.xlane.f32.xlu0 %v3997
    %v3999 = vpop.xlane.xlu0 %3998
    %v4000 = vsel %vm441, %v3910, 0.0
    %4001 = vadd.xlane.f32.xlu0 %v4000
    %v4002 = vpop.xlane.xlu0 %4001
    %v4003 = vsel %vm441, %v3911, 0.0
    %4004 = vadd.xlane.f32.xlu0 %v4003
    %v4005 = vpop.xlane.xlu0 %4004
    %v4006 = vsel %vm441, %v3912, 0.0
    %4007 = vadd.xlane.f32.xlu0 %v4006
    %v4008 = vpop.xlane.xlu0 %4007
    %v4009 = vmul.f32 %v3915, %v1446
    %v4010 = vmul.f32 %v3918, %v1446
    %v4011 = vmul.f32 %v3921, %v1446
    %v4012 = vmul.f32 %v3924, %v1446
    %v4013 = vmul.f32 %v3927, %v1446
    %v4014 = vmul.f32 %v3930, %v1446
    %v4015 = vmul.f32 %v3933, %v1446
    %v4016 = vmul.f32 %v3936, %v1446
    %v4017 = vmul.f32 %v3939, %v1446
    %v4018 = vmul.f32 %v3942, %v1446
    %v4019 = vmul.f32 %v3945, %v1446
    %v4020 = vmul.f32 %v3948, %v1446
    %v4021 = vmul.f32 %v3951, %v1446
    %v4022 = vmul.f32 %v3954, %v1446
    %v4023 = vmul.f32 %v3957, %v1446
    %v4024 = vmul.f32 %v3960, %v1446
    %v4025 = vmul.f32 %v3963, %v1446
    %v4026 = vmul.f32 %v3966, %v1446
    %v4027 = vmul.f32 %v3969, %v1446
    %v4028 = vmul.f32 %v3972, %v1446
    %v4029 = vmul.f32 %v3975, %v1446
    %v4030 = vmul.f32 %v3978, %v1446
    %v4031 = vmul.f32 %v3981, %v1446
    %v4032 = vmul.f32 %v3984, %v1446
    %v4033 = vmul.f32 %v3987, %v1446
    %v4034 = vmul.f32 %v3990, %v1446
    %v4035 = vmul.f32 %v3993, %v1446
    %v4036 = vmul.f32 %v3996, %v1446
    %v4037 = vmul.f32 %v3999, %v1446
    %v4038 = vmul.f32 %v4002, %v1446
    %v4039 = vmul.f32 %v4005, %v1446
    %v4040 = vmul.f32 %v4008, %v1446
    %v4041 = vadd.f32 %v4009, 1e-05
    %v4042 = vadd.f32 %v4010, 1e-05
    %v4043 = vadd.f32 %v4011, 1e-05
    %v4044 = vadd.f32 %v4012, 1e-05
    %v4045 = vadd.f32 %v4013, 1e-05
    %v4046 = vadd.f32 %v4014, 1e-05
    %v4047 = vadd.f32 %v4015, 1e-05
    %v4048 = vadd.f32 %v4016, 1e-05
    %v4049 = vadd.f32 %v4017, 1e-05
    %v4050 = vadd.f32 %v4018, 1e-05
    %v4051 = vadd.f32 %v4019, 1e-05
    %v4052 = vadd.f32 %v4020, 1e-05
    %v4053 = vadd.f32 %v4021, 1e-05
    %v4054 = vadd.f32 %v4022, 1e-05
    %v4055 = vadd.f32 %v4023, 1e-05
    %v4056 = vadd.f32 %v4024, 1e-05
    %v4057 = vadd.f32 %v4025, 1e-05
    %v4058 = vadd.f32 %v4026, 1e-05
    %v4059 = vadd.f32 %v4027, 1e-05
    %v4060 = vadd.f32 %v4028, 1e-05
    %v4061 = vadd.f32 %v4029, 1e-05
    %v4062 = vadd.f32 %v4030, 1e-05
    %v4063 = vadd.f32 %v4031, 1e-05
    %v4064 = vadd.f32 %v4032, 1e-05
    %v4065 = vadd.f32 %v4033, 1e-05
    %v4066 = vadd.f32 %v4034, 1e-05
    %v4067 = vadd.f32 %v4035, 1e-05
    %v4068 = vadd.f32 %v4036, 1e-05
    %v4069 = vadd.f32 %v4037, 1e-05
    %v4070 = vadd.f32 %v4038, 1e-05
    %v4071 = vadd.f32 %v4039, 1e-05
    %v4072 = vadd.f32 %v4040, 1e-05
    %v4073 = vrsqrt.pop %v4041
    %v4074 = vrsqrt.pop %v4042
    %v4075 = vrsqrt.pop %v4043
    %v4076 = vrsqrt.pop %v4044
    %v4077 = vrsqrt.pop %v4045
    %v4078 = vrsqrt.pop %v4046
    %v4079 = vrsqrt.pop %v4047
    %v4080 = vrsqrt.pop %v4048
    %v4081 = vrsqrt.pop %v4049
    %v4082 = vrsqrt.pop %v4050
    %v4083 = vrsqrt.pop %v4051
    %v4084 = vrsqrt.pop %v4052
    %v4085 = vrsqrt.pop %v4053
    %v4086 = vrsqrt.pop %v4054
    %v4087 = vrsqrt.pop %v4055
    %v4088 = vrsqrt.pop %v4056
    %v4089 = vrsqrt.pop %v4057
    %v4090 = vrsqrt.pop %v4058
    %v4091 = vrsqrt.pop %v4059
    %v4092 = vrsqrt.pop %v4060
    %v4093 = vrsqrt.pop %v4061
    %v4094 = vrsqrt.pop %v4062
    %v4095 = vrsqrt.pop %v4063
    %v4096 = vrsqrt.pop %v4064
    %v4097 = vrsqrt.pop %v4065
    %v4098 = vrsqrt.pop %v4066
    %v4099 = vrsqrt.pop %v4067
    %v4100 = vrsqrt.pop %v4068
    %v4101 = vrsqrt.pop %v4069
    %v4102 = vrsqrt.pop %v4070
    %v4103 = vrsqrt.pop %v4071
    %v4104 = vrsqrt.pop %v4072
    %v4105 = vmul.f32 %v3849, %v4073
    %v4106 = vmul.f32 %v3850, %v4074
    %v4107 = vmul.f32 %v3851, %v4075
    %v4108 = vmul.f32 %v3852, %v4076
    %v4109 = vmul.f32 %v3853, %v4077
    %v4110 = vmul.f32 %v3854, %v4078
    %v4111 = vmul.f32 %v3855, %v4079
    %v4112 = vmul.f32 %v3856, %v4080
    %v4113 = vmul.f32 %v3857, %v4081
    %v4114 = vmul.f32 %v3858, %v4082
    %v4115 = vmul.f32 %v3859, %v4083
    %v4116 = vmul.f32 %v3860, %v4084
    %v4117 = vmul.f32 %v3861, %v4085
    %v4118 = vmul.f32 %v3862, %v4086
    %v4119 = vmul.f32 %v3863, %v4087
    %v4120 = vmul.f32 %v3864, %v4088
    %v4121 = vmul.f32 %v3865, %v4089
    %v4122 = vmul.f32 %v3866, %v4090
    %v4123 = vmul.f32 %v3867, %v4091
    %v4124 = vmul.f32 %v3868, %v4092
    %v4125 = vmul.f32 %v3869, %v4093
    %v4126 = vmul.f32 %v3870, %v4094
    %v4127 = vmul.f32 %v3871, %v4095
    %v4128 = vmul.f32 %v3872, %v4096
    %v4129 = vmul.f32 %v3873, %v4097
    %v4130 = vmul.f32 %v3874, %v4098
    %v4131 = vmul.f32 %v3875, %v4099
    %v4132 = vmul.f32 %v3876, %v4100
    %v4133 = vmul.f32 %v3877, %v4101
    %v4134 = vmul.f32 %v3878, %v4102
    %v4135 = vmul.f32 %v3879, %v4103
    %v4136 = vmul.f32 %v3880, %v4104
    %v4137 = vmul.f32 %v4105, %v1771
    %v4138 = vmul.f32 %v4106, %v1771
    %v4139 = vmul.f32 %v4107, %v1771
    %v4140 = vmul.f32 %v4108, %v1771
    %v4141 = vmul.f32 %v4109, %v1771
    %v4142 = vmul.f32 %v4110, %v1771
    %v4143 = vmul.f32 %v4111, %v1771
    %v4144 = vmul.f32 %v4112, %v1771
    %v4145 = vmul.f32 %v4113, %v1771
    %v4146 = vmul.f32 %v4114, %v1771
    %v4147 = vmul.f32 %v4115, %v1771
    %v4148 = vmul.f32 %v4116, %v1771
    %v4149 = vmul.f32 %v4117, %v1771
    %v4150 = vmul.f32 %v4118, %v1771
    %v4151 = vmul.f32 %v4119, %v1771
    %v4152 = vmul.f32 %v4120, %v1771
    %v4153 = vmul.f32 %v4121, %v1771
    %v4154 = vmul.f32 %v4122, %v1771
    %v4155 = vmul.f32 %v4123, %v1771
    %v4156 = vmul.f32 %v4124, %v1771
    %v4157 = vmul.f32 %v4125, %v1771
    %v4158 = vmul.f32 %v4126, %v1771
    %v4159 = vmul.f32 %v4127, %v1771
    %v4160 = vmul.f32 %v4128, %v1771
    %v4161 = vmul.f32 %v4129, %v1771
    %v4162 = vmul.f32 %v4130, %v1771
    %v4163 = vmul.f32 %v4131, %v1771
    %v4164 = vmul.f32 %v4132, %v1771
    %v4165 = vmul.f32 %v4133, %v1771
    %v4166 = vmul.f32 %v4134, %v1771
    %v4167 = vmul.f32 %v4135, %v1771
    %v4168 = vmul.f32 %v4136, %v1771
    %v4169 = vadd.f32 %v4137, %v1809
    %v4170 = vadd.f32 %v4138, %v1809
    %v4171 = vadd.f32 %v4139, %v1809
    %v4172 = vadd.f32 %v4140, %v1809
    %v4173 = vadd.f32 %v4141, %v1809
    %v4174 = vadd.f32 %v4142, %v1809
    %v4175 = vadd.f32 %v4143, %v1809
    %v4176 = vadd.f32 %v4144, %v1809
    %v4177 = vadd.f32 %v4145, %v1809
    %v4178 = vadd.f32 %v4146, %v1809
    %v4179 = vadd.f32 %v4147, %v1809
    %v4180 = vadd.f32 %v4148, %v1809
    %v4181 = vadd.f32 %v4149, %v1809
    %v4182 = vadd.f32 %v4150, %v1809
    %v4183 = vadd.f32 %v4151, %v1809
    %v4184 = vadd.f32 %v4152, %v1809
    %v4185 = vadd.f32 %v4153, %v1809
    %v4186 = vadd.f32 %v4154, %v1809
    %v4187 = vadd.f32 %v4155, %v1809
    %v4188 = vadd.f32 %v4156, %v1809
    %v4189 = vadd.f32 %v4157, %v1809
    %v4190 = vadd.f32 %v4158, %v1809
    %v4191 = vadd.f32 %v4159, %v1809
    %v4192 = vadd.f32 %v4160, %v1809
    %v4193 = vadd.f32 %v4161, %v1809
    %v4194 = vadd.f32 %v4162, %v1809
    %v4195 = vadd.f32 %v4163, %v1809
    %v4196 = vadd.f32 %v4164, %v1809
    %v4197 = vadd.f32 %v4165, %v1809
    %v4198 = vadd.f32 %v4166, %v1809
    %v4199 = vadd.f32 %v4167, %v1809
    %v4200 = vadd.f32 %v4168, %v1809
    %vm4201 = vcmp.gt.f32.partialorder %v4169, 0.0
    %vm4202 = vcmp.gt.f32.partialorder %v4170, 0.0
    %vm4203 = vcmp.gt.f32.partialorder %v4171, 0.0
    %vm4204 = vcmp.gt.f32.partialorder %v4172, 0.0
    %vm4205 = vcmp.gt.f32.partialorder %v4173, 0.0
    %vm4206 = vcmp.gt.f32.partialorder %v4174, 0.0
    %vm4207 = vcmp.gt.f32.partialorder %v4175, 0.0
    %vm4208 = vcmp.gt.f32.partialorder %v4176, 0.0
    %vm4209 = vcmp.gt.f32.partialorder %v4177, 0.0
    %vm4210 = vcmp.gt.f32.partialorder %v4178, 0.0
    %vm4211 = vcmp.gt.f32.partialorder %v4179, 0.0
    %vm4212 = vcmp.gt.f32.partialorder %v4180, 0.0
    %vm4213 = vcmp.gt.f32.partialorder %v4181, 0.0
    %vm4214 = vcmp.gt.f32.partialorder %v4182, 0.0
    %vm4215 = vcmp.gt.f32.partialorder %v4183, 0.0
    %vm4216 = vcmp.gt.f32.partialorder %v4184, 0.0
    %vm4217 = vcmp.gt.f32.partialorder %v4185, 0.0
    %vm4218 = vcmp.gt.f32.partialorder %v4186, 0.0
    %vm4219 = vcmp.gt.f32.partialorder %v4187, 0.0
    %vm4220 = vcmp.gt.f32.partialorder %v4188, 0.0
    %vm4221 = vcmp.gt.f32.partialorder %v4189, 0.0
    %vm4222 = vcmp.gt.f32.partialorder %v4190, 0.0
    %vm4223 = vcmp.gt.f32.partialorder %v4191, 0.0
    %vm4224 = vcmp.gt.f32.partialorder %v4192, 0.0
    %vm4225 = vcmp.gt.f32.partialorder %v4193, 0.0
    %vm4226 = vcmp.gt.f32.partialorder %v4194, 0.0
    %vm4227 = vcmp.gt.f32.partialorder %v4195, 0.0
    %vm4228 = vcmp.gt.f32.partialorder %v4196, 0.0
    %vm4229 = vcmp.gt.f32.partialorder %v4197, 0.0
    %vm4230 = vcmp.gt.f32.partialorder %v4198, 0.0
    %vm4231 = vcmp.gt.f32.partialorder %v4199, 0.0
    %vm4232 = vcmp.gt.f32.partialorder %v4200, 0.0
    %v4233 = vmul.f32 %v4169, 0.01
    %v4234 = vmul.f32 %v4170, 0.01
    %v4235 = vmul.f32 %v4171, 0.01
    %v4236 = vmul.f32 %v4172, 0.01
    %v4237 = vmul.f32 %v4173, 0.01
    %v4238 = vmul.f32 %v4174, 0.01
    %v4239 = vmul.f32 %v4175, 0.01
    %v4240 = vmul.f32 %v4176, 0.01
    %v4241 = vmul.f32 %v4177, 0.01
    %v4242 = vmul.f32 %v4178, 0.01
    %v4243 = vmul.f32 %v4179, 0.01
    %v4244 = vmul.f32 %v4180, 0.01
    %v4245 = vmul.f32 %v4181, 0.01
    %v4246 = vmul.f32 %v4182, 0.01
    %v4247 = vmul.f32 %v4183, 0.01
    %v4248 = vmul.f32 %v4184, 0.01
    %v4249 = vmul.f32 %v4185, 0.01
    %v4250 = vmul.f32 %v4186, 0.01
    %v4251 = vmul.f32 %v4187, 0.01
    %v4252 = vmul.f32 %v4188, 0.01
    %v4253 = vmul.f32 %v4189, 0.01
    %v4254 = vmul.f32 %v4190, 0.01
    %v4255 = vmul.f32 %v4191, 0.01
    %v4256 = vmul.f32 %v4192, 0.01
    %v4257 = vmul.f32 %v4193, 0.01
    %v4258 = vmul.f32 %v4194, 0.01
    %v4259 = vmul.f32 %v4195, 0.01
    %v4260 = vmul.f32 %v4196, 0.01
    %v4261 = vmul.f32 %v4197, 0.01
    %v4262 = vmul.f32 %v4198, 0.01
    %v4263 = vmul.f32 %v4199, 0.01
    %v4264 = vmul.f32 %v4200, 0.01
    %v4265 = vsel %vm4201, %v4169, %v4233
    %v4266 = vsel %vm4202, %v4170, %v4234
    %v4267 = vsel %vm4203, %v4171, %v4235
    %v4268 = vsel %vm4204, %v4172, %v4236
    %v4269 = vsel %vm4205, %v4173, %v4237
    %v4270 = vsel %vm4206, %v4174, %v4238
    %v4271 = vsel %vm4207, %v4175, %v4239
    %v4272 = vsel %vm4208, %v4176, %v4240
    %v4273 = vsel %vm4209, %v4177, %v4241
    %v4274 = vsel %vm4210, %v4178, %v4242
    %v4275 = vsel %vm4211, %v4179, %v4243
    %v4276 = vsel %vm4212, %v4180, %v4244
    %v4277 = vsel %vm4213, %v4181, %v4245
    %v4278 = vsel %vm4214, %v4182, %v4246
    %v4279 = vsel %vm4215, %v4183, %v4247
    %v4280 = vsel %vm4216, %v4184, %v4248
    %v4281 = vsel %vm4217, %v4185, %v4249
    %v4282 = vsel %vm4218, %v4186, %v4250
    %v4283 = vsel %vm4219, %v4187, %v4251
    %v4284 = vsel %vm4220, %v4188, %v4252
    %v4285 = vsel %vm4221, %v4189, %v4253
    %v4286 = vsel %vm4222, %v4190, %v4254
    %v4287 = vsel %vm4223, %v4191, %v4255
    %v4288 = vsel %vm4224, %v4192, %v4256
    %v4289 = vsel %vm4225, %v4193, %v4257
    %v4290 = vsel %vm4226, %v4194, %v4258
    %v4291 = vsel %vm4227, %v4195, %v4259
    %v4292 = vsel %vm4228, %v4196, %v4260
    %v4293 = vsel %vm4229, %v4197, %v4261
    %v4294 = vsel %vm4230, %v4198, %v4262
    %v4295 = vsel %vm4231, %v4199, %v4263
    %v4296 = vsel %vm4232, %v4200, %v4264
    %v4297 = vadd.f32 %v4265, %v525
    %v4298 = vadd.f32 %v4266, %v528
    %v4299 = vadd.f32 %v4267, %v533
    %v4300 = vadd.f32 %v4268, %v536
    %v4301 = vadd.f32 %v4269, %v541
    %v4302 = vadd.f32 %v4270, %v544
    %v4303 = vadd.f32 %v4271, %v549
    %v4304 = vadd.f32 %v4272, %v552
    %v4305 = vadd.f32 %v4273, %v557
    %v4306 = vadd.f32 %v4274, %v560
    %v4307 = vadd.f32 %v4275, %v565
    %v4308 = vadd.f32 %v4276, %v568
    %v4309 = vadd.f32 %v4277, %v573
    %v4310 = vadd.f32 %v4278, %v576
    %v4311 = vadd.f32 %v4279, %v581
    %v4312 = vadd.f32 %v4280, %v584
    %v4313 = vadd.f32 %v4281, %v589
    %v4314 = vadd.f32 %v4282, %v592
    %v4315 = vadd.f32 %v4283, %v597
    %v4316 = vadd.f32 %v4284, %v600
    %v4317 = vadd.f32 %v4285, %v605
    %v4318 = vadd.f32 %v4286, %v608
    %v4319 = vadd.f32 %v4287, %v613
    %v4320 = vadd.f32 %v4288, %v616
    %v4321 = vadd.f32 %v4289, %v621
    %v4322 = vadd.f32 %v4290, %v624
    %v4323 = vadd.f32 %v4291, %v629
    %v4324 = vadd.f32 %v4292, %v632
    %v4325 = vadd.f32 %v4293, %v637
    %v4326 = vadd.f32 %v4294, %v640
    %v4327 = vadd.f32 %v4295, %v645
    %v4328 = vadd.f32 %v4296, %v648
    %v4329 = vpack.c.bf16 %v4298, %v4297
    %v4330 = vpack.c.bf16 %v4300, %v4299
    %v4331 = vpack.c.bf16 %v4302, %v4301
    %v4332 = vpack.c.bf16 %v4304, %v4303
    %v4333 = vpack.c.bf16 %v4306, %v4305
    %v4334 = vpack.c.bf16 %v4308, %v4307
    %v4335 = vpack.c.bf16 %v4310, %v4309
    %v4336 = vpack.c.bf16 %v4312, %v4311
    %v4337 = vpack.c.bf16 %v4314, %v4313
    %v4338 = vpack.c.bf16 %v4316, %v4315
    %v4339 = vpack.c.bf16 %v4318, %v4317
    %v4340 = vpack.c.bf16 %v4320, %v4319
    %v4341 = vpack.c.bf16 %v4322, %v4321
    %v4342 = vpack.c.bf16 %v4324, %v4323
    %v4343 = vpack.c.bf16 %v4326, %v4325
    %v4344 = vpack.c.bf16 %v4328, %v4327
    %s4345 = scalar_lea.vmem [#allocation8], 96
    %v4346 = vld [vmem:[%s4345] sm:$0xf]
    %v4347 = vld [vmem:[%s4345 + $0x4] sm:$0xf]
    %v4348 = vld [vmem:[%s4345 + $0x8] sm:$0xf]
    %v4349 = vld [vmem:[%s4345 + $0xc] sm:$0xf]
    %v4350 = vld [vmem:[%s4345 + $0x10] sm:$0xf]
    %v4351 = vld [vmem:[%s4345 + $0x14] sm:$0xf]
    %v4352 = vld [vmem:[%s4345 + $0x18] sm:$0xf]
    %v4353 = vld [vmem:[%s4345 + $0x1c] sm:$0xf]
    %v4362 = vunpack.c.l.b16 %v4346
    %v4363 = vunpack.c.l.b16 %v4347
    %v4364 = vunpack.c.l.b16 %v4348
    %v4365 = vunpack.c.l.b16 %v4349
    %v4366 = vunpack.c.l.b16 %v4350
    %v4367 = vunpack.c.l.b16 %v4351
    %v4368 = vunpack.c.l.b16 %v4352
    %v4369 = vunpack.c.l.b16 %v4353
    %v4370 = vpack.c.b16 %v4363, %v4362
    %v4371 = vpack.c.b16 %v4365, %v4364
    %v4372 = vpack.c.b16 %v4367, %v4366
    %v4373 = vpack.c.b16 %v4369, %v4368
    %v4379 = vsel %vm441, %v4329, 0
    %v4382 = vsel %vm441, %v4330, 0
    %v4385 = vsel %vm441, %v4331, 0
    %v4388 = vsel %vm441, %v4332, 0
    %v4391 = vsel %vm441, %v4333, 0
    %v4394 = vsel %vm441, %v4334, 0
    %v4397 = vsel %vm441, %v4335, 0
    %v4400 = vsel %vm441, %v4336, 0
    %v4403 = vsel %vm441, %v4337, 0
    %v4406 = vsel %vm441, %v4338, 0
    %v4409 = vsel %vm441, %v4339, 0
    %v4412 = vsel %vm441, %v4340, 0
    %v4415 = vsel %vm441, %v4341, 0
    %v4418 = vsel %vm441, %v4342, 0
    %v4421 = vsel %vm441, %v4343, 0
    %v4424 = vsel %vm441, %v4344, 0
    %4426 = vmatprep.subr.bf16.mxu0 0
    %4427 = vmatpush1.bf16.msra.mxu0 %v4370
    %4428 = vmatprep.subr.bf16.mxu0 0
    %4429 = vmatpush1.bf16.msra.mxu0 %v4371
    %4430 = vmatprep.subr.bf16.mxu0 0
    %4431 = vmatpush1.bf16.msra.mxu0 %v4372
    %4432 = vmatprep.subr.bf16.mxu0 0
    %4433 = vmatpush1.bf16.msra.mxu0 %v4373
    %4434 = vmatprep.subr.bf16.mxu0 0
    %4435 = vmatpush1.bf16.msra.mxu0 0
    %4436 = vmatprep.subr.bf16.mxu0 0
    %4437 = vmatpush1.bf16.msra.mxu0 0
    %4438 = vmatprep.subr.bf16.mxu0 0
    %4439 = vmatpush1.bf16.msra.mxu0 0
    %4440 = vmatprep.subr.bf16.mxu0 0
    %4441 = vmatpush1.bf16.msra.mxu0 0
    %4442 = vmatprep.subr.bf16.mxu0 0
    %4443 = vmatpush1.bf16.msra.mxu0 0
    %4444 = vmatprep.subr.bf16.mxu0 0
    %4445 = vmatpush1.bf16.msra.mxu0 0
    %4446 = vmatprep.subr.bf16.mxu0 0
    %4447 = vmatpush1.bf16.msra.mxu0 0
    %4448 = vmatprep.subr.bf16.mxu0 0
    %4449 = vmatpush1.bf16.msra.mxu0 0
    %4450 = vmatprep.subr.bf16.mxu0 0
    %4451 = vmatpush1.bf16.msra.mxu0 0
    %4452 = vmatprep.subr.bf16.mxu0 0
    %4453 = vmatpush1.bf16.msra.mxu0 0
    %4454 = vmatprep.subr.bf16.mxu0 0
    %4455 = vmatpush1.bf16.msra.mxu0 0
    %4456 = vmatprep.subr.bf16.mxu0 0
    %4457 = vmatpush1.bf16.msra.mxu0 0
    %4458 = vmatprep.mubr.bf16.mxu0 0
    %4459 = vmatmul.mubr.bf16.gmra.mrb[0].mxu0 %v4379
    %v4460 = vpop.f32.mrb[0].mxu0
    %v4461 = vadd.f32 0.0, %v4460
    %v4462 = vpop.f32.mrb[0].mxu0
    %v4463 = vpop.f32.mrb[0].mxu0
    %v4464 = vadd.f32 0.0, %v4463
    %v4465 = vpop.f32.mrb[0].mxu0
    %4466 = vmatprep.mubr.bf16.mxu0 0
    %4467 = vmatmul.mubr.bf16.gmra.mrb[0].mxu0 %v4382
    %v4468 = vpop.f32.mrb[0].mxu0
    %v4469 = vadd.f32 0.0, %v4468
    %v4470 = vpop.f32.mrb[0].mxu0
    %v4471 = vpop.f32.mrb[0].mxu0
    %v4472 = vadd.f32 0.0, %v4471
    %v4473 = vpop.f32.mrb[0].mxu0
    %4474 = vmatprep.mubr.bf16.mxu0 0
    %4475 = vmatmul.mubr.bf16.gmra.mrb[0].mxu0 %v4385
    %v4476 = vpop.f32.mrb[0].mxu0
    %v4477 = vadd.f32 0.0, %v4476
    %v4478 = vpop.f32.mrb[0].mxu0
    %v4479 = vpop.f32.mrb[0].mxu0
    %v4480 = vadd.f32 0.0, %v4479
    %v4481 = vpop.f32.mrb[0].mxu0
    %4482 = vmatprep.mubr.bf16.mxu0 0
    %4483 = vmatmul.mubr.bf16.gmra.mrb[0].mxu0 %v4388
    %v4484 = vpop.f32.mrb[0].mxu0
    %v4485 = vadd.f32 0.0, %v4484
    %v4486 = vpop.f32.mrb[0].mxu0
    %v4487 = vpop.f32.mrb[0].mxu0
    %v4488 = vadd.f32 0.0, %v4487
    %v4489 = vpop.f32.mrb[0].mxu0
    %4490 = vmatprep.mubr.bf16.mxu0 0
    %4491 = vmatmul.mubr.bf16.gmra.mrb[0].mxu0 %v4391
    %v4492 = vpop.f32.mrb[0].mxu0
    %v4493 = vadd.f32 0.0, %v4492
    %v4494 = vpop.f32.mrb[0].mxu0
    %v4495 = vpop.f32.mrb[0].mxu0
    %v4496 = vadd.f32 0.0, %v4495
    %v4497 = vpop.f32.mrb[0].mxu0
    %4498 = vmatprep.mubr.bf16.mxu0 0
    %4499 = vmatmul.mubr.bf16.gmra.mrb[0].mxu0 %v4394
    %v4500 = vpop.f32.mrb[0].mxu0
    %v4501 = vadd.f32 0.0, %v4500
    %v4502 = vpop.f32.mrb[0].mxu0
    %v4503 = vpop.f32.mrb[0].mxu0
    %v4504 = vadd.f32 0.0, %v4503
    %v4505 = vpop.f32.mrb[0].mxu0
    %4506 = vmatprep.mubr.bf16.mxu0 0
    %4507 = vmatmul.mubr.bf16.gmra.mrb[0].mxu0 %v4397
    %v4508 = vpop.f32.mrb[0].mxu0
    %v4509 = vadd.f32 0.0, %v4508
    %v4510 = vpop.f32.mrb[0].mxu0
    %v4511 = vpop.f32.mrb[0].mxu0
    %v4512 = vadd.f32 0.0, %v4511
    %v4513 = vpop.f32.mrb[0].mxu0
    %4514 = vmatprep.mubr.bf16.mxu0 0
    %4515 = vmatmul.mubr.bf16.gmra.mrb[0].mxu0 %v4400
    %v4516 = vpop.f32.mrb[0].mxu0
    %v4517 = vadd.f32 0.0, %v4516
    %v4518 = vpop.f32.mrb[0].mxu0
    %v4519 = vpop.f32.mrb[0].mxu0
    %v4520 = vadd.f32 0.0, %v4519
    %v4521 = vpop.f32.mrb[0].mxu0
    %4522 = vmatprep.mubr.bf16.mxu0 0
    %4523 = vmatmul.mubr.bf16.gmra.mrb[0].mxu0 %v4403
    %v4524 = vpop.f32.mrb[0].mxu0
    %v4525 = vadd.f32 0.0, %v4524
    %v4526 = vpop.f32.mrb[0].mxu0
    %v4527 = vpop.f32.mrb[0].mxu0
    %v4528 = vadd.f32 0.0, %v4527
    %v4529 = vpop.f32.mrb[0].mxu0
    %4530 = vmatprep.mubr.bf16.mxu0 0
    %4531 = vmatmul.mubr.bf16.gmra.mrb[0].mxu0 %v4406
    %v4532 = vpop.f32.mrb[0].mxu0
    %v4533 = vadd.f32 0.0, %v4532
    %v4534 = vpop.f32.mrb[0].mxu0
    %v4535 = vpop.f32.mrb[0].mxu0
    %v4536 = vadd.f32 0.0, %v4535
    %v4537 = vpop.f32.mrb[0].mxu0
    %4538 = vmatprep.mubr.bf16.mxu0 0
    %4539 = vmatmul.mubr.bf16.gmra.mrb[0].mxu0 %v4409
    %v4540 = vpop.f32.mrb[0].mxu0
    %v4541 = vadd.f32 0.0, %v4540
    %v4542 = vpop.f32.mrb[0].mxu0
    %v4543 = vpop.f32.mrb[0].mxu0
    %v4544 = vadd.f32 0.0, %v4543
    %v4545 = vpop.f32.mrb[0].mxu0
    %4546 = vmatprep.mubr.bf16.mxu0 0
    %4547 = vmatmul.mubr.bf16.gmra.mrb[0].mxu0 %v4412
    %v4548 = vpop.f32.mrb[0].mxu0
    %v4549 = vadd.f32 0.0, %v4548
    %v4550 = vpop.f32.mrb[0].mxu0
    %v4551 = vpop.f32.mrb[0].mxu0
    %v4552 = vadd.f32 0.0, %v4551
    %v4553 = vpop.f32.mrb[0].mxu0
    %4554 = vmatprep.mubr.bf16.mxu0 0
    %4555 = vmatmul.mubr.bf16.gmra.mrb[0].mxu0 %v4415
    %v4556 = vpop.f32.mrb[0].mxu0
    %v4557 = vadd.f32 0.0, %v4556
    %v4558 = vpop.f32.mrb[0].mxu0
    %v4559 = vpop.f32.mrb[0].mxu0
    %v4560 = vadd.f32 0.0, %v4559
    %v4561 = vpop.f32.mrb[0].mxu0
    %4562 = vmatprep.mubr.bf16.mxu0 0
    %4563 = vmatmul.mubr.bf16.gmra.mrb[0].mxu0 %v4418
    %v4564 = vpop.f32.mrb[0].mxu0
    %v4565 = vadd.f32 0.0, %v4564
    %v4566 = vpop.f32.mrb[0].mxu0
    %v4567 = vpop.f32.mrb[0].mxu0
    %v4568 = vadd.f32 0.0, %v4567
    %v4569 = vpop.f32.mrb[0].mxu0
    %4570 = vmatprep.mubr.bf16.mxu0 0
    %4571 = vmatmul.mubr.bf16.gmra.mrb[0].mxu0 %v4421
    %v4572 = vpop.f32.mrb[0].mxu0
    %v4573 = vadd.f32 0.0, %v4572
    %v4574 = vpop.f32.mrb[0].mxu0
    %v4575 = vpop.f32.mrb[0].mxu0
    %v4576 = vadd.f32 0.0, %v4575
    %v4577 = vpop.f32.mrb[0].mxu0
    %4578 = vmatprep.mubr.bf16.mxu0 0
    %4579 = vmatmul.mubr.bf16.gmra.mrb[0].mxu0 %v4424
    %v4580 = vpop.f32.mrb[0].mxu0
    %v4581 = vadd.f32 0.0, %v4580
    %v4582 = vpop.f32.mrb[0].mxu0
    %v4583 = vpop.f32.mrb[0].mxu0
    %v4584 = vadd.f32 0.0, %v4583
    %v4585 = vpop.f32.mrb[0].mxu0
    %4586 = vdwg.mxu0
    %v4587 = vpack.c.bf16 %v4464, %v4461
    %v4588 = vpack.c.bf16 %v4472, %v4469
    %v4589 = vpack.c.bf16 %v4480, %v4477
    %v4590 = vpack.c.bf16 %v4488, %v4485
    %v4591 = vpack.c.bf16 %v4496, %v4493
    %v4592 = vpack.c.bf16 %v4504, %v4501
    %v4593 = vpack.c.bf16 %v4512, %v4509
    %v4594 = vpack.c.bf16 %v4520, %v4517
    %v4595 = vpack.c.bf16 %v4528, %v4525
    %v4596 = vpack.c.bf16 %v4536, %v4533
    %v4597 = vpack.c.bf16 %v4544, %v4541
    %v4598 = vpack.c.bf16 %v4552, %v4549
    %v4599 = vpack.c.bf16 %v4560, %v4557
    %v4600 = vpack.c.bf16 %v4568, %v4565
    %v4601 = vpack.c.bf16 %v4576, %v4573
    %v4602 = vpack.c.bf16 %v4584, %v4581
    %4619 = vrot.lane.b32.xlu0 %v4587, 64
    %v4620 = vpop.permute.xlu0 %4619
    %4621 = vrot.lane.b32.xlu0 %v4588, 64
    %v4622 = vpop.permute.xlu0 %4621
    %4623 = vrot.lane.b32.xlu0 %v4589, 64
    %v4624 = vpop.permute.xlu0 %4623
    %4625 = vrot.lane.b32.xlu0 %v4590, 64
    %v4626 = vpop.permute.xlu0 %4625
    %4627 = vrot.lane.b32.xlu0 %v4591, 64
    %v4628 = vpop.permute.xlu0 %4627
    %4629 = vrot.lane.b32.xlu0 %v4592, 64
    %v4630 = vpop.permute.xlu0 %4629
    %4631 = vrot.lane.b32.xlu0 %v4593, 64
    %v4632 = vpop.permute.xlu0 %4631
    %4633 = vrot.lane.b32.xlu0 %v4594, 64
    %v4634 = vpop.permute.xlu0 %4633
    %4635 = vrot.lane.b32.xlu0 %v4595, 64
    %v4636 = vpop.permute.xlu0 %4635
    %4637 = vrot.lane.b32.xlu0 %v4596, 64
    %v4638 = vpop.permute.xlu0 %4637
    %4639 = vrot.lane.b32.xlu0 %v4597, 64
    %v4640 = vpop.permute.xlu0 %4639
    %4641 = vrot.lane.b32.xlu0 %v4598, 64
    %v4642 = vpop.permute.xlu0 %4641
    %4643 = vrot.lane.b32.xlu0 %v4599, 64
    %v4644 = vpop.permute.xlu0 %4643
    %4645 = vrot.lane.b32.xlu0 %v4600, 64
    %v4646 = vpop.permute.xlu0 %4645
    %4647 = vrot.lane.b32.xlu0 %v4601, 64
    %v4648 = vpop.permute.xlu0 %4647
    %4649 = vrot.lane.b32.xlu0 %v4602, 64
    %v4650 = vpop.permute.xlu0 %4649
    %4667 = vmatprep.subr.bf16.mxu0 0
    %4668 = vmatpush1.bf16.msra.mxu0 %v4620
    %4669 = vmatprep.subr.bf16.mxu0 0
    %4670 = vmatpush1.bf16.msra.mxu0 %v4622
    %4671 = vmatprep.subr.bf16.mxu0 0
    %4672 = vmatpush1.bf16.msra.mxu0 %v4624
    %4673 = vmatprep.subr.bf16.mxu0 0
    %4674 = vmatpush1.bf16.msra.mxu0 %v4626
    %4675 = vmatprep.subr.bf16.mxu0 0
    %4676 = vmatpush1.bf16.msra.mxu0 %v4628
    %4677 = vmatprep.subr.bf16.mxu0 0
    %4678 = vmatpush1.bf16.msra.mxu0 %v4630
    %4679 = vmatprep.subr.bf16.mxu0 0
    %4680 = vmatpush1.bf16.msra.mxu0 %v4632
    %4681 = vmatprep.subr.bf16.mxu0 0
    %4682 = vmatpush1.bf16.msra.mxu0 %v4634
    %4683 = vmatprep.subr.bf16.mxu0 0
    %4684 = vmatpush1.bf16.msra.mxu0 %v4636
    %4685 = vmatprep.subr.bf16.mxu0 0
    %4686 = vmatpush1.bf16.msra.mxu0 %v4638
    %4687 = vmatprep.subr.bf16.mxu0 0
    %4688 = vmatpush1.bf16.msra.mxu0 %v4640
    %4689 = vmatprep.subr.bf16.mxu0 0
    %4690 = vmatpush1.bf16.msra.mxu0 %v4642
    %4691 = vmatprep.subr.bf16.mxu0 0
    %4692 = vmatpush1.bf16.msra.mxu0 %v4644
    %4693 = vmatprep.subr.bf16.mxu0 0
    %4694 = vmatpush1.bf16.msra.mxu0 %v4646
    %4695 = vmatprep.subr.bf16.mxu0 0
    %4696 = vmatpush1.bf16.msra.mxu0 %v4648
    %4697 = vmatprep.subr.bf16.mxu0 0
    %4698 = vmatpush1.bf16.msra.mxu0 %v4650
    %4699 = vmatprep.mubr.bf16.mxu0 %v991
    %4700 = vmatmul.mubr.bf16.gmra.mrb[0].mxu0 %v990
    %v4701 = vpop.f32.mrb[0].mxu0
    %v4702 = vadd.f32 0.0, %v4701
    %v4703 = vpop.f32.mrb[0].mxu0
    %v4704 = vpop.f32.mrb[0].mxu0
    %v4705 = vadd.f32 0.0, %v4704
    %v4706 = vpop.f32.mrb[0].mxu0
    %4707 = vmatprep.mubr.bf16.mxu0 %v993
    %4708 = vmatmul.mubr.bf16.gmra.mrb[0].mxu0 %v992
    %v4709 = vpop.f32.mrb[0].mxu0
    %v4710 = vadd.f32 0.0, %v4709
    %v4711 = vpop.f32.mrb[0].mxu0
    %v4712 = vpop.f32.mrb[0].mxu0
    %v4713 = vadd.f32 0.0, %v4712
    %v4714 = vpop.f32.mrb[0].mxu0
    %4715 = vmatprep.mubr.bf16.mxu0 %v995
    %4716 = vmatmul.mubr.bf16.gmra.mrb[0].mxu0 %v994
    %v4717 = vpop.f32.mrb[0].mxu0
    %v4718 = vadd.f32 0.0, %v4717
    %v4719 = vpop.f32.mrb[0].mxu0
    %v4720 = vpop.f32.mrb[0].mxu0
    %v4721 = vadd.f32 0.0, %v4720
    %v4722 = vpop.f32.mrb[0].mxu0
    %4723 = vmatprep.mubr.bf16.mxu0 %v997
    %4724 = vmatmul.mubr.bf16.gmra.mrb[0].mxu0 %v996
    %v4725 = vpop.f32.mrb[0].mxu0
    %v4726 = vadd.f32 0.0, %v4725
    %v4727 = vpop.f32.mrb[0].mxu0
    %v4728 = vpop.f32.mrb[0].mxu0
    %v4729 = vadd.f32 0.0, %v4728
    %v4730 = vpop.f32.mrb[0].mxu0
    %4731 = vmatprep.mubr.bf16.mxu0 %v999
    %4732 = vmatmul.mubr.bf16.gmra.mrb[0].mxu0 %v998
    %v4733 = vpop.f32.mrb[0].mxu0
    %v4734 = vadd.f32 0.0, %v4733
    %v4735 = vpop.f32.mrb[0].mxu0
    %v4736 = vpop.f32.mrb[0].mxu0
    %v4737 = vadd.f32 0.0, %v4736
    %v4738 = vpop.f32.mrb[0].mxu0
    %4739 = vmatprep.mubr.bf16.mxu0 %v1001
    %4740 = vmatmul.mubr.bf16.gmra.mrb[0].mxu0 %v1000
    %v4741 = vpop.f32.mrb[0].mxu0
    %v4742 = vadd.f32 0.0, %v4741
    %v4743 = vpop.f32.mrb[0].mxu0
    %v4744 = vpop.f32.mrb[0].mxu0
    %v4745 = vadd.f32 0.0, %v4744
    %v4746 = vpop.f32.mrb[0].mxu0
    %4747 = vmatprep.mubr.bf16.mxu0 %v1003
    %4748 = vmatmul.mubr.bf16.gmra.mrb[0].mxu0 %v1002
    %v4749 = vpop.f32.mrb[0].mxu0
    %v4750 = vadd.f32 0.0, %v4749
    %v4751 = vpop.f32.mrb[0].mxu0
    %v4752 = vpop.f32.mrb[0].mxu0
    %v4753 = vadd.f32 0.0, %v4752
    %v4754 = vpop.f32.mrb[0].mxu0
    %4755 = vmatprep.mubr.bf16.mxu0 %v1005
    %4756 = vmatmul.mubr.bf16.gmra.mrb[0].mxu0 %v1004
    %v4757 = vpop.f32.mrb[0].mxu0
    %v4758 = vadd.f32 0.0, %v4757
    %v4759 = vpop.f32.mrb[0].mxu0
    %v4760 = vpop.f32.mrb[0].mxu0
    %v4761 = vadd.f32 0.0, %v4760
    %v4762 = vpop.f32.mrb[0].mxu0
    %4763 = vmatprep.mubr.bf16.mxu0 %v1007
    %4764 = vmatmul.mubr.bf16.gmra.mrb[0].mxu0 %v1006
    %v4765 = vpop.f32.mrb[0].mxu0
    %v4766 = vadd.f32 0.0, %v4765
    %v4767 = vpop.f32.mrb[0].mxu0
    %v4768 = vpop.f32.mrb[0].mxu0
    %v4769 = vadd.f32 0.0, %v4768
    %v4770 = vpop.f32.mrb[0].mxu0
    %4771 = vmatprep.mubr.bf16.mxu0 %v1009
    %4772 = vmatmul.mubr.bf16.gmra.mrb[0].mxu0 %v1008
    %v4773 = vpop.f32.mrb[0].mxu0
    %v4774 = vadd.f32 0.0, %v4773
    %v4775 = vpop.f32.mrb[0].mxu0
    %v4776 = vpop.f32.mrb[0].mxu0
    %v4777 = vadd.f32 0.0, %v4776
    %v4778 = vpop.f32.mrb[0].mxu0
    %4779 = vmatprep.mubr.bf16.mxu0 %v1011
    %4780 = vmatmul.mubr.bf16.gmra.mrb[0].mxu0 %v1010
    %v4781 = vpop.f32.mrb[0].mxu0
    %v4782 = vadd.f32 0.0, %v4781
    %v4783 = vpop.f32.mrb[0].mxu0
    %v4784 = vpop.f32.mrb[0].mxu0
    %v4785 = vadd.f32 0.0, %v4784
    %v4786 = vpop.f32.mrb[0].mxu0
    %4787 = vmatprep.mubr.bf16.mxu0 %v1013
    %4788 = vmatmul.mubr.bf16.gmra.mrb[0].mxu0 %v1012
    %v4789 = vpop.f32.mrb[0].mxu0
    %v4790 = vadd.f32 0.0, %v4789
    %v4791 = vpop.f32.mrb[0].mxu0
    %v4792 = vpop.f32.mrb[0].mxu0
    %v4793 = vadd.f32 0.0, %v4792
    %v4794 = vpop.f32.mrb[0].mxu0
    %4795 = vmatprep.mubr.bf16.mxu0 %v1015
    %4796 = vmatmul.mubr.bf16.gmra.mrb[0].mxu0 %v1014
    %v4797 = vpop.f32.mrb[0].mxu0
    %v4798 = vadd.f32 0.0, %v4797
    %v4799 = vpop.f32.mrb[0].mxu0
    %v4800 = vpop.f32.mrb[0].mxu0
    %v4801 = vadd.f32 0.0, %v4800
    %v4802 = vpop.f32.mrb[0].mxu0
    %4803 = vmatprep.mubr.bf16.mxu0 %v1017
    %4804 = vmatmul.mubr.bf16.gmra.mrb[0].mxu0 %v1016
    %v4805 = vpop.f32.mrb[0].mxu0
    %v4806 = vadd.f32 0.0, %v4805
    %v4807 = vpop.f32.mrb[0].mxu0
    %v4808 = vpop.f32.mrb[0].mxu0
    %v4809 = vadd.f32 0.0, %v4808
    %v4810 = vpop.f32.mrb[0].mxu0
    %4811 = vmatprep.mubr.bf16.mxu0 %v1019
    %4812 = vmatmul.mubr.bf16.gmra.mrb[0].mxu0 %v1018
    %v4813 = vpop.f32.mrb[0].mxu0
    %v4814 = vadd.f32 0.0, %v4813
    %v4815 = vpop.f32.mrb[0].mxu0
    %v4816 = vpop.f32.mrb[0].mxu0
    %v4817 = vadd.f32 0.0, %v4816
    %v4818 = vpop.f32.mrb[0].mxu0
    %4819 = vmatprep.mubr.bf16.mxu0 %v1021
    %4820 = vmatmul.mubr.bf16.gmra.mrb[0].mxu0 %v1020
    %v4821 = vpop.f32.mrb[0].mxu0
    %v4822 = vadd.f32 0.0, %v4821
    %v4823 = vpop.f32.mrb[0].mxu0
    %v4824 = vpop.f32.mrb[0].mxu0
    %v4825 = vadd.f32 0.0, %v4824
    %v4826 = vpop.f32.mrb[0].mxu0
    %4827 = vdwg.mxu0
    %v4828 = vadd.f32 %v4461, %v4702
    %v4829 = vadd.f32 %v4464, %v4705
    %v4830 = vadd.f32 %v4469, %v4710
    %v4831 = vadd.f32 %v4472, %v4713
    %v4832 = vadd.f32 %v4477, %v4718
    %v4833 = vadd.f32 %v4480, %v4721
    %v4834 = vadd.f32 %v4485, %v4726
    %v4835 = vadd.f32 %v4488, %v4729
    %v4836 = vadd.f32 %v4493, %v4734
    %v4837 = vadd.f32 %v4496, %v4737
    %v4838 = vadd.f32 %v4501, %v4742
    %v4839 = vadd.f32 %v4504, %v4745
    %v4840 = vadd.f32 %v4509, %v4750
    %v4841 = vadd.f32 %v4512, %v4753
    %v4842 = vadd.f32 %v4517, %v4758
    %v4843 = vadd.f32 %v4520, %v4761
    %v4844 = vadd.f32 %v4525, %v4766
    %v4845 = vadd.f32 %v4528, %v4769
    %v4846 = vadd.f32 %v4533, %v4774
    %v4847 = vadd.f32 %v4536, %v4777
    %v4848 = vadd.f32 %v4541, %v4782
    %v4849 = vadd.f32 %v4544, %v4785
    %v4850 = vadd.f32 %v4549, %v4790
    %v4851 = vadd.f32 %v4552, %v4793
    %v4852 = vadd.f32 %v4557, %v4798
    %v4853 = vadd.f32 %v4560, %v4801
    %v4854 = vadd.f32 %v4565, %v4806
    %v4855 = vadd.f32 %v4568, %v4809
    %v4856 = vadd.f32 %v4573, %v4814
    %v4857 = vadd.f32 %v4576, %v4817
    %v4858 = vadd.f32 %v4581, %v4822
    %v4859 = vadd.f32 %v4584, %v4825
    %s4860 = scalar_lea.vmem %s7, 3
    %v4861 = vld [vmem:[%s4860] sm:$0x1]
    %v4863 = vlaneseq
    %v4864 = vshrl.u32 %v4863, 7
    %v4865 = vsub.s32 0, %v4864
    %v4866 = vrot.slane %v4861, %v4865
    %v4868 = vadd.f32 %v4828, %v4866
    %v4869 = vadd.f32 %v4829, %v4866
    %v4870 = vadd.f32 %v4830, %v4866
    %v4871 = vadd.f32 %v4831, %v4866
    %v4872 = vadd.f32 %v4832, %v4866
    %v4873 = vadd.f32 %v4833, %v4866
    %v4874 = vadd.f32 %v4834, %v4866
    %v4875 = vadd.f32 %v4835, %v4866
    %v4876 = vadd.f32 %v4836, %v4866
    %v4877 = vadd.f32 %v4837, %v4866
    %v4878 = vadd.f32 %v4838, %v4866
    %v4879 = vadd.f32 %v4839, %v4866
    %v4880 = vadd.f32 %v4840, %v4866
    %v4881 = vadd.f32 %v4841, %v4866
    %v4882 = vadd.f32 %v4842, %v4866
    %v4883 = vadd.f32 %v4843, %v4866
    %v4884 = vadd.f32 %v4844, %v4866
    %v4885 = vadd.f32 %v4845, %v4866
    %v4886 = vadd.f32 %v4846, %v4866
    %v4887 = vadd.f32 %v4847, %v4866
    %v4888 = vadd.f32 %v4848, %v4866
    %v4889 = vadd.f32 %v4849, %v4866
    %v4890 = vadd.f32 %v4850, %v4866
    %v4891 = vadd.f32 %v4851, %v4866
    %v4892 = vadd.f32 %v4852, %v4866
    %v4893 = vadd.f32 %v4853, %v4866
    %v4894 = vadd.f32 %v4854, %v4866
    %v4895 = vadd.f32 %v4855, %v4866
    %v4896 = vadd.f32 %v4856, %v4866
    %v4897 = vadd.f32 %v4857, %v4866
    %v4898 = vadd.f32 %v4858, %v4866
    %v4899 = vadd.f32 %v4859, %v4866
    %v4900 = vsel %vm441, %v4868, 0.0
    %4901 = vadd.xlane.f32.xlu0 %v4900
    %v4902 = vpop.xlane.xlu0 %4901
    %v4903 = vsel %vm441, %v4869, 0.0
    %4904 = vadd.xlane.f32.xlu0 %v4903
    %v4905 = vpop.xlane.xlu0 %4904
    %v4906 = vsel %vm441, %v4870, 0.0
    %4907 = vadd.xlane.f32.xlu0 %v4906
    %v4908 = vpop.xlane.xlu0 %4907
    %v4909 = vsel %vm441, %v4871, 0.0
    %4910 = vadd.xlane.f32.xlu0 %v4909
    %v4911 = vpop.xlane.xlu0 %4910
    %v4912 = vsel %vm441, %v4872, 0.0
    %4913 = vadd.xlane.f32.xlu0 %v4912
    %v4914 = vpop.xlane.xlu0 %4913
    %v4915 = vsel %vm441, %v4873, 0.0
    %4916 = vadd.xlane.f32.xlu0 %v4915
    %v4917 = vpop.xlane.xlu0 %4916
    %v4918 = vsel %vm441, %v4874, 0.0
    %4919 = vadd.xlane.f32.xlu0 %v4918
    %v4920 = vpop.xlane.xlu0 %4919
    %v4921 = vsel %vm441, %v4875, 0.0
    %4922 = vadd.xlane.f32.xlu0 %v4921
    %v4923 = vpop.xlane.xlu0 %4922
    %v4924 = vsel %vm441, %v4876, 0.0
    %4925 = vadd.xlane.f32.xlu0 %v4924
    %v4926 = vpop.xlane.xlu0 %4925
    %v4927 = vsel %vm441, %v4877, 0.0
    %4928 = vadd.xlane.f32.xlu0 %v4927
    %v4929 = vpop.xlane.xlu0 %4928
    %v4930 = vsel %vm441, %v4878, 0.0
    %4931 = vadd.xlane.f32.xlu0 %v4930
    %v4932 = vpop.xlane.xlu0 %4931
    %v4933 = vsel %vm441, %v4879, 0.0
    %4934 = vadd.xlane.f32.xlu0 %v4933
    %v4935 = vpop.xlane.xlu0 %4934
    %v4936 = vsel %vm441, %v4880, 0.0
    %4937 = vadd.xlane.f32.xlu0 %v4936
    %v4938 = vpop.xlane.xlu0 %4937
    %v4939 = vsel %vm441, %v4881, 0.0
    %4940 = vadd.xlane.f32.xlu0 %v4939
    %v4941 = vpop.xlane.xlu0 %4940
    %v4942 = vsel %vm441, %v4882, 0.0
    %4943 = vadd.xlane.f32.xlu0 %v4942
    %v4944 = vpop.xlane.xlu0 %4943
    %v4945 = vsel %vm441, %v4883, 0.0
    %4946 = vadd.xlane.f32.xlu0 %v4945
    %v4947 = vpop.xlane.xlu0 %4946
    %v4948 = vsel %vm441, %v4884, 0.0
    %4949 = vadd.xlane.f32.xlu0 %v4948
    %v4950 = vpop.xlane.xlu0 %4949
    %v4951 = vsel %vm441, %v4885, 0.0
    %4952 = vadd.xlane.f32.xlu0 %v4951
    %v4953 = vpop.xlane.xlu0 %4952
    %v4954 = vsel %vm441, %v4886, 0.0
    %4955 = vadd.xlane.f32.xlu0 %v4954
    %v4956 = vpop.xlane.xlu0 %4955
    %v4957 = vsel %vm441, %v4887, 0.0
    %4958 = vadd.xlane.f32.xlu0 %v4957
    %v4959 = vpop.xlane.xlu0 %4958
    %v4960 = vsel %vm441, %v4888, 0.0
    %4961 = vadd.xlane.f32.xlu0 %v4960
    %v4962 = vpop.xlane.xlu0 %4961
    %v4963 = vsel %vm441, %v4889, 0.0
    %4964 = vadd.xlane.f32.xlu0 %v4963
    %v4965 = vpop.xlane.xlu0 %4964
    %v4966 = vsel %vm441, %v4890, 0.0
    %4967 = vadd.xlane.f32.xlu0 %v4966
    %v4968 = vpop.xlane.xlu0 %4967
    %v4969 = vsel %vm441, %v4891, 0.0
    %4970 = vadd.xlane.f32.xlu0 %v4969
    %v4971 = vpop.xlane.xlu0 %4970
    %v4972 = vsel %vm441, %v4892, 0.0
    %4973 = vadd.xlane.f32.xlu0 %v4972
    %v4974 = vpop.xlane.xlu0 %4973
    %v4975 = vsel %vm441, %v4893, 0.0
    %4976 = vadd.xlane.f32.xlu0 %v4975
    %v4977 = vpop.xlane.xlu0 %4976
    %v4978 = vsel %vm441, %v4894, 0.0
    %4979 = vadd.xlane.f32.xlu0 %v4978
    %v4980 = vpop.xlane.xlu0 %4979
    %v4981 = vsel %vm441, %v4895, 0.0
    %4982 = vadd.xlane.f32.xlu0 %v4981
    %v4983 = vpop.xlane.xlu0 %4982
    %v4984 = vsel %vm441, %v4896, 0.0
    %4985 = vadd.xlane.f32.xlu0 %v4984
    %v4986 = vpop.xlane.xlu0 %4985
    %v4987 = vsel %vm441, %v4897, 0.0
    %4988 = vadd.xlane.f32.xlu0 %v4987
    %v4989 = vpop.xlane.xlu0 %4988
    %v4990 = vsel %vm441, %v4898, 0.0
    %4991 = vadd.xlane.f32.xlu0 %v4990
    %v4992 = vpop.xlane.xlu0 %4991
    %v4993 = vsel %vm441, %v4899, 0.0
    %4994 = vadd.xlane.f32.xlu0 %v4993
    %v4995 = vpop.xlane.xlu0 %4994
    %v4996 = vmul.f32 %v4902, %v1446
    %v4997 = vmul.f32 %v4905, %v1446
    %v4998 = vmul.f32 %v4908, %v1446
    %v4999 = vmul.f32 %v4911, %v1446
    %v5000 = vmul.f32 %v4914, %v1446
    %v5001 = vmul.f32 %v4917, %v1446
    %v5002 = vmul.f32 %v4920, %v1446
    %v5003 = vmul.f32 %v4923, %v1446
    %v5004 = vmul.f32 %v4926, %v1446
    %v5005 = vmul.f32 %v4929, %v1446
    %v5006 = vmul.f32 %v4932, %v1446
    %v5007 = vmul.f32 %v4935, %v1446
    %v5008 = vmul.f32 %v4938, %v1446
    %v5009 = vmul.f32 %v4941, %v1446
    %v5010 = vmul.f32 %v4944, %v1446
    %v5011 = vmul.f32 %v4947, %v1446
    %v5012 = vmul.f32 %v4950, %v1446
    %v5013 = vmul.f32 %v4953, %v1446
    %v5014 = vmul.f32 %v4956, %v1446
    %v5015 = vmul.f32 %v4959, %v1446
    %v5016 = vmul.f32 %v4962, %v1446
    %v5017 = vmul.f32 %v4965, %v1446
    %v5018 = vmul.f32 %v4968, %v1446
    %v5019 = vmul.f32 %v4971, %v1446
    %v5020 = vmul.f32 %v4974, %v1446
    %v5021 = vmul.f32 %v4977, %v1446
    %v5022 = vmul.f32 %v4980, %v1446
    %v5023 = vmul.f32 %v4983, %v1446
    %v5024 = vmul.f32 %v4986, %v1446
    %v5025 = vmul.f32 %v4989, %v1446
    %v5026 = vmul.f32 %v4992, %v1446
    %v5027 = vmul.f32 %v4995, %v1446
    %v5028 = vsub.f32 %v4868, %v4996
    %v5029 = vsub.f32 %v4869, %v4997
    %v5030 = vsub.f32 %v4870, %v4998
    %v5031 = vsub.f32 %v4871, %v4999
    %v5032 = vsub.f32 %v4872, %v5000
    %v5033 = vsub.f32 %v4873, %v5001
    %v5034 = vsub.f32 %v4874, %v5002
    %v5035 = vsub.f32 %v4875, %v5003
    %v5036 = vsub.f32 %v4876, %v5004
    %v5037 = vsub.f32 %v4877, %v5005
    %v5038 = vsub.f32 %v4878, %v5006
    %v5039 = vsub.f32 %v4879, %v5007
    %v5040 = vsub.f32 %v4880, %v5008
    %v5041 = vsub.f32 %v4881, %v5009
    %v5042 = vsub.f32 %v4882, %v5010
    %v5043 = vsub.f32 %v4883, %v5011
    %v5044 = vsub.f32 %v4884, %v5012
    %v5045 = vsub.f32 %v4885, %v5013
    %v5046 = vsub.f32 %v4886, %v5014
    %v5047 = vsub.f32 %v4887, %v5015
    %v5048 = vsub.f32 %v4888, %v5016
    %v5049 = vsub.f32 %v4889, %v5017
    %v5050 = vsub.f32 %v4890, %v5018
    %v5051 = vsub.f32 %v4891, %v5019
    %v5052 = vsub.f32 %v4892, %v5020
    %v5053 = vsub.f32 %v4893, %v5021
    %v5054 = vsub.f32 %v4894, %v5022
    %v5055 = vsub.f32 %v4895, %v5023
    %v5056 = vsub.f32 %v4896, %v5024
    %v5057 = vsub.f32 %v4897, %v5025
    %v5058 = vsub.f32 %v4898, %v5026
    %v5059 = vsub.f32 %v4899, %v5027
    %v5060 = vmul.f32 %v5028, %v5028
    %v5061 = vmul.f32 %v5029, %v5029
    %v5062 = vmul.f32 %v5030, %v5030
    %v5063 = vmul.f32 %v5031, %v5031
    %v5064 = vmul.f32 %v5032, %v5032
    %v5065 = vmul.f32 %v5033, %v5033
    %v5066 = vmul.f32 %v5034, %v5034
    %v5067 = vmul.f32 %v5035, %v5035
    %v5068 = vmul.f32 %v5036, %v5036
    %v5069 = vmul.f32 %v5037, %v5037
    %v5070 = vmul.f32 %v5038, %v5038
    %v5071 = vmul.f32 %v5039, %v5039
    %v5072 = vmul.f32 %v5040, %v5040
    %v5073 = vmul.f32 %v5041, %v5041
    %v5074 = vmul.f32 %v5042, %v5042
    %v5075 = vmul.f32 %v5043, %v5043
    %v5076 = vmul.f32 %v5044, %v5044
    %v5077 = vmul.f32 %v5045, %v5045
    %v5078 = vmul.f32 %v5046, %v5046
    %v5079 = vmul.f32 %v5047, %v5047
    %v5080 = vmul.f32 %v5048, %v5048
    %v5081 = vmul.f32 %v5049, %v5049
    %v5082 = vmul.f32 %v5050, %v5050
    %v5083 = vmul.f32 %v5051, %v5051
    %v5084 = vmul.f32 %v5052, %v5052
    %v5085 = vmul.f32 %v5053, %v5053
    %v5086 = vmul.f32 %v5054, %v5054
    %v5087 = vmul.f32 %v5055, %v5055
    %v5088 = vmul.f32 %v5056, %v5056
    %v5089 = vmul.f32 %v5057, %v5057
    %v5090 = vmul.f32 %v5058, %v5058
    %v5091 = vmul.f32 %v5059, %v5059
    %v5092 = vsel %vm441, %v5060, 0.0
    %5093 = vadd.xlane.f32.xlu0 %v5092
    %v5094 = vpop.xlane.xlu0 %5093
    %v5095 = vsel %vm441, %v5061, 0.0
    %5096 = vadd.xlane.f32.xlu0 %v5095
    %v5097 = vpop.xlane.xlu0 %5096
    %v5098 = vsel %vm441, %v5062, 0.0
    %5099 = vadd.xlane.f32.xlu0 %v5098
    %v5100 = vpop.xlane.xlu0 %5099
    %v5101 = vsel %vm441, %v5063, 0.0
    %5102 = vadd.xlane.f32.xlu0 %v5101
    %v5103 = vpop.xlane.xlu0 %5102
    %v5104 = vsel %vm441, %v5064, 0.0
    %5105 = vadd.xlane.f32.xlu0 %v5104
    %v5106 = vpop.xlane.xlu0 %5105
    %v5107 = vsel %vm441, %v5065, 0.0
    %5108 = vadd.xlane.f32.xlu0 %v5107
    %v5109 = vpop.xlane.xlu0 %5108
    %v5110 = vsel %vm441, %v5066, 0.0
    %5111 = vadd.xlane.f32.xlu0 %v5110
    %v5112 = vpop.xlane.xlu0 %5111
    %v5113 = vsel %vm441, %v5067, 0.0
    %5114 = vadd.xlane.f32.xlu0 %v5113
    %v5115 = vpop.xlane.xlu0 %5114
    %v5116 = vsel %vm441, %v5068, 0.0
    %5117 = vadd.xlane.f32.xlu0 %v5116
    %v5118 = vpop.xlane.xlu0 %5117
    %v5119 = vsel %vm441, %v5069, 0.0
    %5120 = vadd.xlane.f32.xlu0 %v5119
    %v5121 = vpop.xlane.xlu0 %5120
    %v5122 = vsel %vm441, %v5070, 0.0
    %5123 = vadd.xlane.f32.xlu0 %v5122
    %v5124 = vpop.xlane.xlu0 %5123
    %v5125 = vsel %vm441, %v5071, 0.0
    %5126 = vadd.xlane.f32.xlu0 %v5125
    %v5127 = vpop.xlane.xlu0 %5126
    %v5128 = vsel %vm441, %v5072, 0.0
    %5129 = vadd.xlane.f32.xlu0 %v5128
    %v5130 = vpop.xlane.xlu0 %5129
    %v5131 = vsel %vm441, %v5073, 0.0
    %5132 = vadd.xlane.f32.xlu0 %v5131
    %v5133 = vpop.xlane.xlu0 %5132
    %v5134 = vsel %vm441, %v5074, 0.0
    %5135 = vadd.xlane.f32.xlu0 %v5134
    %v5136 = vpop.xlane.xlu0 %5135
    %v5137 = vsel %vm441, %v5075, 0.0
    %5138 = vadd.xlane.f32.xlu0 %v5137
    %v5139 = vpop.xlane.xlu0 %5138
    %v5140 = vsel %vm441, %v5076, 0.0
    %5141 = vadd.xlane.f32.xlu0 %v5140
    %v5142 = vpop.xlane.xlu0 %5141
    %v5143 = vsel %vm441, %v5077, 0.0
    %5144 = vadd.xlane.f32.xlu0 %v5143
    %v5145 = vpop.xlane.xlu0 %5144
    %v5146 = vsel %vm441, %v5078, 0.0
    %5147 = vadd.xlane.f32.xlu0 %v5146
    %v5148 = vpop.xlane.xlu0 %5147
    %v5149 = vsel %vm441, %v5079, 0.0
    %5150 = vadd.xlane.f32.xlu0 %v5149
    %v5151 = vpop.xlane.xlu0 %5150
    %v5152 = vsel %vm441, %v5080, 0.0
    %5153 = vadd.xlane.f32.xlu0 %v5152
    %v5154 = vpop.xlane.xlu0 %5153
    %v5155 = vsel %vm441, %v5081, 0.0
    %5156 = vadd.xlane.f32.xlu0 %v5155
    %v5157 = vpop.xlane.xlu0 %5156
    %v5158 = vsel %vm441, %v5082, 0.0
    %5159 = vadd.xlane.f32.xlu0 %v5158
    %v5160 = vpop.xlane.xlu0 %5159
    %v5161 = vsel %vm441, %v5083, 0.0
    %5162 = vadd.xlane.f32.xlu0 %v5161
    %v5163 = vpop.xlane.xlu0 %5162
    %v5164 = vsel %vm441, %v5084, 0.0
    %5165 = vadd.xlane.f32.xlu0 %v5164
    %v5166 = vpop.xlane.xlu0 %5165
    %v5167 = vsel %vm441, %v5085, 0.0
    %5168 = vadd.xlane.f32.xlu0 %v5167
    %v5169 = vpop.xlane.xlu0 %5168
    %v5170 = vsel %vm441, %v5086, 0.0
    %5171 = vadd.xlane.f32.xlu0 %v5170
    %v5172 = vpop.xlane.xlu0 %5171
    %v5173 = vsel %vm441, %v5087, 0.0
    %5174 = vadd.xlane.f32.xlu0 %v5173
    %v5175 = vpop.xlane.xlu0 %5174
    %v5176 = vsel %vm441, %v5088, 0.0
    %5177 = vadd.xlane.f32.xlu0 %v5176
    %v5178 = vpop.xlane.xlu0 %5177
    %v5179 = vsel %vm441, %v5089, 0.0
    %5180 = vadd.xlane.f32.xlu0 %v5179
    %v5181 = vpop.xlane.xlu0 %5180
    %v5182 = vsel %vm441, %v5090, 0.0
    %5183 = vadd.xlane.f32.xlu0 %v5182
    %v5184 = vpop.xlane.xlu0 %5183
    %v5185 = vsel %vm441, %v5091, 0.0
    %5186 = vadd.xlane.f32.xlu0 %v5185
    %v5187 = vpop.xlane.xlu0 %5186
    %v5188 = vmul.f32 %v5094, %v1446
    %v5189 = vmul.f32 %v5097, %v1446
    %v5190 = vmul.f32 %v5100, %v1446
    %v5191 = vmul.f32 %v5103, %v1446
    %v5192 = vmul.f32 %v5106, %v1446
    %v5193 = vmul.f32 %v5109, %v1446
    %v5194 = vmul.f32 %v5112, %v1446
    %v5195 = vmul.f32 %v5115, %v1446
    %v5196 = vmul.f32 %v5118, %v1446
    %v5197 = vmul.f32 %v5121, %v1446
    %v5198 = vmul.f32 %v5124, %v1446
    %v5199 = vmul.f32 %v5127, %v1446
    %v5200 = vmul.f32 %v5130, %v1446
    %v5201 = vmul.f32 %v5133, %v1446
    %v5202 = vmul.f32 %v5136, %v1446
    %v5203 = vmul.f32 %v5139, %v1446
    %v5204 = vmul.f32 %v5142, %v1446
    %v5205 = vmul.f32 %v5145, %v1446
    %v5206 = vmul.f32 %v5148, %v1446
    %v5207 = vmul.f32 %v5151, %v1446
    %v5208 = vmul.f32 %v5154, %v1446
    %v5209 = vmul.f32 %v5157, %v1446
    %v5210 = vmul.f32 %v5160, %v1446
    %v5211 = vmul.f32 %v5163, %v1446
    %v5212 = vmul.f32 %v5166, %v1446
    %v5213 = vmul.f32 %v5169, %v1446
    %v5214 = vmul.f32 %v5172, %v1446
    %v5215 = vmul.f32 %v5175, %v1446
    %v5216 = vmul.f32 %v5178, %v1446
    %v5217 = vmul.f32 %v5181, %v1446
    %v5218 = vmul.f32 %v5184, %v1446
    %v5219 = vmul.f32 %v5187, %v1446
    %v5220 = vadd.f32 %v5188, 1e-05
    %v5221 = vadd.f32 %v5189, 1e-05
    %v5222 = vadd.f32 %v5190, 1e-05
    %v5223 = vadd.f32 %v5191, 1e-05
    %v5224 = vadd.f32 %v5192, 1e-05
    %v5225 = vadd.f32 %v5193, 1e-05
    %v5226 = vadd.f32 %v5194, 1e-05
    %v5227 = vadd.f32 %v5195, 1e-05
    %v5228 = vadd.f32 %v5196, 1e-05
    %v5229 = vadd.f32 %v5197, 1e-05
    %v5230 = vadd.f32 %v5198, 1e-05
    %v5231 = vadd.f32 %v5199, 1e-05
    %v5232 = vadd.f32 %v5200, 1e-05
    %v5233 = vadd.f32 %v5201, 1e-05
    %v5234 = vadd.f32 %v5202, 1e-05
    %v5235 = vadd.f32 %v5203, 1e-05
    %v5236 = vadd.f32 %v5204, 1e-05
    %v5237 = vadd.f32 %v5205, 1e-05
    %v5238 = vadd.f32 %v5206, 1e-05
    %v5239 = vadd.f32 %v5207, 1e-05
    %v5240 = vadd.f32 %v5208, 1e-05
    %v5241 = vadd.f32 %v5209, 1e-05
    %v5242 = vadd.f32 %v5210, 1e-05
    %v5243 = vadd.f32 %v5211, 1e-05
    %v5244 = vadd.f32 %v5212, 1e-05
    %v5245 = vadd.f32 %v5213, 1e-05
    %v5246 = vadd.f32 %v5214, 1e-05
    %v5247 = vadd.f32 %v5215, 1e-05
    %v5248 = vadd.f32 %v5216, 1e-05
    %v5249 = vadd.f32 %v5217, 1e-05
    %v5250 = vadd.f32 %v5218, 1e-05
    %v5251 = vadd.f32 %v5219, 1e-05
    %v5252 = vrsqrt.pop %v5220
    %v5253 = vrsqrt.pop %v5221
    %v5254 = vrsqrt.pop %v5222
    %v5255 = vrsqrt.pop %v5223
    %v5256 = vrsqrt.pop %v5224
    %v5257 = vrsqrt.pop %v5225
    %v5258 = vrsqrt.pop %v5226
    %v5259 = vrsqrt.pop %v5227
    %v5260 = vrsqrt.pop %v5228
    %v5261 = vrsqrt.pop %v5229
    %v5262 = vrsqrt.pop %v5230
    %v5263 = vrsqrt.pop %v5231
    %v5264 = vrsqrt.pop %v5232
    %v5265 = vrsqrt.pop %v5233
    %v5266 = vrsqrt.pop %v5234
    %v5267 = vrsqrt.pop %v5235
    %v5268 = vrsqrt.pop %v5236
    %v5269 = vrsqrt.pop %v5237
    %v5270 = vrsqrt.pop %v5238
    %v5271 = vrsqrt.pop %v5239
    %v5272 = vrsqrt.pop %v5240
    %v5273 = vrsqrt.pop %v5241
    %v5274 = vrsqrt.pop %v5242
    %v5275 = vrsqrt.pop %v5243
    %v5276 = vrsqrt.pop %v5244
    %v5277 = vrsqrt.pop %v5245
    %v5278 = vrsqrt.pop %v5246
    %v5279 = vrsqrt.pop %v5247
    %v5280 = vrsqrt.pop %v5248
    %v5281 = vrsqrt.pop %v5249
    %v5282 = vrsqrt.pop %v5250
    %v5283 = vrsqrt.pop %v5251
    %v5284 = vmul.f32 %v5028, %v5252
    %v5285 = vmul.f32 %v5029, %v5253
    %v5286 = vmul.f32 %v5030, %v5254
    %v5287 = vmul.f32 %v5031, %v5255
    %v5288 = vmul.f32 %v5032, %v5256
    %v5289 = vmul.f32 %v5033, %v5257
    %v5290 = vmul.f32 %v5034, %v5258
    %v5291 = vmul.f32 %v5035, %v5259
    %v5292 = vmul.f32 %v5036, %v5260
    %v5293 = vmul.f32 %v5037, %v5261
    %v5294 = vmul.f32 %v5038, %v5262
    %v5295 = vmul.f32 %v5039, %v5263
    %v5296 = vmul.f32 %v5040, %v5264
    %v5297 = vmul.f32 %v5041, %v5265
    %v5298 = vmul.f32 %v5042, %v5266
    %v5299 = vmul.f32 %v5043, %v5267
    %v5300 = vmul.f32 %v5044, %v5268
    %v5301 = vmul.f32 %v5045, %v5269
    %v5302 = vmul.f32 %v5046, %v5270
    %v5303 = vmul.f32 %v5047, %v5271
    %v5304 = vmul.f32 %v5048, %v5272
    %v5305 = vmul.f32 %v5049, %v5273
    %v5306 = vmul.f32 %v5050, %v5274
    %v5307 = vmul.f32 %v5051, %v5275
    %v5308 = vmul.f32 %v5052, %v5276
    %v5309 = vmul.f32 %v5053, %v5277
    %v5310 = vmul.f32 %v5054, %v5278
    %v5311 = vmul.f32 %v5055, %v5279
    %v5312 = vmul.f32 %v5056, %v5280
    %v5313 = vmul.f32 %v5057, %v5281
    %v5314 = vmul.f32 %v5058, %v5282
    %v5315 = vmul.f32 %v5059, %v5283
    %v5316 = vmul.f32 %v5284, %v1771
    %v5317 = vmul.f32 %v5285, %v1771
    %v5318 = vmul.f32 %v5286, %v1771
    %v5319 = vmul.f32 %v5287, %v1771
    %v5320 = vmul.f32 %v5288, %v1771
    %v5321 = vmul.f32 %v5289, %v1771
    %v5322 = vmul.f32 %v5290, %v1771
    %v5323 = vmul.f32 %v5291, %v1771
    %v5324 = vmul.f32 %v5292, %v1771
    %v5325 = vmul.f32 %v5293, %v1771
    %v5326 = vmul.f32 %v5294, %v1771
    %v5327 = vmul.f32 %v5295, %v1771
    %v5328 = vmul.f32 %v5296, %v1771
    %v5329 = vmul.f32 %v5297, %v1771
    %v5330 = vmul.f32 %v5298, %v1771
    %v5331 = vmul.f32 %v5299, %v1771
    %v5332 = vmul.f32 %v5300, %v1771
    %v5333 = vmul.f32 %v5301, %v1771
    %v5334 = vmul.f32 %v5302, %v1771
    %v5335 = vmul.f32 %v5303, %v1771
    %v5336 = vmul.f32 %v5304, %v1771
    %v5337 = vmul.f32 %v5305, %v1771
    %v5338 = vmul.f32 %v5306, %v1771
    %v5339 = vmul.f32 %v5307, %v1771
    %v5340 = vmul.f32 %v5308, %v1771
    %v5341 = vmul.f32 %v5309, %v1771
    %v5342 = vmul.f32 %v5310, %v1771
    %v5343 = vmul.f32 %v5311, %v1771
    %v5344 = vmul.f32 %v5312, %v1771
    %v5345 = vmul.f32 %v5313, %v1771
    %v5346 = vmul.f32 %v5314, %v1771
    %v5347 = vmul.f32 %v5315, %v1771
    %v5348 = vadd.f32 %v5316, %v1809
    %v5349 = vadd.f32 %v5317, %v1809
    %v5350 = vadd.f32 %v5318, %v1809
    %v5351 = vadd.f32 %v5319, %v1809
    %v5352 = vadd.f32 %v5320, %v1809
    %v5353 = vadd.f32 %v5321, %v1809
    %v5354 = vadd.f32 %v5322, %v1809
    %v5355 = vadd.f32 %v5323, %v1809
    %v5356 = vadd.f32 %v5324, %v1809
    %v5357 = vadd.f32 %v5325, %v1809
    %v5358 = vadd.f32 %v5326, %v1809
    %v5359 = vadd.f32 %v5327, %v1809
    %v5360 = vadd.f32 %v5328, %v1809
    %v5361 = vadd.f32 %v5329, %v1809
    %v5362 = vadd.f32 %v5330, %v1809
    %v5363 = vadd.f32 %v5331, %v1809
    %v5364 = vadd.f32 %v5332, %v1809
    %v5365 = vadd.f32 %v5333, %v1809
    %v5366 = vadd.f32 %v5334, %v1809
    %v5367 = vadd.f32 %v5335, %v1809
    %v5368 = vadd.f32 %v5336, %v1809
    %v5369 = vadd.f32 %v5337, %v1809
    %v5370 = vadd.f32 %v5338, %v1809
    %v5371 = vadd.f32 %v5339, %v1809
    %v5372 = vadd.f32 %v5340, %v1809
    %v5373 = vadd.f32 %v5341, %v1809
    %v5374 = vadd.f32 %v5342, %v1809
    %v5375 = vadd.f32 %v5343, %v1809
    %v5376 = vadd.f32 %v5344, %v1809
    %v5377 = vadd.f32 %v5345, %v1809
    %v5378 = vadd.f32 %v5346, %v1809
    %v5379 = vadd.f32 %v5347, %v1809
    %vm5380 = vcmp.gt.f32.partialorder %v5348, 0.0
    %vm5381 = vcmp.gt.f32.partialorder %v5349, 0.0
    %vm5382 = vcmp.gt.f32.partialorder %v5350, 0.0
    %vm5383 = vcmp.gt.f32.partialorder %v5351, 0.0
    %vm5384 = vcmp.gt.f32.partialorder %v5352, 0.0
    %vm5385 = vcmp.gt.f32.partialorder %v5353, 0.0
    %vm5386 = vcmp.gt.f32.partialorder %v5354, 0.0
    %vm5387 = vcmp.gt.f32.partialorder %v5355, 0.0
    %vm5388 = vcmp.gt.f32.partialorder %v5356, 0.0
    %vm5389 = vcmp.gt.f32.partialorder %v5357, 0.0
    %vm5390 = vcmp.gt.f32.partialorder %v5358, 0.0
    %vm5391 = vcmp.gt.f32.partialorder %v5359, 0.0
    %vm5392 = vcmp.gt.f32.partialorder %v5360, 0.0
    %vm5393 = vcmp.gt.f32.partialorder %v5361, 0.0
    %vm5394 = vcmp.gt.f32.partialorder %v5362, 0.0
    %vm5395 = vcmp.gt.f32.partialorder %v5363, 0.0
    %vm5396 = vcmp.gt.f32.partialorder %v5364, 0.0
    %vm5397 = vcmp.gt.f32.partialorder %v5365, 0.0
    %vm5398 = vcmp.gt.f32.partialorder %v5366, 0.0
    %vm5399 = vcmp.gt.f32.partialorder %v5367, 0.0
    %vm5400 = vcmp.gt.f32.partialorder %v5368, 0.0
    %vm5401 = vcmp.gt.f32.partialorder %v5369, 0.0
    %vm5402 = vcmp.gt.f32.partialorder %v5370, 0.0
    %vm5403 = vcmp.gt.f32.partialorder %v5371, 0.0
    %vm5404 = vcmp.gt.f32.partialorder %v5372, 0.0
    %vm5405 = vcmp.gt.f32.partialorder %v5373, 0.0
    %vm5406 = vcmp.gt.f32.partialorder %v5374, 0.0
    %vm5407 = vcmp.gt.f32.partialorder %v5375, 0.0
    %vm5408 = vcmp.gt.f32.partialorder %v5376, 0.0
    %vm5409 = vcmp.gt.f32.partialorder %v5377, 0.0
    %vm5410 = vcmp.gt.f32.partialorder %v5378, 0.0
    %vm5411 = vcmp.gt.f32.partialorder %v5379, 0.0
    %v5412 = vmul.f32 %v5348, 0.01
    %v5413 = vmul.f32 %v5349, 0.01
    %v5414 = vmul.f32 %v5350, 0.01
    %v5415 = vmul.f32 %v5351, 0.01
    %v5416 = vmul.f32 %v5352, 0.01
    %v5417 = vmul.f32 %v5353, 0.01
    %v5418 = vmul.f32 %v5354, 0.01
    %v5419 = vmul.f32 %v5355, 0.01
    %v5420 = vmul.f32 %v5356, 0.01
    %v5421 = vmul.f32 %v5357, 0.01
    %v5422 = vmul.f32 %v5358, 0.01
    %v5423 = vmul.f32 %v5359, 0.01
    %v5424 = vmul.f32 %v5360, 0.01
    %v5425 = vmul.f32 %v5361, 0.01
    %v5426 = vmul.f32 %v5362, 0.01
    %v5427 = vmul.f32 %v5363, 0.01
    %v5428 = vmul.f32 %v5364, 0.01
    %v5429 = vmul.f32 %v5365, 0.01
    %v5430 = vmul.f32 %v5366, 0.01
    %v5431 = vmul.f32 %v5367, 0.01
    %v5432 = vmul.f32 %v5368, 0.01
    %v5433 = vmul.f32 %v5369, 0.01
    %v5434 = vmul.f32 %v5370, 0.01
    %v5435 = vmul.f32 %v5371, 0.01
    %v5436 = vmul.f32 %v5372, 0.01
    %v5437 = vmul.f32 %v5373, 0.01
    %v5438 = vmul.f32 %v5374, 0.01
    %v5439 = vmul.f32 %v5375, 0.01
    %v5440 = vmul.f32 %v5376, 0.01
    %v5441 = vmul.f32 %v5377, 0.01
    %v5442 = vmul.f32 %v5378, 0.01
    %v5443 = vmul.f32 %v5379, 0.01
    %v5444 = vsel %vm5380, %v5348, %v5412
    %v5445 = vsel %vm5381, %v5349, %v5413
    %v5446 = vsel %vm5382, %v5350, %v5414
    %v5447 = vsel %vm5383, %v5351, %v5415
    %v5448 = vsel %vm5384, %v5352, %v5416
    %v5449 = vsel %vm5385, %v5353, %v5417
    %v5450 = vsel %vm5386, %v5354, %v5418
    %v5451 = vsel %vm5387, %v5355, %v5419
    %v5452 = vsel %vm5388, %v5356, %v5420
    %v5453 = vsel %vm5389, %v5357, %v5421
    %v5454 = vsel %vm5390, %v5358, %v5422
    %v5455 = vsel %vm5391, %v5359, %v5423
    %v5456 = vsel %vm5392, %v5360, %v5424
    %v5457 = vsel %vm5393, %v5361, %v5425
    %v5458 = vsel %vm5394, %v5362, %v5426
    %v5459 = vsel %vm5395, %v5363, %v5427
    %v5460 = vsel %vm5396, %v5364, %v5428
    %v5461 = vsel %vm5397, %v5365, %v5429
    %v5462 = vsel %vm5398, %v5366, %v5430
    %v5463 = vsel %vm5399, %v5367, %v5431
    %v5464 = vsel %vm5400, %v5368, %v5432
    %v5465 = vsel %vm5401, %v5369, %v5433
    %v5466 = vsel %vm5402, %v5370, %v5434
    %v5467 = vsel %vm5403, %v5371, %v5435
    %v5468 = vsel %vm5404, %v5372, %v5436
    %v5469 = vsel %vm5405, %v5373, %v5437
    %v5470 = vsel %vm5406, %v5374, %v5438
    %v5471 = vsel %vm5407, %v5375, %v5439
    %v5472 = vsel %vm5408, %v5376, %v5440
    %v5473 = vsel %vm5409, %v5377, %v5441
    %v5474 = vsel %vm5410, %v5378, %v5442
    %v5475 = vsel %vm5411, %v5379, %v5443
    %v5476 = vadd.f32 %v5444, %v525
    %v5477 = vadd.f32 %v5445, %v528
    %v5478 = vadd.f32 %v5446, %v533
    %v5479 = vadd.f32 %v5447, %v536
    %v5480 = vadd.f32 %v5448, %v541
    %v5481 = vadd.f32 %v5449, %v544
    %v5482 = vadd.f32 %v5450, %v549
    %v5483 = vadd.f32 %v5451, %v552
    %v5484 = vadd.f32 %v5452, %v557
    %v5485 = vadd.f32 %v5453, %v560
    %v5486 = vadd.f32 %v5454, %v565
    %v5487 = vadd.f32 %v5455, %v568
    %v5488 = vadd.f32 %v5456, %v573
    %v5489 = vadd.f32 %v5457, %v576
    %v5490 = vadd.f32 %v5458, %v581
    %v5491 = vadd.f32 %v5459, %v584
    %v5492 = vadd.f32 %v5460, %v589
    %v5493 = vadd.f32 %v5461, %v592
    %v5494 = vadd.f32 %v5462, %v597
    %v5495 = vadd.f32 %v5463, %v600
    %v5496 = vadd.f32 %v5464, %v605
    %v5497 = vadd.f32 %v5465, %v608
    %v5498 = vadd.f32 %v5466, %v613
    %v5499 = vadd.f32 %v5467, %v616
    %v5500 = vadd.f32 %v5468, %v621
    %v5501 = vadd.f32 %v5469, %v624
    %v5502 = vadd.f32 %v5470, %v629
    %v5503 = vadd.f32 %v5471, %v632
    %v5504 = vadd.f32 %v5472, %v637
    %v5505 = vadd.f32 %v5473, %v640
    %v5506 = vadd.f32 %v5474, %v645
    %v5507 = vadd.f32 %v5475, %v648
    %v5508 = vpack.c.bf16 %v5477, %v5476
    %v5509 = vpack.c.bf16 %v5479, %v5478
    %v5510 = vpack.c.bf16 %v5481, %v5480
    %v5511 = vpack.c.bf16 %v5483, %v5482
    %v5512 = vpack.c.bf16 %v5485, %v5484
    %v5513 = vpack.c.bf16 %v5487, %v5486
    %v5514 = vpack.c.bf16 %v5489, %v5488
    %v5515 = vpack.c.bf16 %v5491, %v5490
    %v5516 = vpack.c.bf16 %v5493, %v5492
    %v5517 = vpack.c.bf16 %v5495, %v5494
    %v5518 = vpack.c.bf16 %v5497, %v5496
    %v5519 = vpack.c.bf16 %v5499, %v5498
    %v5520 = vpack.c.bf16 %v5501, %v5500
    %v5521 = vpack.c.bf16 %v5503, %v5502
    %v5522 = vpack.c.bf16 %v5505, %v5504
    %v5523 = vpack.c.bf16 %v5507, %v5506
    %v5524 = vld [vmem:[#allocation10] sm:$0xf]
    %v5525 = vld [vmem:[#allocation10 + $0x4] sm:$0xf]
    %v5526 = vld [vmem:[#allocation10 + $0x8] sm:$0xf]
    %v5527 = vld [vmem:[#allocation10 + $0xc] sm:$0xf]
    %v5528 = vld [vmem:[#allocation10 + $0x10] sm:$0xf]
    %v5529 = vld [vmem:[#allocation10 + $0x14] sm:$0xf]
    %v5530 = vld [vmem:[#allocation10 + $0x18] sm:$0xf]
    %v5531 = vld [vmem:[#allocation10 + $0x1c] sm:$0xf]
    %v5532 = vld [vmem:[%s11] sm:$0x1]
    %v5534 = vlaneseq
    %v5535 = vshrl.u32 %v5534, 7
    %v5536 = vsub.s32 0, %v5535
    %v5537 = vrot.slane %v5532, %v5536
    %v5547 = vunpack.c.l.b16 %v5524
    %v5548 = vunpack.c.l.b16 %v5525
    %v5549 = vunpack.c.l.b16 %v5526
    %v5550 = vunpack.c.l.b16 %v5527
    %v5551 = vunpack.c.l.b16 %v5528
    %v5552 = vunpack.c.l.b16 %v5529
    %v5553 = vunpack.c.l.b16 %v5530
    %v5554 = vunpack.c.l.b16 %v5531
    %v5555 = vpack.c.b16 %v5548, %v5547
    %v5556 = vpack.c.b16 %v5550, %v5549
    %v5557 = vpack.c.b16 %v5552, %v5551
    %v5558 = vpack.c.b16 %v5554, %v5553
    %v5564 = vsel %vm441, %v5508, 0
    %v5567 = vsel %vm441, %v5509, 0
    %v5570 = vsel %vm441, %v5510, 0
    %v5573 = vsel %vm441, %v5511, 0
    %v5576 = vsel %vm441, %v5512, 0
    %v5579 = vsel %vm441, %v5513, 0
    %v5582 = vsel %vm441, %v5514, 0
    %v5585 = vsel %vm441, %v5515, 0
    %v5588 = vsel %vm441, %v5516, 0
    %v5591 = vsel %vm441, %v5517, 0
    %v5594 = vsel %vm441, %v5518, 0
    %v5597 = vsel %vm441, %v5519, 0
    %v5600 = vsel %vm441, %v5520, 0
    %v5603 = vsel %vm441, %v5521, 0
    %v5606 = vsel %vm441, %v5522, 0
    %v5609 = vsel %vm441, %v5523, 0
    %5611 = vmatprep.subr.bf16.mxu0 0
    %5612 = vmatpush1.bf16.msra.mxu0 %v5555
    %5613 = vmatprep.subr.bf16.mxu0 0
    %5614 = vmatpush1.bf16.msra.mxu0 %v5556
    %5615 = vmatprep.subr.bf16.mxu0 0
    %5616 = vmatpush1.bf16.msra.mxu0 %v5557
    %5617 = vmatprep.subr.bf16.mxu0 0
    %5618 = vmatpush1.bf16.msra.mxu0 %v5558
    %5619 = vmatprep.subr.bf16.mxu0 0
    %5620 = vmatpush1.bf16.msra.mxu0 0
    %5621 = vmatprep.subr.bf16.mxu0 0
    %5622 = vmatpush1.bf16.msra.mxu0 0
    %5623 = vmatprep.subr.bf16.mxu0 0
    %5624 = vmatpush1.bf16.msra.mxu0 0
    %5625 = vmatprep.subr.bf16.mxu0 0
    %5626 = vmatpush1.bf16.msra.mxu0 0
    %5627 = vmatprep.subr.bf16.mxu0 0
    %5628 = vmatpush1.bf16.msra.mxu0 0
    %5629 = vmatprep.subr.bf16.mxu0 0
    %5630 = vmatpush1.bf16.msra.mxu0 0
    %5631 = vmatprep.subr.bf16.mxu0 0
    %5632 = vmatpush1.bf16.msra.mxu0 0
    %5633 = vmatprep.subr.bf16.mxu0 0
    %5634 = vmatpush1.bf16.msra.mxu0 0
    %5635 = vmatprep.subr.bf16.mxu0 0
    %5636 = vmatpush1.bf16.msra.mxu0 0
    %5637 = vmatprep.subr.bf16.mxu0 0
    %5638 = vmatpush1.bf16.msra.mxu0 0
    %5639 = vmatprep.subr.bf16.mxu0 0
    %5640 = vmatpush1.bf16.msra.mxu0 0
    %5641 = vmatprep.subr.bf16.mxu0 0
    %5642 = vmatpush1.bf16.msra.mxu0 0
    %5643 = vmatprep.mubr.bf16.mxu0 0
    %5644 = vmatmul.mubr.bf16.gmra.mrb[0].mxu0 %v5564
    %v5645 = vpop.f32.mrb[0].mxu0
    %v5646 = vadd.f32 %v5537, %v5645
    %v5647 = vpop.f32.mrb[0].mxu0
    %v5648 = vpop.f32.mrb[0].mxu0
    %v5649 = vadd.f32 %v5537, %v5648
    %v5650 = vpop.f32.mrb[0].mxu0
    %5651 = vmatprep.mubr.bf16.mxu0 0
    %5652 = vmatmul.mubr.bf16.gmra.mrb[0].mxu0 %v5567
    %v5653 = vpop.f32.mrb[0].mxu0
    %v5654 = vadd.f32 %v5537, %v5653
    %v5655 = vpop.f32.mrb[0].mxu0
    %v5656 = vpop.f32.mrb[0].mxu0
    %v5657 = vadd.f32 %v5537, %v5656
    %v5658 = vpop.f32.mrb[0].mxu0
    %5659 = vmatprep.mubr.bf16.mxu0 0
    %5660 = vmatmul.mubr.bf16.gmra.mrb[0].mxu0 %v5570
    %v5661 = vpop.f32.mrb[0].mxu0
    %v5662 = vadd.f32 %v5537, %v5661
    %v5663 = vpop.f32.mrb[0].mxu0
    %v5664 = vpop.f32.mrb[0].mxu0
    %v5665 = vadd.f32 %v5537, %v5664
    %v5666 = vpop.f32.mrb[0].mxu0
    %5667 = vmatprep.mubr.bf16.mxu0 0
    %5668 = vmatmul.mubr.bf16.gmra.mrb[0].mxu0 %v5573
    %v5669 = vpop.f32.mrb[0].mxu0
    %v5670 = vadd.f32 %v5537, %v5669
    %v5671 = vpop.f32.mrb[0].mxu0
    %v5672 = vpop.f32.mrb[0].mxu0
    %v5673 = vadd.f32 %v5537, %v5672
    %v5674 = vpop.f32.mrb[0].mxu0
    %5675 = vmatprep.mubr.bf16.mxu0 0
    %5676 = vmatmul.mubr.bf16.gmra.mrb[0].mxu0 %v5576
    %v5677 = vpop.f32.mrb[0].mxu0
    %v5678 = vadd.f32 %v5537, %v5677
    %v5679 = vpop.f32.mrb[0].mxu0
    %v5680 = vpop.f32.mrb[0].mxu0
    %v5681 = vadd.f32 %v5537, %v5680
    %v5682 = vpop.f32.mrb[0].mxu0
    %5683 = vmatprep.mubr.bf16.mxu0 0
    %5684 = vmatmul.mubr.bf16.gmra.mrb[0].mxu0 %v5579
    %v5685 = vpop.f32.mrb[0].mxu0
    %v5686 = vadd.f32 %v5537, %v5685
    %v5687 = vpop.f32.mrb[0].mxu0
    %v5688 = vpop.f32.mrb[0].mxu0
    %v5689 = vadd.f32 %v5537, %v5688
    %v5690 = vpop.f32.mrb[0].mxu0
    %5691 = vmatprep.mubr.bf16.mxu0 0
    %5692 = vmatmul.mubr.bf16.gmra.mrb[0].mxu0 %v5582
    %v5693 = vpop.f32.mrb[0].mxu0
    %v5694 = vadd.f32 %v5537, %v5693
    %v5695 = vpop.f32.mrb[0].mxu0
    %v5696 = vpop.f32.mrb[0].mxu0
    %v5697 = vadd.f32 %v5537, %v5696
    %v5698 = vpop.f32.mrb[0].mxu0
    %5699 = vmatprep.mubr.bf16.mxu0 0
    %5700 = vmatmul.mubr.bf16.gmra.mrb[0].mxu0 %v5585
    %v5701 = vpop.f32.mrb[0].mxu0
    %v5702 = vadd.f32 %v5537, %v5701
    %v5703 = vpop.f32.mrb[0].mxu0
    %v5704 = vpop.f32.mrb[0].mxu0
    %v5705 = vadd.f32 %v5537, %v5704
    %v5706 = vpop.f32.mrb[0].mxu0
    %5707 = vmatprep.mubr.bf16.mxu0 0
    %5708 = vmatmul.mubr.bf16.gmra.mrb[0].mxu0 %v5588
    %v5709 = vpop.f32.mrb[0].mxu0
    %v5710 = vadd.f32 %v5537, %v5709
    %v5711 = vpop.f32.mrb[0].mxu0
    %v5712 = vpop.f32.mrb[0].mxu0
    %v5713 = vadd.f32 %v5537, %v5712
    %v5714 = vpop.f32.mrb[0].mxu0
    %5715 = vmatprep.mubr.bf16.mxu0 0
    %5716 = vmatmul.mubr.bf16.gmra.mrb[0].mxu0 %v5591
    %v5717 = vpop.f32.mrb[0].mxu0
    %v5718 = vadd.f32 %v5537, %v5717
    %v5719 = vpop.f32.mrb[0].mxu0
    %v5720 = vpop.f32.mrb[0].mxu0
    %v5721 = vadd.f32 %v5537, %v5720
    %v5722 = vpop.f32.mrb[0].mxu0
    %5723 = vmatprep.mubr.bf16.mxu0 0
    %5724 = vmatmul.mubr.bf16.gmra.mrb[0].mxu0 %v5594
    %v5725 = vpop.f32.mrb[0].mxu0
    %v5726 = vadd.f32 %v5537, %v5725
    %v5727 = vpop.f32.mrb[0].mxu0
    %v5728 = vpop.f32.mrb[0].mxu0
    %v5729 = vadd.f32 %v5537, %v5728
    %v5730 = vpop.f32.mrb[0].mxu0
    %5731 = vmatprep.mubr.bf16.mxu0 0
    %5732 = vmatmul.mubr.bf16.gmra.mrb[0].mxu0 %v5597
    %v5733 = vpop.f32.mrb[0].mxu0
    %v5734 = vadd.f32 %v5537, %v5733
    %v5735 = vpop.f32.mrb[0].mxu0
    %v5736 = vpop.f32.mrb[0].mxu0
    %v5737 = vadd.f32 %v5537, %v5736
    %v5738 = vpop.f32.mrb[0].mxu0
    %5739 = vmatprep.mubr.bf16.mxu0 0
    %5740 = vmatmul.mubr.bf16.gmra.mrb[0].mxu0 %v5600
    %v5741 = vpop.f32.mrb[0].mxu0
    %v5742 = vadd.f32 %v5537, %v5741
    %v5743 = vpop.f32.mrb[0].mxu0
    %v5744 = vpop.f32.mrb[0].mxu0
    %v5745 = vadd.f32 %v5537, %v5744
    %v5746 = vpop.f32.mrb[0].mxu0
    %5747 = vmatprep.mubr.bf16.mxu0 0
    %5748 = vmatmul.mubr.bf16.gmra.mrb[0].mxu0 %v5603
    %v5749 = vpop.f32.mrb[0].mxu0
    %v5750 = vadd.f32 %v5537, %v5749
    %v5751 = vpop.f32.mrb[0].mxu0
    %v5752 = vpop.f32.mrb[0].mxu0
    %v5753 = vadd.f32 %v5537, %v5752
    %v5754 = vpop.f32.mrb[0].mxu0
    %5755 = vmatprep.mubr.bf16.mxu0 0
    %5756 = vmatmul.mubr.bf16.gmra.mrb[0].mxu0 %v5606
    %v5757 = vpop.f32.mrb[0].mxu0
    %v5758 = vadd.f32 %v5537, %v5757
    %v5759 = vpop.f32.mrb[0].mxu0
    %v5760 = vpop.f32.mrb[0].mxu0
    %v5761 = vadd.f32 %v5537, %v5760
    %v5762 = vpop.f32.mrb[0].mxu0
    %5763 = vmatprep.mubr.bf16.mxu0 0
    %5764 = vmatmul.mubr.bf16.gmra.mrb[0].mxu0 %v5609
    %v5765 = vpop.f32.mrb[0].mxu0
    %v5766 = vadd.f32 %v5537, %v5765
    %v5767 = vpop.f32.mrb[0].mxu0
    %v5768 = vpop.f32.mrb[0].mxu0
    %v5769 = vpop.f32.mrb[0].mxu0
    %5770 = vdwg.mxu0
    %5771 = vst [vmem:[#allocation11] sm:$0xff] %v5646
    %5772 = vst [vmem:[#allocation11 + $0x8] sm:$0xff] %v5649
    %5773 = vst [vmem:[#allocation11 + $0x10] sm:$0xff] %v5654
    %5774 = vst [vmem:[#allocation11 + $0x18] sm:$0xff] %v5657
    %5775 = vst [vmem:[#allocation11 + $0x20] sm:$0xff] %v5662
    %5776 = vst [vmem:[#allocation11 + $0x28] sm:$0xff] %v5665
    %5777 = vst [vmem:[#allocation11 + $0x30] sm:$0xff] %v5670
    %5778 = vst [vmem:[#allocation11 + $0x38] sm:$0xff] %v5673
    %5779 = vst [vmem:[#allocation11 + $0x40] sm:$0xff] %v5678
    %5780 = vst [vmem:[#allocation11 + $0x48] sm:$0xff] %v5681
    %5781 = vst [vmem:[#allocation11 + $0x50] sm:$0xff] %v5686
    %5782 = vst [vmem:[#allocation11 + $0x58] sm:$0xff] %v5689
    %5783 = vst [vmem:[#allocation11 + $0x60] sm:$0xff] %v5694
    %5784 = vst [vmem:[#allocation11 + $0x68] sm:$0xff] %v5697
    %5785 = vst [vmem:[#allocation11 + $0x70] sm:$0xff] %v5702
    %5786 = vst [vmem:[#allocation11 + $0x78] sm:$0xff] %v5705
    %5787 = vst [vmem:[#allocation11 + $0x80] sm:$0xff] %v5710
    %5788 = vst [vmem:[#allocation11 + $0x88] sm:$0xff] %v5713
    %5789 = vst [vmem:[#allocation11 + $0x90] sm:$0xff] %v5718
    %5790 = vst [vmem:[#allocation11 + $0x98] sm:$0xff] %v5721
    %5791 = vst [vmem:[#allocation11 + $0xa0] sm:$0xff] %v5726
    %5792 = vst [vmem:[#allocation11 + $0xa8] sm:$0xff] %v5729
    %5793 = vst [vmem:[#allocation11 + $0xb0] sm:$0xff] %v5734
    %5794 = vst [vmem:[#allocation11 + $0xb8] sm:$0xff] %v5737
    %5795 = vst [vmem:[#allocation11 + $0xc0] sm:$0xff] %v5742
    %5796 = vst [vmem:[#allocation11 + $0xc8] sm:$0xff] %v5745
    %5797 = vst [vmem:[#allocation11 + $0xd0] sm:$0xff] %v5750
    %5798 = vst [vmem:[#allocation11 + $0xd8] sm:$0xff] %v5753
    %5799 = vst [vmem:[#allocation11 + $0xe0] sm:$0xff] %v5758
    %5800 = vst [vmem:[#allocation11 + $0xe8] sm:$0xff] %v5761
    %5801 = vst [vmem:[#allocation11 + $0xf0] sm:$0xff] %v5766
    // Predicated region
    $region70: #{tpu_custom_call.1} parent=1 // pred_check
      _
    $region71: #{tpu_custom_call.1} parent=1 // pred_check_branch
      %5803 = sbr.rel (0) target = $region73
    $region72: #{tpu_custom_call.1} parent=1 // pred_region
      %s5805 = ssub.s32 3968, 3968
      %5806 = vsyncadd [#allocation4], %s5805
      %s5807 = sshll.u32 [#allocation11], 4
      %s5808 = int_to_ptr.vmem [resolvable:$true] %s5807
      %5813 = dma.vmem_to_hbm [thread:$0]  %s5808, 3968, %s12, [#allocation4], 128, 128, 8
    $region73: #{tpu_custom_call.1} parent=1 // pred_fallthru
      _
    // Predicated region
    $region74: #{tpu_custom_call.1} parent=1 // pred_check
      _
    $region75: #{tpu_custom_call.1} parent=1 // pred_check_branch
      %5815 = sbr.rel (0) target = $region77
    $region76: #{tpu_custom_call.1} parent=1 // pred_region
      %5816 = dma.done [#allocation4], 3968
    $region77: #{tpu_custom_call.1} parent=1 // pred_fallthru
      _
    %5817 = vsyncpa [#allocation3], 1
    %5818 = vsyncpa [#allocation6], 1
    %5819 = vsyncpa [#allocation9], 1
    %5820 = vsyncpa [#allocation4], 1

</llo_original>
